<compile_context>
chip_gen: v7x
topology: tpu7x:2x2x1
jax: 0.10.0
libtpu: 0.0.40
codegen_flags: <defaults>
</compile_context>

<pallas_src>
import functools
import math

import numpy as np
import jax
import jax.numpy as jnp
from jax import lax
from jax.experimental import pallas as pl
from jax.experimental.pallas import tpu as pltpu

HIDDEN_DIMS = (64, 128, 64)
POSITION_DIM = 2
ORIENTATION_DIM = 1
ENC_INPUT_DIM = POSITION_DIM + 2 * ORIENTATION_DIM   # 4 after sinusoidal encoding
_DEG2RAD = math.pi / 180.0
_LANE = 128


def _spatial_kernel(pos_ref, orient_ref, w1_ref, b1_ref, w2_ref, b2_ref,
                    w3_ref, b3_ref, out_ref):
    """One batch tile: pos (TM,2) f32, orient (TM,1) f32 degrees -> out (TM,64)."""
    pos = pos_ref[...]                    # (TM, 2) f32
    w1 = w1_ref[...]                      # (4, 64) f32 — load once, slice the value

    px = pos[:, 0:1]                      # (TM, 1)
    py = pos[:, 1:2]
    rad = orient_ref[...] * jnp.float32(_DEG2RAD)      # (TM, 1)
    sin_o = jnp.sin(rad)                  # EUP
    cos_o = jnp.cos(rad)

    # Layer 1 entirely on the VPU: a K<=4 matmul would pad to K=128/256 on the
    # MXU; four (TM,1)*(1,64) broadcast FMAs are essentially free VALU filler.
    h1 = px * w1[0:1, :]
    h1 = h1 + py * w1[1:2, :]
    h1 = h1 + sin_o * w1[2:3, :]
    h1 = h1 + cos_o * w1[3:4, :]
    h1 = jnp.maximum(h1 + b1_ref[...], 0.0)             # (TM, 64) f32

    # Layers 2/3 on the MXU.  Operand dtype follows the weight dtype passed in
    # (bf16 default); f32 weights get precision=HIGHEST for reference parity.
    mm_prec = (lax.Precision.HIGHEST
               if w2_ref.dtype == jnp.float32 else None)
    h2 = jnp.dot(h1.astype(w2_ref.dtype), w2_ref[...],
                 preferred_element_type=jnp.float32, precision=mm_prec)
    h2 = jnp.maximum(h2 + b2_ref[...], 0.0)              # (TM, 128) f32

    h3 = jnp.dot(h2.astype(w3_ref.dtype), w3_ref[...],
                 preferred_element_type=jnp.float32, precision=mm_prec)
    h3 = jnp.maximum(h3 + b3_ref[...], 0.0)              # (TM, 64) f32

    out_ref[...] = h3.astype(out_ref.dtype)


def _round_up(x, m):
    return ((x + m - 1) // m) * m


def _vmem_limit_bytes(tm):
    """Scoped-VMEM limit sized to the block working set, capped per device."""
    tile = tm * _LANE * 4                 # one (tm, <=128-lane-padded) f32 tile
    # pos + orient + out blocks, double-buffered (6 tiles) + ~5 tiles of
    # in-kernel temporaries (h1/h2/h3, broadcasts) + weights/margin.
    need = 11 * tile + (2 << 20)
    try:
        cap = int(pltpu.get_tpu_info().vmem_capacity_bytes)
    except Exception:                     # pragma: no cover — conservative fallback
        cap = 64 << 20                    # v7x per-TC physical VMEM
    return int(min(max(need, 32 << 20), int(cap * 0.75)))


@functools.partial(
    jax.jit,
    static_argnames=("tm", "matmul_dtype", "out_dtype", "core_parallel"))
def spatial_position_extractor(position, orientation, params, *,
                               tm=4096, matmul_dtype=jnp.bfloat16,
                               out_dtype=jnp.float32, core_parallel=False):
    """position (B,2) f32, orientation (B,1) f32 degrees -> (B, 64) out_dtype.

    matmul_dtype=bf16 (default fast path) changes layer-2/3 numerics by
    ~0.1-0.5% rel error; pass jnp.float32 for parity with the reference.
    core_parallel=True splits the batch grid across TensorCores (use on v7x).
    out_dtype=bf16 halves the dominant HBM output stream if downstream allows.
    """
    position = position.astype(jnp.float32)
    orientation = orientation.astype(jnp.float32)
    if orientation.ndim == 1:
        orientation = orientation[:, None]
    B = position.shape[0]
    w1, b1, w2, b2, w3, b3 = params

    # Weight dtype for the MXU layers (bf16 by default; f32 for parity).
    w2c = w2.astype(matmul_dtype)
    w3c = w3.astype(matmul_dtype)

    # Largest tile not exceeding the (8-rounded) batch; the pipeline masks the
    # final partial block, so no batch-padding pass is needed.
    tm_eff = min(_round_up(tm, 8), _round_up(B, 8))
    grid_m = pl.cdiv(B, tm_eff)
    rows = grid_m * tm_eff

    flops = 2 * rows * (ENC_INPUT_DIM * HIDDEN_DIMS[0]
                        + HIDDEN_DIMS[0] * HIDDEN_DIMS[1]
                        + HIDDEN_DIMS[1] * HIDDEN_DIMS[2])
    weight_bytes = sum(int(a.size) * a.dtype.itemsize
                       for a in (w1, b1, w2c, b2, w3c, b3))
    out_itemsize = np.dtype(out_dtype).itemsize
    bytes_accessed = (rows * (POSITION_DIM + ORIENTATION_DIM) * 4   # inputs
                      + rows * HIDDEN_DIMS[-1] * out_itemsize       # output
                      + weight_bytes)

    pos_spec = pl.BlockSpec((tm_eff, POSITION_DIM), lambda i: (i, 0))
    orient_spec = pl.BlockSpec((tm_eff, ORIENTATION_DIM), lambda i: (i, 0))
    out_spec = pl.BlockSpec((tm_eff, HIDDEN_DIMS[-1]), lambda i: (i, 0))
    # Full-array blocks with a constant index_map -> weights/biases are DMA'd
    # once and stay resident in VMEM across the whole batch grid.
    resident = lambda a: pl.BlockSpec(a.shape, lambda i: (0, 0))

    # On v7x pass core_parallel=True to split the batch across both TCs.
    semantics = ((pltpu.CORE_PARALLEL,) if core_parallel else ("parallel",))

    out = pl.pallas_call(
        _spatial_kernel,
        out_shape=jax.ShapeDtypeStruct((B, HIDDEN_DIMS[-1]), out_dtype),
        grid=(grid_m,),
        in_specs=[pos_spec, orient_spec,
                  resident(w1), resident(b1),
                  resident(w2c), resident(b2),
                  resident(w3c), resident(b3)],
        out_specs=out_spec,
        compiler_params=pltpu.CompilerParams(
            dimension_semantics=semantics,
            vmem_limit_bytes=_vmem_limit_bytes(tm_eff)),
        cost_estimate=pl.CostEstimate(
            flops=flops,
            transcendentals=2 * rows,
            bytes_accessed=bytes_accessed),
    )(position, orientation, w1, b1, w2c, b2, w3c, b3)

    return out


def init_params(key):
    """Deterministic Xavier-uniform weights, zero biases (matches module init)."""
    dims = [ENC_INPUT_DIM] + list(HIDDEN_DIMS)
    params = []
    keys = jax.random.split(key, len(HIDDEN_DIMS))
    for i, (fan_in, fan_out) in enumerate(zip(dims[:-1], dims[1:])):
        bound = math.sqrt(6.0 / (fan_in + fan_out))
        w = jax.random.uniform(keys[i], (fan_in, fan_out), jnp.float32,
                               minval=-bound, maxval=bound)
        b = jnp.zeros((1, fan_out), jnp.float32)
        params.extend([w, b])
    return tuple(params)


def reference_forward(position, orientation, params):
    """Pure-JAX reference mirroring the PyTorch forward (dropout = identity)."""
    w1, b1, w2, b2, w3, b3 = params
    hp = lax.Precision.HIGHEST
    rad = orientation * (math.pi / 180.0)
    x = jnp.concatenate([position, jnp.sin(rad), jnp.cos(rad)], axis=1)
    h = jnp.maximum(jnp.dot(x, w1, precision=hp) + b1, 0.0)
    h = jnp.maximum(jnp.dot(h, w2, precision=hp) + b2, 0.0)
    h = jnp.maximum(jnp.dot(h, w3, precision=hp) + b3, 0.0)
    return h


if __name__ == "__main__":
    key = jax.random.PRNGKey(0)
    k_pos, k_orient, k_params = jax.random.split(key, 3)

    B = 200      # not a multiple of any tile -> exercises the partial last block

    position = jax.random.uniform(k_pos, (B, POSITION_DIM), jnp.float32,
                                  minval=0.0, maxval=640.0)
    orientation = jax.random.uniform(k_orient, (B, ORIENTATION_DIM), jnp.float32,
                                     minval=0.0, maxval=360.0)
    params = init_params(k_params)
    ref = reference_forward(position, orientation, params)

    # High-precision path (f32 MXU matmuls with precision=HIGHEST); small tile
    # so the demo actually runs a multi-step grid with a partial last block.
    out_f32 = spatial_position_extractor(position, orientation, params,
                                         tm=64, matmul_dtype=jnp.float32)
    out_f32 = jax.block_until_ready(out_f32)
    assert out_f32.shape == (B, HIDDEN_DIMS[-1])
    assert jnp.allclose(out_f32, ref, atol=1e-3, rtol=1e-3), \
        "f32 path mismatch vs reference"

    # Default fast path (bf16 MXU operands, f32 accumulation, default tiling).
    out_fast = spatial_position_extractor(position, orientation, params)
    out_fast = jax.block_until_ready(out_fast)
    assert out_fast.shape == (B, HIDDEN_DIMS[-1])
    max_ref = float(jnp.max(jnp.abs(ref)))
    max_err = float(jnp.max(jnp.abs(out_fast - ref)))
    assert max_err <= 5e-2 * max_ref + 1e-2, \
        f"bf16 path mismatch vs reference: max_err={max_err}, max_ref={max_ref}"

    # Optional bf16-output path (halves the dominant HBM stream).
    out_bf16 = spatial_position_extractor(position, orientation, params,
                                          out_dtype=jnp.bfloat16)
    out_bf16 = jax.block_until_ready(out_bf16)
    assert out_bf16.dtype == jnp.bfloat16
    assert out_bf16.shape == (B, HIDDEN_DIMS[-1])

    # TODO(synk): nn.Dropout between hidden layers is identity at inference and
    # is intentionally not implemented (no training-mode RNG path).
    print("KERNEL_OK")
</pallas_src>

<mosaic_0001>
module attributes {stable_mosaic.version = 11 : i64} {
  func.func @_spatial_kernel(%arg0: i32, %arg1: memref<64x2xf32, #tpu.memory_space<vmem>>, %arg2: memref<64x1xf32, #tpu.memory_space<vmem>>, %arg3: memref<4x64xf32, #tpu.memory_space<vmem>>, %arg4: memref<1x64xf32, #tpu.memory_space<vmem>>, %arg5: memref<64x128xf32, #tpu.memory_space<vmem>>, %arg6: memref<1x128xf32, #tpu.memory_space<vmem>>, %arg7: memref<128x64xf32, #tpu.memory_space<vmem>>, %arg8: memref<1x64xf32, #tpu.memory_space<vmem>>, %arg9: memref<64x64xf32, #tpu.memory_space<vmem>>) attributes {dimension_semantics = [#tpu.dimension_semantics<parallel>], iteration_bounds = array<i64: 4>, scalar_prefetch = 0 : i64, scratch_operands = 0 : i64, tpu.core_type = #tpu.core_type<tc>, window_params = [{transform_indices = @transform_0, window_bounds = array<i64: 64, 2>}, {transform_indices = @transform_1, window_bounds = array<i64: 64, 1>}, {pipeline_mode = #tpu.pipeline_mode<synchronous>, transform_indices = @transform_2, window_bounds = array<i64: 4, 64>}, {pipeline_mode = #tpu.pipeline_mode<synchronous>, transform_indices = @transform_3, window_bounds = array<i64: 1, 64>}, {pipeline_mode = #tpu.pipeline_mode<synchronous>, transform_indices = @transform_4, window_bounds = array<i64: 64, 128>}, {pipeline_mode = #tpu.pipeline_mode<synchronous>, transform_indices = @transform_5, window_bounds = array<i64: 1, 128>}, {pipeline_mode = #tpu.pipeline_mode<synchronous>, transform_indices = @transform_6, window_bounds = array<i64: 128, 64>}, {pipeline_mode = #tpu.pipeline_mode<synchronous>, transform_indices = @transform_7, window_bounds = array<i64: 1, 64>}, {transform_indices = @transform_8, window_bounds = array<i64: 64, 64>}]} {
    %c0 = arith.constant 0 : index
    %c0_0 = arith.constant 0 : index
    %0 = vector.load %arg1[%c0, %c0_0] : memref<64x2xf32, #tpu.memory_space<vmem>>, vector<64x2xf32>
    %c0_1 = arith.constant 0 : index
    %c0_2 = arith.constant 0 : index
    %1 = vector.load %arg3[%c0_1, %c0_2] : memref<4x64xf32, #tpu.memory_space<vmem>>, vector<4x64xf32>
    %2 = vector.extract_strided_slice %0 {offsets = [0, 0], sizes = [64, 1], strides = [1, 1]} : vector<64x2xf32> to vector<64x1xf32>
    %3 = vector.extract_strided_slice %0 {offsets = [0, 1], sizes = [64, 1], strides = [1, 1]} : vector<64x2xf32> to vector<64x1xf32>
    %c0_3 = arith.constant 0 : index
    %c0_4 = arith.constant 0 : index
    %4 = vector.load %arg2[%c0_3, %c0_4] : memref<64x1xf32, #tpu.memory_space<vmem>>, vector<64x1xf32>
    %cst = arith.constant 0.0174532924 : f32
    %5 = vector.broadcast %cst : f32 to vector<64x1xf32>
    %6 = arith.mulf %4, %5 : vector<64x1xf32>
    %7 = math.sin %6 : vector<64x1xf32>
    %8 = math.cos %6 : vector<64x1xf32>
    %9 = vector.extract_strided_slice %1 {offsets = [0, 0], sizes = [1, 64], strides = [1, 1]} : vector<4x64xf32> to vector<1x64xf32>
    %10 = vector.broadcast %2 : vector<64x1xf32> to vector<64x64xf32>
    %11 = vector.broadcast %9 : vector<1x64xf32> to vector<64x64xf32>
    %12 = arith.mulf %10, %11 : vector<64x64xf32>
    %13 = vector.extract_strided_slice %1 {offsets = [1, 0], sizes = [1, 64], strides = [1, 1]} : vector<4x64xf32> to vector<1x64xf32>
    %14 = vector.broadcast %3 : vector<64x1xf32> to vector<64x64xf32>
    %15 = vector.broadcast %13 : vector<1x64xf32> to vector<64x64xf32>
    %16 = arith.mulf %14, %15 : vector<64x64xf32>
    %17 = arith.addf %12, %16 : vector<64x64xf32>
    %18 = vector.extract_strided_slice %1 {offsets = [2, 0], sizes = [1, 64], strides = [1, 1]} : vector<4x64xf32> to vector<1x64xf32>
    %19 = vector.broadcast %7 : vector<64x1xf32> to vector<64x64xf32>
    %20 = vector.broadcast %18 : vector<1x64xf32> to vector<64x64xf32>
    %21 = arith.mulf %19, %20 : vector<64x64xf32>
    %22 = arith.addf %17, %21 : vector<64x64xf32>
    %23 = vector.extract_strided_slice %1 {offsets = [3, 0], sizes = [1, 64], strides = [1, 1]} : vector<4x64xf32> to vector<1x64xf32>
    %24 = vector.broadcast %8 : vector<64x1xf32> to vector<64x64xf32>
    %25 = vector.broadcast %23 : vector<1x64xf32> to vector<64x64xf32>
    %26 = arith.mulf %24, %25 : vector<64x64xf32>
    %27 = arith.addf %22, %26 : vector<64x64xf32>
    %c0_5 = arith.constant 0 : index
    %c0_6 = arith.constant 0 : index
    %28 = vector.load %arg4[%c0_5, %c0_6] : memref<1x64xf32, #tpu.memory_space<vmem>>, vector<1x64xf32>
    %29 = vector.broadcast %28 : vector<1x64xf32> to vector<64x64xf32>
    %30 = arith.addf %27, %29 : vector<64x64xf32>
    %cst_7 = arith.constant 0.000000e+00 : f32
    %31 = vector.broadcast %cst_7 : f32 to vector<64x64xf32>
    %32 = arith.maximumf %30, %31 : vector<64x64xf32>
    %c0_8 = arith.constant 0 : index
    %c0_9 = arith.constant 0 : index
    %33 = vector.load %arg5[%c0_8, %c0_9] : memref<64x128xf32, #tpu.memory_space<vmem>>, vector<64x128xf32>
    %cst_10 = arith.constant dense<0.000000e+00> : vector<64x128xf32>
    %34 = tpu.matmul %32, %33, %cst_10 {dimension_numbers = #tpu.dot_dimension_numbers<[1], [0], [0], [1], [0, 0, 1, 1], [], []>, precision = #tpu.contract_precision<fp32>} : vector<64x64xf32>, vector<64x128xf32>, vector<64x128xf32> -> vector<64x128xf32>
    %c0_11 = arith.constant 0 : index
    %c0_12 = arith.constant 0 : index
    %35 = vector.load %arg6[%c0_11, %c0_12] : memref<1x128xf32, #tpu.memory_space<vmem>>, vector<1x128xf32>
    %36 = vector.broadcast %35 : vector<1x128xf32> to vector<64x128xf32>
    %37 = arith.addf %34, %36 : vector<64x128xf32>
    %cst_13 = arith.constant 0.000000e+00 : f32
    %38 = vector.broadcast %cst_13 : f32 to vector<64x128xf32>
    %39 = arith.maximumf %37, %38 : vector<64x128xf32>
    %c0_14 = arith.constant 0 : index
    %c0_15 = arith.constant 0 : index
    %40 = vector.load %arg7[%c0_14, %c0_15] : memref<128x64xf32, #tpu.memory_space<vmem>>, vector<128x64xf32>
    %cst_16 = arith.constant dense<0.000000e+00> : vector<64x64xf32>
    %41 = tpu.matmul %39, %40, %cst_16 {dimension_numbers = #tpu.dot_dimension_numbers<[1], [0], [0], [1], [0, 0, 1, 1], [], []>, precision = #tpu.contract_precision<fp32>} : vector<64x128xf32>, vector<128x64xf32>, vector<64x64xf32> -> vector<64x64xf32>
    %c0_17 = arith.constant 0 : index
    %c0_18 = arith.constant 0 : index
    %42 = vector.load %arg8[%c0_17, %c0_18] : memref<1x64xf32, #tpu.memory_space<vmem>>, vector<1x64xf32>
    %43 = vector.broadcast %42 : vector<1x64xf32> to vector<64x64xf32>
    %44 = arith.addf %41, %43 : vector<64x64xf32>
    %cst_19 = arith.constant 0.000000e+00 : f32
    %45 = vector.broadcast %cst_19 : f32 to vector<64x64xf32>
    %46 = arith.maximumf %44, %45 : vector<64x64xf32>
    %c0_20 = arith.constant 0 : index
    %c0_21 = arith.constant 0 : index
    %47 = vector.load %arg9[%c0_20, %c0_21] : memref<64x64xf32, #tpu.memory_space<vmem>>, vector<64x64xf32>
    tpu.vector_store %arg9[%c0_20, %c0_21], %46 {strides = array<i32>} : memref<64x64xf32, #tpu.memory_space<vmem>>, vector<64x64xf32>,
    return
  }
  func.func @transform_0(%arg0: i32) -> (i32, i32) {
    %c0_i32 = arith.constant 0 : i32
    %c0_i32_0 = arith.constant 0 : i32
    return %arg0, %c0_i32 : i32, i32
  }
  func.func @transform_1(%arg0: i32) -> (i32, i32) {
    %c0_i32 = arith.constant 0 : i32
    %c0_i32_0 = arith.constant 0 : i32
    return %arg0, %c0_i32 : i32, i32
  }
  func.func @transform_2(%arg0: i32) -> (i32, i32) {
    %c0_i32 = arith.constant 0 : i32
    %c0_i32_0 = arith.constant 0 : i32
    %c0_i32_1 = arith.constant 0 : i32
    return %c0_i32, %c0_i32_0 : i32, i32
  }
  func.func @transform_3(%arg0: i32) -> (i32, i32) {
    %c0_i32 = arith.constant 0 : i32
    %c0_i32_0 = arith.constant 0 : i32
    %c0_i32_1 = arith.constant 0 : i32
    return %c0_i32, %c0_i32_0 : i32, i32
  }
  func.func @transform_4(%arg0: i32) -> (i32, i32) {
    %c0_i32 = arith.constant 0 : i32
    %c0_i32_0 = arith.constant 0 : i32
    %c0_i32_1 = arith.constant 0 : i32
    return %c0_i32, %c0_i32_0 : i32, i32
  }
  func.func @transform_5(%arg0: i32) -> (i32, i32) {
    %c0_i32 = arith.constant 0 : i32
    %c0_i32_0 = arith.constant 0 : i32
    %c0_i32_1 = arith.constant 0 : i32
    return %c0_i32, %c0_i32_0 : i32, i32
  }
  func.func @transform_6(%arg0: i32) -> (i32, i32) {
    %c0_i32 = arith.constant 0 : i32
    %c0_i32_0 = arith.constant 0 : i32
    %c0_i32_1 = arith.constant 0 : i32
    return %c0_i32, %c0_i32_0 : i32, i32
  }
  func.func @transform_7(%arg0: i32) -> (i32, i32) {
    %c0_i32 = arith.constant 0 : i32
    %c0_i32_0 = arith.constant 0 : i32
    %c0_i32_1 = arith.constant 0 : i32
    return %c0_i32, %c0_i32_0 : i32, i32
  }
  func.func @transform_8(%arg0: i32) -> (i32, i32) {
    %c0_i32 = arith.constant 0 : i32
    %c0_i32_0 = arith.constant 0 : i32
    return %arg0, %c0_i32 : i32, i32
  }
}

</mosaic_0001>

<llo_original>
// kernel: spatial_position_extractor.1
$region0: #{spatial_position_extractor.1}
  #allocation0 [shape = 'u32[]', space=smem, size = 0x4, offset = 0x4, fixed_abs, tag = 'smem constant byte address 0x4 - core index']
  #allocation1 [shape = 'u32[144,128]{1,0:T(1,128)}', space=vmem, size = 0x12000, scoped, tag = 'internal scratch']
  %s0 = inlined_call_operand.vmem [shape: f32[200,2], index: 0, kind: input, shape index: {}]
  %s1 = inlined_call_operand.vmem [shape: f32[200,1], index: 1, kind: input, shape index: {}]
  %s2 = inlined_call_operand.vmem [shape: f32[4,64], index: 2, kind: input, shape index: {}]
  %s3 = inlined_call_operand.vmem [shape: f32[1,64], index: 3, kind: input, shape index: {}]
  %s4 = inlined_call_operand.vmem [shape: f32[64,128], index: 4, kind: input, shape index: {}]
  %s5 = inlined_call_operand.vmem [shape: f32[1,128], index: 5, kind: input, shape index: {}]
  %s6 = inlined_call_operand.vmem [shape: f32[128,64], index: 6, kind: input, shape index: {}]
  %s7 = inlined_call_operand.vmem [shape: f32[1,64], index: 7, kind: input, shape index: {}]
  %s8 = inlined_call_operand.vmem [shape: f32[200,64], index: 8, kind: output, shape index: {}]
  %s9 = sld [smem:[#allocation0]]
  $region113: #{spatial_position_extractor.1} parent=0
    _
  %s11 = ssub.s32 1, %s9
  %s12 = scalar_select 0, %s11, %s9
  $region1: #{spatial_position_extractor.1} parent=0
    #allocation2 [shape = 'u8[65536]{0}', space=vmem, size = 0x10000, scoped, tag = 'output window, operand 0']
    loop: start=0, step=1, limit=6
    $region2: #{spatial_position_extractor.1} parent=1 // loop_pre_header
      _
    $region3: #{spatial_position_extractor.1} parent=1 // loop_header
      %s14 = sphi 0, %s18
      %p15 = scmp.ge.s32.totalorder %s14, 6
      %s24 = sphi 0, %s26
      %s27 = sphi 0, %s24
      %s28 = sphi 0, %s27
      %s44 = sphi 0, %s28
      %s50 = sphi 0, %s52
      %s53 = sphi 0, %s50
      %s54 = sphi 0, %s53
      %s70 = sphi 0, %s54
      %s74 = sphi 0, %s74
      %s76 = sphi 0, %s74
      %s77 = sphi 0, %s76
      %s91 = sphi 0, %s77
      %s95 = sphi 0, %s95
      %s97 = sphi 0, %s95
      %s98 = sphi 0, %s97
      %s112 = sphi 0, %s98
      %s116 = sphi 0, %s116
      %s118 = sphi 0, %s116
      %s119 = sphi 0, %s118
      %s133 = sphi 0, %s119
      %s137 = sphi 0, %s137
      %s139 = sphi 0, %s137
      %s140 = sphi 0, %s139
      %s154 = sphi 0, %s140
      %s158 = sphi 0, %s158
      %s160 = sphi 0, %s158
      %s161 = sphi 0, %s160
      %s175 = sphi 0, %s161
      %s179 = sphi 0, %s179
      %s181 = sphi 0, %s179
      %s182 = sphi 0, %s181
      %s196 = sphi 0, %s182
      %s202 = sphi 0, %s204
      %s205 = sphi 0, %s202
      %s206 = sphi 0, %s205
      %s222 = sphi 0, %s206
    $region4: #{spatial_position_extractor.1} parent=1 // loop_header_branch
      %17 = sbr.rel (%p15) target = $region8
    $region5: #{spatial_position_extractor.1} parent=1 // loop_body
      %s19 = ssub.s32 %s14, 1
      %s20 = ssub.s32 %s14, 2
      %s21 = sadd.s32 %s14, 1
      %s22 = ssub.s32 %s14, %s21
      %p23 = scmp.eq.s32.totalorder %s22, 0
      %s25 = sadd.s32 %s24, 1
      %s26 = scalar_select %p23, %s24, %s25
      %p29 = pneg %p23
      %p30 = scmp.eq.s32.totalorder %s14, 3
      %p31 = por %p29, %p30
      %p32 = scmp.ne.s32.totalorder %s24, %s27
      %p33 = scmp.eq.s32.totalorder %s14, 0
      %p34 = por %p32, %p33
      %p35 = scmp.ne.s32.totalorder %s24, %s27
      %p36 = scmp.eq.s32.totalorder %s19, 3
      %p37 = por %p35, %p36
      %p38 = scmp.ne.s32.totalorder %s27, %s28
      %p39 = scmp.eq.s32.totalorder %s19, 0
      %p40 = por %p38, %p39
      %p41 = scmp.ne.s32.totalorder %s27, %s28
      %p42 = scmp.eq.s32.totalorder %s20, 3
      %p43 = por %p41, %p42
      %p45 = scmp.ne.s32.totalorder %s28, %s44
      %p46 = scmp.eq.s32.totalorder %s20, 0
      %p47 = por %p45, %p46
      %s48 = ssub.s32 %s14, %s21
      %p49 = scmp.eq.s32.totalorder %s48, 0
      %s51 = sadd.s32 %s50, 1
      %s52 = scalar_select %p49, %s50, %s51
      %p55 = pneg %p49
      %p56 = scmp.eq.s32.totalorder %s14, 3
      %p57 = por %p55, %p56
      %p58 = scmp.ne.s32.totalorder %s50, %s53
      %p59 = scmp.eq.s32.totalorder %s14, 0
      %p60 = por %p58, %p59
      %p61 = scmp.ne.s32.totalorder %s50, %s53
      %p62 = scmp.eq.s32.totalorder %s19, 3
      %p63 = por %p61, %p62
      %p64 = scmp.ne.s32.totalorder %s53, %s54
      %p65 = scmp.eq.s32.totalorder %s19, 0
      %p66 = por %p64, %p65
      %p67 = scmp.ne.s32.totalorder %s53, %s54
      %p68 = scmp.eq.s32.totalorder %s20, 3
      %p69 = por %p67, %p68
      %p71 = scmp.ne.s32.totalorder %s54, %s70
      %p72 = scmp.eq.s32.totalorder %s20, 0
      %p73 = por %p71, %p72
      %s75 = sadd.s32 %s74, 1
      %p78 = scmp.eq.s32.totalorder %s14, 3
      %p79 = scmp.ne.s32.totalorder %s74, %s76
      %p80 = scmp.eq.s32.totalorder %s14, 0
      %p81 = por %p79, %p80
      %p82 = scmp.ne.s32.totalorder %s74, %s76
      %p83 = scmp.eq.s32.totalorder %s19, 3
      %p84 = por %p82, %p83
      %p85 = scmp.ne.s32.totalorder %s76, %s77
      %p86 = scmp.eq.s32.totalorder %s19, 0
      %p87 = por %p85, %p86
      %p88 = scmp.ne.s32.totalorder %s76, %s77
      %p89 = scmp.eq.s32.totalorder %s20, 3
      %p90 = por %p88, %p89
      %p92 = scmp.ne.s32.totalorder %s77, %s91
      %p93 = scmp.eq.s32.totalorder %s20, 0
      %p94 = por %p92, %p93
      %s96 = sadd.s32 %s95, 1
      %p99 = scmp.eq.s32.totalorder %s14, 3
      %p100 = scmp.ne.s32.totalorder %s95, %s97
      %p101 = scmp.eq.s32.totalorder %s14, 0
      %p102 = por %p100, %p101
      %p103 = scmp.ne.s32.totalorder %s95, %s97
      %p104 = scmp.eq.s32.totalorder %s19, 3
      %p105 = por %p103, %p104
      %p106 = scmp.ne.s32.totalorder %s97, %s98
      %p107 = scmp.eq.s32.totalorder %s19, 0
      %p108 = por %p106, %p107
      %p109 = scmp.ne.s32.totalorder %s97, %s98
      %p110 = scmp.eq.s32.totalorder %s20, 3
      %p111 = por %p109, %p110
      %p113 = scmp.ne.s32.totalorder %s98, %s112
      %p114 = scmp.eq.s32.totalorder %s20, 0
      %p115 = por %p113, %p114
      %s117 = sadd.s32 %s116, 1
      %p120 = scmp.eq.s32.totalorder %s14, 3
      %p121 = scmp.ne.s32.totalorder %s116, %s118
      %p122 = scmp.eq.s32.totalorder %s14, 0
      %p123 = por %p121, %p122
      %p124 = scmp.ne.s32.totalorder %s116, %s118
      %p125 = scmp.eq.s32.totalorder %s19, 3
      %p126 = por %p124, %p125
      %p127 = scmp.ne.s32.totalorder %s118, %s119
      %p128 = scmp.eq.s32.totalorder %s19, 0
      %p129 = por %p127, %p128
      %p130 = scmp.ne.s32.totalorder %s118, %s119
      %p131 = scmp.eq.s32.totalorder %s20, 3
      %p132 = por %p130, %p131
      %p134 = scmp.ne.s32.totalorder %s119, %s133
      %p135 = scmp.eq.s32.totalorder %s20, 0
      %p136 = por %p134, %p135
      %s138 = sadd.s32 %s137, 1
      %p141 = scmp.eq.s32.totalorder %s14, 3
      %p142 = scmp.ne.s32.totalorder %s137, %s139
      %p143 = scmp.eq.s32.totalorder %s14, 0
      %p144 = por %p142, %p143
      %p145 = scmp.ne.s32.totalorder %s137, %s139
      %p146 = scmp.eq.s32.totalorder %s19, 3
      %p147 = por %p145, %p146
      %p148 = scmp.ne.s32.totalorder %s139, %s140
      %p149 = scmp.eq.s32.totalorder %s19, 0
      %p150 = por %p148, %p149
      %p151 = scmp.ne.s32.totalorder %s139, %s140
      %p152 = scmp.eq.s32.totalorder %s20, 3
      %p153 = por %p151, %p152
      %p155 = scmp.ne.s32.totalorder %s140, %s154
      %p156 = scmp.eq.s32.totalorder %s20, 0
      %p157 = por %p155, %p156
      %s159 = sadd.s32 %s158, 1
      %p162 = scmp.eq.s32.totalorder %s14, 3
      %p163 = scmp.ne.s32.totalorder %s158, %s160
      %p164 = scmp.eq.s32.totalorder %s14, 0
      %p165 = por %p163, %p164
      %p166 = scmp.ne.s32.totalorder %s158, %s160
      %p167 = scmp.eq.s32.totalorder %s19, 3
      %p168 = por %p166, %p167
      %p169 = scmp.ne.s32.totalorder %s160, %s161
      %p170 = scmp.eq.s32.totalorder %s19, 0
      %p171 = por %p169, %p170
      %p172 = scmp.ne.s32.totalorder %s160, %s161
      %p173 = scmp.eq.s32.totalorder %s20, 3
      %p174 = por %p172, %p173
      %p176 = scmp.ne.s32.totalorder %s161, %s175
      %p177 = scmp.eq.s32.totalorder %s20, 0
      %p178 = por %p176, %p177
      %s180 = sadd.s32 %s179, 1
      %p183 = scmp.eq.s32.totalorder %s14, 3
      %p184 = scmp.ne.s32.totalorder %s179, %s181
      %p185 = scmp.eq.s32.totalorder %s14, 0
      %p186 = por %p184, %p185
      %p187 = scmp.ne.s32.totalorder %s179, %s181
      %p188 = scmp.eq.s32.totalorder %s19, 3
      %p189 = por %p187, %p188
      %p190 = scmp.ne.s32.totalorder %s181, %s182
      %p191 = scmp.eq.s32.totalorder %s19, 0
      %p192 = por %p190, %p191
      %p193 = scmp.ne.s32.totalorder %s181, %s182
      %p194 = scmp.eq.s32.totalorder %s20, 3
      %p195 = por %p193, %p194
      %p197 = scmp.ne.s32.totalorder %s182, %s196
      %p198 = scmp.eq.s32.totalorder %s20, 0
      %p199 = por %p197, %p198
      %s200 = ssub.s32 %s14, %s21
      %p201 = scmp.eq.s32.totalorder %s200, 0
      %s203 = sadd.s32 %s202, 1
      %s204 = scalar_select %p201, %s202, %s203
      %p207 = pneg %p201
      %p208 = scmp.eq.s32.totalorder %s14, 3
      %p209 = por %p207, %p208
      %p210 = scmp.ne.s32.totalorder %s202, %s205
      %p211 = scmp.eq.s32.totalorder %s14, 0
      %p212 = por %p210, %p211
      %p213 = scmp.ne.s32.totalorder %s202, %s205
      %p214 = scmp.eq.s32.totalorder %s19, 3
      %p215 = por %p213, %p214
      %p216 = scmp.ne.s32.totalorder %s205, %s206
      %p217 = scmp.eq.s32.totalorder %s19, 0
      %p218 = por %p216, %p217
      %p219 = scmp.ne.s32.totalorder %s205, %s206
      %p220 = scmp.eq.s32.totalorder %s20, 3
      %p221 = por %p219, %p220
      %p223 = scmp.ne.s32.totalorder %s206, %s222
      %p224 = scmp.eq.s32.totalorder %s20, 0
      %p225 = por %p223, %p224
      %p226 = scmp.le.s32.totalorder 1, %s14
      %p227 = scmp.lt.s32.totalorder %s14, 5
      %p228 = pnand %p226, %p227
      %p229 = pneg %p228
      // Predicated region
      $region9: #{spatial_position_extractor.1} parent=5 // pred_check
        _
      $region10: #{spatial_position_extractor.1} parent=5 // pred_check_branch
        %231 = sbr.rel (%p228) target = $region12
      $region11: #{spatial_position_extractor.1} parent=5 // pred_region
        %s232 = ssub.s32 %s14, 1
        // Predicated region
        $region13: #{spatial_position_extractor.1} parent=11 // pred_check
          %p233 = pneg %p87
        $region14: #{spatial_position_extractor.1} parent=11 // pred_check_branch
          %235 = sbr.rel (%p233) target = $region16
        $region15: #{spatial_position_extractor.1} parent=11 // pred_region
          _
        $region16: #{spatial_position_extractor.1} parent=11 // pred_fallthru
          _
        // Predicated region
        $region17: #{spatial_position_extractor.1} parent=11 // pred_check
          %p236 = pneg %p108
        $region18: #{spatial_position_extractor.1} parent=11 // pred_check_branch
          %238 = sbr.rel (%p236) target = $region20
        $region19: #{spatial_position_extractor.1} parent=11 // pred_region
          _
        $region20: #{spatial_position_extractor.1} parent=11 // pred_fallthru
          _
        // Predicated region
        $region21: #{spatial_position_extractor.1} parent=11 // pred_check
          %p239 = pneg %p129
        $region22: #{spatial_position_extractor.1} parent=11 // pred_check_branch
          %241 = sbr.rel (%p239) target = $region24
        $region23: #{spatial_position_extractor.1} parent=11 // pred_region
          _
        $region24: #{spatial_position_extractor.1} parent=11 // pred_fallthru
          _
        // Predicated region
        $region25: #{spatial_position_extractor.1} parent=11 // pred_check
          %p242 = pneg %p150
        $region26: #{spatial_position_extractor.1} parent=11 // pred_check_branch
          %244 = sbr.rel (%p242) target = $region28
        $region27: #{spatial_position_extractor.1} parent=11 // pred_region
          _
        $region28: #{spatial_position_extractor.1} parent=11 // pred_fallthru
          _
        // Predicated region
        $region29: #{spatial_position_extractor.1} parent=11 // pred_check
          %p245 = pneg %p171
        $region30: #{spatial_position_extractor.1} parent=11 // pred_check_branch
          %247 = sbr.rel (%p245) target = $region32
        $region31: #{spatial_position_extractor.1} parent=11 // pred_region
          _
        $region32: #{spatial_position_extractor.1} parent=11 // pred_fallthru
          _
        // Predicated region
        $region33: #{spatial_position_extractor.1} parent=11 // pred_check
          %p248 = pneg %p192
        $region34: #{spatial_position_extractor.1} parent=11 // pred_check_branch
          %250 = sbr.rel (%p248) target = $region36
        $region35: #{spatial_position_extractor.1} parent=11 // pred_region
          _
        $region36: #{spatial_position_extractor.1} parent=11 // pred_fallthru
          _
      $region12: #{spatial_position_extractor.1} parent=5 // pred_fallthru
        _
      %p251 = scmp.lt.s32.totalorder %s14, 4
      // Predicated region
      $region37: #{spatial_position_extractor.1} parent=5 // pred_check
        %p252 = pneg %p251
      $region38: #{spatial_position_extractor.1} parent=5 // pred_check_branch
        %254 = sbr.rel (%p252) target = $region40
      $region39: #{spatial_position_extractor.1} parent=5 // pred_region
        // Predicated region
        $region41: #{spatial_position_extractor.1} parent=39 // pred_check
          %p255 = pneg %p34
        $region42: #{spatial_position_extractor.1} parent=39 // pred_check_branch
          %257 = sbr.rel (%p255) target = $region44
        $region43: #{spatial_position_extractor.1} parent=39 // pred_region
          %s258 = smul.u32 8, %s14
          %s259 = ssub.s32 25, %s258
          %p260 = scmp.lt.s32.totalorder %s259, 8
          %s261 = scalar_select %p260, %s259, 8
          %s262 = smul.u32 128, %s261
          %p263 = scmp.lt.s32.totalorder %s258, 24
          %s264 = scalar_select %p263, %s258, 24
          %s265 = smul.addr %s264, 8
          %s266 = scalar_lea.vmem %s0, %s265
          %s267 = smul.u32 8, %s14
          %s268 = ssub.s32 25, %s267
          %p269 = scmp.lt.s32.totalorder %s268, 8
          %s270 = scalar_select %p269, %s268, 8
          %s271 = smul.u32 128, %s270
        $region44: #{spatial_position_extractor.1} parent=39 // pred_fallthru
          _
        // Predicated region
        $region45: #{spatial_position_extractor.1} parent=39 // pred_check
          %p272 = pneg %p60
        $region46: #{spatial_position_extractor.1} parent=39 // pred_check_branch
          %274 = sbr.rel (%p272) target = $region48
        $region47: #{spatial_position_extractor.1} parent=39 // pred_region
          %s275 = smul.u32 8, %s14
          %s276 = ssub.s32 25, %s275
          %p277 = scmp.lt.s32.totalorder %s276, 8
          %s278 = scalar_select %p277, %s276, 8
          %s279 = smul.u32 128, %s278
          %p280 = scmp.lt.s32.totalorder %s275, 24
          %s281 = scalar_select %p280, %s275, 24
          %s282 = smul.addr %s281, 8
          %s283 = scalar_lea.vmem %s1, %s282
          %s284 = smul.u32 8, %s14
          %s285 = ssub.s32 25, %s284
          %p286 = scmp.lt.s32.totalorder %s285, 8
          %s287 = scalar_select %p286, %s285, 8
          %s288 = smul.u32 128, %s287
        $region48: #{spatial_position_extractor.1} parent=39 // pred_fallthru
          _
      $region40: #{spatial_position_extractor.1} parent=5 // pred_fallthru
        _
      %p289 = scmp.le.s32.totalorder 1, %s14
      %p290 = scmp.lt.s32.totalorder %s14, 5
      %p291 = pnand %p289, %p290
      %p292 = pneg %p291
      // Predicated region
      $region49: #{spatial_position_extractor.1} parent=5 // pred_check
        _
      $region50: #{spatial_position_extractor.1} parent=5 // pred_check_branch
        %294 = sbr.rel (%p291) target = $region52
      $region51: #{spatial_position_extractor.1} parent=5 // pred_region
        %s295 = ssub.s32 %s14, 1
        %s296 = smul.u32 8, %s19
        %s297 = ssub.s32 25, %s296
        %p298 = scmp.lt.s32.totalorder %s297, 8
        %s299 = scalar_select %p298, %s297, 8
        %s300 = smul.u32 128, %s299
        %p301 = scmp.lt.s32.totalorder %s296, 24
        %s302 = scalar_select %p301, %s296, 24
        %s303 = smul.addr %s302, 8
        %s304 = scalar_lea.vmem %s0, %s303
        %p305 = pneg %p40
        %p306 = pneg %p37
        %s307 = smul.u32 8, %s19
        %s308 = ssub.s32 25, %s307
        %p309 = scmp.lt.s32.totalorder %s308, 8
        %s310 = scalar_select %p309, %s308, 8
        %s311 = smul.u32 128, %s310
        %p312 = scmp.lt.s32.totalorder %s307, 24
        %s313 = scalar_select %p312, %s307, 24
        %s314 = smul.addr %s313, 8
        %s315 = scalar_lea.vmem %s1, %s314
        %p316 = pneg %p66
        %p317 = pneg %p63
        %p318 = pneg %p87
        %p319 = pneg %p84
        %p320 = pneg %p108
        %p321 = pneg %p105
        %p322 = pneg %p129
        %p323 = pneg %p126
        %p324 = pneg %p150
        %p325 = pneg %p147
        %p326 = pneg %p171
        %p327 = pneg %p168
        %p328 = pneg %p192
        %p329 = pneg %p189
        %p330 = pneg %p218
        %p331 = pneg %p215
        %s332 = sand.u32 %s205, 1
        %s333 = sand.u32 %s205, 1
        %s334 = smul.addr %s333, 64
        %s335 = scalar_lea.vmem [#allocation2], %s334
        %s336 = smul.u32 8, %s19
        %s337 = ssub.s32 25, %s336
        %p338 = scmp.lt.s32.totalorder %s337, 8
        %s339 = scalar_select %p338, %s337, 8
        %s340 = smul.u32 128, %s339
        %p341 = scmp.lt.s32.totalorder %s336, 24
        %s342 = scalar_select %p341, %s336, 24
        %s343 = smul.addr %s342, 8
        %s344 = scalar_lea.vmem %s0, %s343
        %s345 = smul.u32 8, %s19
        %s346 = ssub.s32 25, %s345
        %p347 = scmp.lt.s32.totalorder %s346, 8
        %s348 = scalar_select %p347, %s346, 8
        %s349 = smul.u32 128, %s348
        %s350 = smul.u32 8, %s19
        %s351 = ssub.s32 25, %s350
        %p352 = scmp.lt.s32.totalorder %s351, 8
        %s353 = scalar_select %p352, %s351, 8
        %s354 = smul.u32 128, %s353
        %p355 = scmp.lt.s32.totalorder %s350, 24
        %s356 = scalar_select %p355, %s350, 24
        %s357 = smul.addr %s356, 8
        %s358 = scalar_lea.vmem %s1, %s357
        %s359 = smul.u32 8, %s19
        %s360 = ssub.s32 25, %s359
        %p361 = scmp.lt.s32.totalorder %s360, 8
        %s362 = scalar_select %p361, %s360, 8
        %s363 = smul.u32 128, %s362
        %s364 = smul.u32 8, %s19
        %s365 = ssub.s32 25, %s364
        %p366 = scmp.lt.s32.totalorder %s365, 8
        %s367 = scalar_select %p366, %s365, 8
        %s368 = smul.u32 128, %s367
        %v369 = vld [vmem:[%s344] sm:$0xff]
        %v370 = vld [vmem:[%s344 + $0x8] sm:$0xff]
        %v371 = vld [vmem:[%s344 + $0x10] sm:$0xff]
        %v372 = vld [vmem:[%s344 + $0x18] sm:$0xff]
        %v373 = vld [vmem:[%s344 + $0x20] sm:$0xff]
        %v374 = vld [vmem:[%s344 + $0x28] sm:$0xff]
        %v375 = vld [vmem:[%s344 + $0x30] sm:$0xff]
        %v376 = vld [vmem:[%s344 + $0x38] sm:$0xff]
        %v377 = vld [vmem:[%s2] sm:$0xf]
        %v378 = vld [vmem:[%s358] sm:$0xff]
        %v379 = vld [vmem:[%s358 + $0x8] sm:$0xff]
        %v380 = vld [vmem:[%s358 + $0x10] sm:$0xff]
        %v381 = vld [vmem:[%s358 + $0x18] sm:$0xff]
        %v382 = vld [vmem:[%s358 + $0x20] sm:$0xff]
        %v383 = vld [vmem:[%s358 + $0x28] sm:$0xff]
        %v384 = vld [vmem:[%s358 + $0x30] sm:$0xff]
        %v385 = vld [vmem:[%s358 + $0x38] sm:$0xff]
        %v386 = vmul.f32 %v378, 0.017453292
        %v387 = vmul.f32 %v379, 0.017453292
        %v388 = vmul.f32 %v380, 0.017453292
        %v389 = vmul.f32 %v381, 0.017453292
        %v390 = vmul.f32 %v382, 0.017453292
        %v391 = vmul.f32 %v383, 0.017453292
        %v392 = vmul.f32 %v384, 0.017453292
        %v393 = vmul.f32 %v385, 0.017453292
        %v394 = vand.u32 2147483647, %v386
        %vm395 = vcmp.le.f32.partialorder %v394, 0.7853982
        %vm396 = vcmp.lt.s32.totalorder %v386, 0
        %v397 = vand.u32 %v386, 2139095040
        %v398 = vshrl.u32 %v397, 23
        %v399 = vsub.s32 %v398, 127
        %v400 = vand.u32 2147483647, %v386
        %v401 = vand.u32 %v400, 8388607
        %v402 = vor.u32 %v401, 8388608
        %v403 = vsub.s32 0, %v402
        %v404 = vadd.s32 %v399, 1
        %vm405 = vcmp.gt.s32.totalorder %v404, 0
        %v406 = vsel %vm405, %v404, 0
        %v407 = vshrl.u32 %v406, 5
        %v408 = vand.u32 %v406, 31
        %v409 = vsub.s32 32, %v408
        %v410 = vshrl.u32 683565275, %v409
        %v411 = vshll.u32 683565275, %v408
        %v412 = vshrl.u32 2475754826, %v409
        %v413 = vor.u32 %v411, %v412
        %v414 = vshll.u32 2475754826, %v408
        %v415 = vshrl.u32 2131351028, %v409
        %v416 = vor.u32 %v414, %v415
        %v417 = vshll.u32 2131351028, %v408
        %v418 = vshrl.u32 2102212464, %v409
        %v419 = vor.u32 %v417, %v418
        %v420 = vshll.u32 2102212464, %v408
        %v421 = vshrl.u32 920167782, %v409
        %v422 = vor.u32 %v420, %v421
        %v423 = vshll.u32 920167782, %v408
        %v424 = vshrl.u32 1326507024, %v409
        %v425 = vor.u32 %v423, %v424
        %vm426 = vcmp.lt.s32.totalorder %v407, 1
        %vm427 = vcmp.lt.s32.totalorder %v407, 2
        %vm428 = vcmp.lt.s32.totalorder %v407, 3
        %vm429 = vcmp.lt.s32.totalorder %v407, 4
        %v430 = vsel %vm426, %v410, %v413
        %v431 = vsel %vm429, %v419, 2102212464
        %v432 = vsel %vm428, %v416, %v431
        %v433 = vsel %vm427, %v430, %v432
        %v434 = vsel %vm426, %v413, %v416
        %v435 = vsel %vm429, %v422, 920167782
        %v436 = vsel %vm428, %v419, %v435
        %v437 = vsel %vm427, %v434, %v436
        %v438 = vsel %vm426, %v416, %v419
        %v439 = vsel %vm429, %v425, 1326507024
        %v440 = vsel %vm428, %v422, %v439
        %v441 = vsel %vm427, %v438, %v440
        %v442 = vshll.u32 %v402, 8
        %v443 = vmul.u32.u64.compose %v442, %v441
        %v444 = vextract.low.u32 %v443
        %v445 = vextract.high.u32 %v443
        %v446 = vmul.u32.u64.compose %v442, %v437
        %v447 = vextract.low.u32 %v446
        %v448 = vextract.high.u32 %v446
        %v449 = vmul.u32 %v442, %v433
        %v450 = vadd.s32 %v445, %v447
        %vm451 = vc.u32 %v445, %v447
        %v452 = vadd.s32 %v448, 1
        %v453 = vsel %vm451, %v452, %v448
        %v454 = vadd.s32 %v449, %v453
        %v455 = vadd.s32 %v454, 536870912
        %v456 = vshrl.u32 %v455, 30
        %v457 = vshll.u32 %v456, 30
        %v458 = vsub.s32 %v454, %v457
        %vm459 = vcmp.lt.s32.totalorder %v458, 0
        %v460 = vsub.s32 0, %v458
        %v461 = vsel %vm459, %v460, %v458
        %v462 = vclz %v461
        %v463 = vsub.s32 %v462, 2
        %vm464 = vcmp.gt.s32.totalorder 0, %v463
        %v465 = vsel %vm464, 0, %v463
        %v466 = vsub.s32 32, %v465
        %v467 = vshll.u32 %v458, %v465
        %v468 = vshrl.u32 %v450, %v466
        %v469 = vor.u32 %v467, %v468
        %v470 = vsub.s32 4294967266, %v465
        %v471 = vadd.s32 %v470, 127
        %v472 = vshll.u32 %v471, 23
        %v473 = vor.u32 4788187, %v472
        %v474 = vand.u32 2147483647, %v473
        %v476 = vcvt.s32.f32 %v469
        %v477 = vmul.f32 %v476, %v474
        %v478 = vxor.u32 %v477, 2147483648
        %v479 = vsel %vm396, %v478, %v477
        %v480 = vsub.s32 4, %v456
        %v481 = vsel %vm396, %v480, %v456
        %v482 = vsel %vm395, %v386, %v479
        %v483 = vsel %vm395, 0, %v481
        %v484 = vcosq.f32.pop %v482
        %v485 = vsinq.f32.pop %v482
        %vm486 = vweird.f32 %v386
        %v487 = vadd.s32 %v483, 3
        %v488 = vand.u32 %v487, 3
        %vm489 = vcmp.lt.s32.totalorder %v488, 2
        %vm490 = vcmp.eq.s32.totalorder %v488, 0
        %v491 = vxor.u32 %v485, 2147483648
        %v492 = vsel %vm490, %v484, %v491
        %vm493 = vcmp.eq.s32.totalorder %v488, 2
        %v494 = vxor.u32 %v484, 2147483648
        %v495 = vsel %vm493, %v494, %v485
        %v496 = vsel %vm489, %v492, %v495
        %v497 = vsel %vm486, nan, %v496
        %v498 = vand.u32 2147483647, %v387
        %vm499 = vcmp.le.f32.partialorder %v498, 0.7853982
        %vm500 = vcmp.lt.s32.totalorder %v387, 0
        %v501 = vand.u32 %v387, 2139095040
        %v502 = vshrl.u32 %v501, 23
        %v503 = vsub.s32 %v502, 127
        %v504 = vand.u32 2147483647, %v387
        %v505 = vand.u32 %v504, 8388607
        %v506 = vor.u32 %v505, 8388608
        %v507 = vsub.s32 0, %v506
        %v508 = vadd.s32 %v503, 1
        %vm509 = vcmp.gt.s32.totalorder %v508, 0
        %v510 = vsel %vm509, %v508, 0
        %v511 = vshrl.u32 %v510, 5
        %v512 = vand.u32 %v510, 31
        %v513 = vsub.s32 32, %v512
        %v514 = vshrl.u32 683565275, %v513
        %v515 = vshll.u32 683565275, %v512
        %v516 = vshrl.u32 2475754826, %v513
        %v517 = vor.u32 %v515, %v516
        %v518 = vshll.u32 2475754826, %v512
        %v519 = vshrl.u32 2131351028, %v513
        %v520 = vor.u32 %v518, %v519
        %v521 = vshll.u32 2131351028, %v512
        %v522 = vshrl.u32 2102212464, %v513
        %v523 = vor.u32 %v521, %v522
        %v524 = vshll.u32 2102212464, %v512
        %v525 = vshrl.u32 920167782, %v513
        %v526 = vor.u32 %v524, %v525
        %v527 = vshll.u32 920167782, %v512
        %v528 = vshrl.u32 1326507024, %v513
        %v529 = vor.u32 %v527, %v528
        %vm530 = vcmp.lt.s32.totalorder %v511, 1
        %vm531 = vcmp.lt.s32.totalorder %v511, 2
        %vm532 = vcmp.lt.s32.totalorder %v511, 3
        %vm533 = vcmp.lt.s32.totalorder %v511, 4
        %v534 = vsel %vm530, %v514, %v517
        %v535 = vsel %vm533, %v523, 2102212464
        %v536 = vsel %vm532, %v520, %v535
        %v537 = vsel %vm531, %v534, %v536
        %v538 = vsel %vm530, %v517, %v520
        %v539 = vsel %vm533, %v526, 920167782
        %v540 = vsel %vm532, %v523, %v539
        %v541 = vsel %vm531, %v538, %v540
        %v542 = vsel %vm530, %v520, %v523
        %v543 = vsel %vm533, %v529, 1326507024
        %v544 = vsel %vm532, %v526, %v543
        %v545 = vsel %vm531, %v542, %v544
        %v546 = vshll.u32 %v506, 8
        %v547 = vmul.u32.u64.compose %v546, %v545
        %v548 = vextract.low.u32 %v547
        %v549 = vextract.high.u32 %v547
        %v550 = vmul.u32.u64.compose %v546, %v541
        %v551 = vextract.low.u32 %v550
        %v552 = vextract.high.u32 %v550
        %v553 = vmul.u32 %v546, %v537
        %v554 = vadd.s32 %v549, %v551
        %vm555 = vc.u32 %v549, %v551
        %v556 = vadd.s32 %v552, 1
        %v557 = vsel %vm555, %v556, %v552
        %v558 = vadd.s32 %v553, %v557
        %v559 = vadd.s32 %v558, 536870912
        %v560 = vshrl.u32 %v559, 30
        %v561 = vshll.u32 %v560, 30
        %v562 = vsub.s32 %v558, %v561
        %vm563 = vcmp.lt.s32.totalorder %v562, 0
        %v564 = vsub.s32 0, %v562
        %v565 = vsel %vm563, %v564, %v562
        %v566 = vclz %v565
        %v567 = vsub.s32 %v566, 2
        %vm568 = vcmp.gt.s32.totalorder 0, %v567
        %v569 = vsel %vm568, 0, %v567
        %v570 = vsub.s32 32, %v569
        %v571 = vshll.u32 %v562, %v569
        %v572 = vshrl.u32 %v554, %v570
        %v573 = vor.u32 %v571, %v572
        %v574 = vsub.s32 4294967266, %v569
        %v575 = vadd.s32 %v574, 127
        %v576 = vshll.u32 %v575, 23
        %v577 = vor.u32 4788187, %v576
        %v578 = vand.u32 2147483647, %v577
        %v580 = vcvt.s32.f32 %v573
        %v581 = vmul.f32 %v580, %v578
        %v582 = vxor.u32 %v581, 2147483648
        %v583 = vsel %vm500, %v582, %v581
        %v584 = vsub.s32 4, %v560
        %v585 = vsel %vm500, %v584, %v560
        %v586 = vsel %vm499, %v387, %v583
        %v587 = vsel %vm499, 0, %v585
        %v588 = vcosq.f32.pop %v586
        %v589 = vsinq.f32.pop %v586
        %vm590 = vweird.f32 %v387
        %v591 = vadd.s32 %v587, 3
        %v592 = vand.u32 %v591, 3
        %vm593 = vcmp.lt.s32.totalorder %v592, 2
        %vm594 = vcmp.eq.s32.totalorder %v592, 0
        %v595 = vxor.u32 %v589, 2147483648
        %v596 = vsel %vm594, %v588, %v595
        %vm597 = vcmp.eq.s32.totalorder %v592, 2
        %v598 = vxor.u32 %v588, 2147483648
        %v599 = vsel %vm597, %v598, %v589
        %v600 = vsel %vm593, %v596, %v599
        %v601 = vsel %vm590, nan, %v600
        %v602 = vand.u32 2147483647, %v388
        %vm603 = vcmp.le.f32.partialorder %v602, 0.7853982
        %vm604 = vcmp.lt.s32.totalorder %v388, 0
        %v605 = vand.u32 %v388, 2139095040
        %v606 = vshrl.u32 %v605, 23
        %v607 = vsub.s32 %v606, 127
        %v608 = vand.u32 2147483647, %v388
        %v609 = vand.u32 %v608, 8388607
        %v610 = vor.u32 %v609, 8388608
        %v611 = vsub.s32 0, %v610
        %v612 = vadd.s32 %v607, 1
        %vm613 = vcmp.gt.s32.totalorder %v612, 0
        %v614 = vsel %vm613, %v612, 0
        %v615 = vshrl.u32 %v614, 5
        %v616 = vand.u32 %v614, 31
        %v617 = vsub.s32 32, %v616
        %v618 = vshrl.u32 683565275, %v617
        %v619 = vshll.u32 683565275, %v616
        %v620 = vshrl.u32 2475754826, %v617
        %v621 = vor.u32 %v619, %v620
        %v622 = vshll.u32 2475754826, %v616
        %v623 = vshrl.u32 2131351028, %v617
        %v624 = vor.u32 %v622, %v623
        %v625 = vshll.u32 2131351028, %v616
        %v626 = vshrl.u32 2102212464, %v617
        %v627 = vor.u32 %v625, %v626
        %v628 = vshll.u32 2102212464, %v616
        %v629 = vshrl.u32 920167782, %v617
        %v630 = vor.u32 %v628, %v629
        %v631 = vshll.u32 920167782, %v616
        %v632 = vshrl.u32 1326507024, %v617
        %v633 = vor.u32 %v631, %v632
        %vm634 = vcmp.lt.s32.totalorder %v615, 1
        %vm635 = vcmp.lt.s32.totalorder %v615, 2
        %vm636 = vcmp.lt.s32.totalorder %v615, 3
        %vm637 = vcmp.lt.s32.totalorder %v615, 4
        %v638 = vsel %vm634, %v618, %v621
        %v639 = vsel %vm637, %v627, 2102212464
        %v640 = vsel %vm636, %v624, %v639
        %v641 = vsel %vm635, %v638, %v640
        %v642 = vsel %vm634, %v621, %v624
        %v643 = vsel %vm637, %v630, 920167782
        %v644 = vsel %vm636, %v627, %v643
        %v645 = vsel %vm635, %v642, %v644
        %v646 = vsel %vm634, %v624, %v627
        %v647 = vsel %vm637, %v633, 1326507024
        %v648 = vsel %vm636, %v630, %v647
        %v649 = vsel %vm635, %v646, %v648
        %v650 = vshll.u32 %v610, 8
        %v651 = vmul.u32.u64.compose %v650, %v649
        %v652 = vextract.low.u32 %v651
        %v653 = vextract.high.u32 %v651
        %v654 = vmul.u32.u64.compose %v650, %v645
        %v655 = vextract.low.u32 %v654
        %v656 = vextract.high.u32 %v654
        %v657 = vmul.u32 %v650, %v641
        %v658 = vadd.s32 %v653, %v655
        %vm659 = vc.u32 %v653, %v655
        %v660 = vadd.s32 %v656, 1
        %v661 = vsel %vm659, %v660, %v656
        %v662 = vadd.s32 %v657, %v661
        %v663 = vadd.s32 %v662, 536870912
        %v664 = vshrl.u32 %v663, 30
        %v665 = vshll.u32 %v664, 30
        %v666 = vsub.s32 %v662, %v665
        %vm667 = vcmp.lt.s32.totalorder %v666, 0
        %v668 = vsub.s32 0, %v666
        %v669 = vsel %vm667, %v668, %v666
        %v670 = vclz %v669
        %v671 = vsub.s32 %v670, 2
        %vm672 = vcmp.gt.s32.totalorder 0, %v671
        %v673 = vsel %vm672, 0, %v671
        %v674 = vsub.s32 32, %v673
        %v675 = vshll.u32 %v666, %v673
        %v676 = vshrl.u32 %v658, %v674
        %v677 = vor.u32 %v675, %v676
        %v678 = vsub.s32 4294967266, %v673
        %v679 = vadd.s32 %v678, 127
        %v680 = vshll.u32 %v679, 23
        %v681 = vor.u32 4788187, %v680
        %v682 = vand.u32 2147483647, %v681
        %v684 = vcvt.s32.f32 %v677
        %v685 = vmul.f32 %v684, %v682
        %v686 = vxor.u32 %v685, 2147483648
        %v687 = vsel %vm604, %v686, %v685
        %v688 = vsub.s32 4, %v664
        %v689 = vsel %vm604, %v688, %v664
        %v690 = vsel %vm603, %v388, %v687
        %v691 = vsel %vm603, 0, %v689
        %v692 = vcosq.f32.pop %v690
        %v693 = vsinq.f32.pop %v690
        %vm694 = vweird.f32 %v388
        %v695 = vadd.s32 %v691, 3
        %v696 = vand.u32 %v695, 3
        %vm697 = vcmp.lt.s32.totalorder %v696, 2
        %vm698 = vcmp.eq.s32.totalorder %v696, 0
        %v699 = vxor.u32 %v693, 2147483648
        %v700 = vsel %vm698, %v692, %v699
        %vm701 = vcmp.eq.s32.totalorder %v696, 2
        %v702 = vxor.u32 %v692, 2147483648
        %v703 = vsel %vm701, %v702, %v693
        %v704 = vsel %vm697, %v700, %v703
        %v705 = vsel %vm694, nan, %v704
        %v706 = vand.u32 2147483647, %v389
        %vm707 = vcmp.le.f32.partialorder %v706, 0.7853982
        %vm708 = vcmp.lt.s32.totalorder %v389, 0
        %v709 = vand.u32 %v389, 2139095040
        %v710 = vshrl.u32 %v709, 23
        %v711 = vsub.s32 %v710, 127
        %v712 = vand.u32 2147483647, %v389
        %v713 = vand.u32 %v712, 8388607
        %v714 = vor.u32 %v713, 8388608
        %v715 = vsub.s32 0, %v714
        %v716 = vadd.s32 %v711, 1
        %vm717 = vcmp.gt.s32.totalorder %v716, 0
        %v718 = vsel %vm717, %v716, 0
        %v719 = vshrl.u32 %v718, 5
        %v720 = vand.u32 %v718, 31
        %v721 = vsub.s32 32, %v720
        %v722 = vshrl.u32 683565275, %v721
        %v723 = vshll.u32 683565275, %v720
        %v724 = vshrl.u32 2475754826, %v721
        %v725 = vor.u32 %v723, %v724
        %v726 = vshll.u32 2475754826, %v720
        %v727 = vshrl.u32 2131351028, %v721
        %v728 = vor.u32 %v726, %v727
        %v729 = vshll.u32 2131351028, %v720
        %v730 = vshrl.u32 2102212464, %v721
        %v731 = vor.u32 %v729, %v730
        %v732 = vshll.u32 2102212464, %v720
        %v733 = vshrl.u32 920167782, %v721
        %v734 = vor.u32 %v732, %v733
        %v735 = vshll.u32 920167782, %v720
        %v736 = vshrl.u32 1326507024, %v721
        %v737 = vor.u32 %v735, %v736
        %vm738 = vcmp.lt.s32.totalorder %v719, 1
        %vm739 = vcmp.lt.s32.totalorder %v719, 2
        %vm740 = vcmp.lt.s32.totalorder %v719, 3
        %vm741 = vcmp.lt.s32.totalorder %v719, 4
        %v742 = vsel %vm738, %v722, %v725
        %v743 = vsel %vm741, %v731, 2102212464
        %v744 = vsel %vm740, %v728, %v743
        %v745 = vsel %vm739, %v742, %v744
        %v746 = vsel %vm738, %v725, %v728
        %v747 = vsel %vm741, %v734, 920167782
        %v748 = vsel %vm740, %v731, %v747
        %v749 = vsel %vm739, %v746, %v748
        %v750 = vsel %vm738, %v728, %v731
        %v751 = vsel %vm741, %v737, 1326507024
        %v752 = vsel %vm740, %v734, %v751
        %v753 = vsel %vm739, %v750, %v752
        %v754 = vshll.u32 %v714, 8
        %v755 = vmul.u32.u64.compose %v754, %v753
        %v756 = vextract.low.u32 %v755
        %v757 = vextract.high.u32 %v755
        %v758 = vmul.u32.u64.compose %v754, %v749
        %v759 = vextract.low.u32 %v758
        %v760 = vextract.high.u32 %v758
        %v761 = vmul.u32 %v754, %v745
        %v762 = vadd.s32 %v757, %v759
        %vm763 = vc.u32 %v757, %v759
        %v764 = vadd.s32 %v760, 1
        %v765 = vsel %vm763, %v764, %v760
        %v766 = vadd.s32 %v761, %v765
        %v767 = vadd.s32 %v766, 536870912
        %v768 = vshrl.u32 %v767, 30
        %v769 = vshll.u32 %v768, 30
        %v770 = vsub.s32 %v766, %v769
        %vm771 = vcmp.lt.s32.totalorder %v770, 0
        %v772 = vsub.s32 0, %v770
        %v773 = vsel %vm771, %v772, %v770
        %v774 = vclz %v773
        %v775 = vsub.s32 %v774, 2
        %vm776 = vcmp.gt.s32.totalorder 0, %v775
        %v777 = vsel %vm776, 0, %v775
        %v778 = vsub.s32 32, %v777
        %v779 = vshll.u32 %v770, %v777
        %v780 = vshrl.u32 %v762, %v778
        %v781 = vor.u32 %v779, %v780
        %v782 = vsub.s32 4294967266, %v777
        %v783 = vadd.s32 %v782, 127
        %v784 = vshll.u32 %v783, 23
        %v785 = vor.u32 4788187, %v784
        %v786 = vand.u32 2147483647, %v785
        %v788 = vcvt.s32.f32 %v781
        %v789 = vmul.f32 %v788, %v786
        %v790 = vxor.u32 %v789, 2147483648
        %v791 = vsel %vm708, %v790, %v789
        %v792 = vsub.s32 4, %v768
        %v793 = vsel %vm708, %v792, %v768
        %v794 = vsel %vm707, %v389, %v791
        %v795 = vsel %vm707, 0, %v793
        %v796 = vcosq.f32.pop %v794
        %v797 = vsinq.f32.pop %v794
        %vm798 = vweird.f32 %v389
        %v799 = vadd.s32 %v795, 3
        %v800 = vand.u32 %v799, 3
        %vm801 = vcmp.lt.s32.totalorder %v800, 2
        %vm802 = vcmp.eq.s32.totalorder %v800, 0
        %v803 = vxor.u32 %v797, 2147483648
        %v804 = vsel %vm802, %v796, %v803
        %vm805 = vcmp.eq.s32.totalorder %v800, 2
        %v806 = vxor.u32 %v796, 2147483648
        %v807 = vsel %vm805, %v806, %v797
        %v808 = vsel %vm801, %v804, %v807
        %v809 = vsel %vm798, nan, %v808
        %v810 = vand.u32 2147483647, %v390
        %vm811 = vcmp.le.f32.partialorder %v810, 0.7853982
        %vm812 = vcmp.lt.s32.totalorder %v390, 0
        %v813 = vand.u32 %v390, 2139095040
        %v814 = vshrl.u32 %v813, 23
        %v815 = vsub.s32 %v814, 127
        %v816 = vand.u32 2147483647, %v390
        %v817 = vand.u32 %v816, 8388607
        %v818 = vor.u32 %v817, 8388608
        %v819 = vsub.s32 0, %v818
        %v820 = vadd.s32 %v815, 1
        %vm821 = vcmp.gt.s32.totalorder %v820, 0
        %v822 = vsel %vm821, %v820, 0
        %v823 = vshrl.u32 %v822, 5
        %v824 = vand.u32 %v822, 31
        %v825 = vsub.s32 32, %v824
        %v826 = vshrl.u32 683565275, %v825
        %v827 = vshll.u32 683565275, %v824
        %v828 = vshrl.u32 2475754826, %v825
        %v829 = vor.u32 %v827, %v828
        %v830 = vshll.u32 2475754826, %v824
        %v831 = vshrl.u32 2131351028, %v825
        %v832 = vor.u32 %v830, %v831
        %v833 = vshll.u32 2131351028, %v824
        %v834 = vshrl.u32 2102212464, %v825
        %v835 = vor.u32 %v833, %v834
        %v836 = vshll.u32 2102212464, %v824
        %v837 = vshrl.u32 920167782, %v825
        %v838 = vor.u32 %v836, %v837
        %v839 = vshll.u32 920167782, %v824
        %v840 = vshrl.u32 1326507024, %v825
        %v841 = vor.u32 %v839, %v840
        %vm842 = vcmp.lt.s32.totalorder %v823, 1
        %vm843 = vcmp.lt.s32.totalorder %v823, 2
        %vm844 = vcmp.lt.s32.totalorder %v823, 3
        %vm845 = vcmp.lt.s32.totalorder %v823, 4
        %v846 = vsel %vm842, %v826, %v829
        %v847 = vsel %vm845, %v835, 2102212464
        %v848 = vsel %vm844, %v832, %v847
        %v849 = vsel %vm843, %v846, %v848
        %v850 = vsel %vm842, %v829, %v832
        %v851 = vsel %vm845, %v838, 920167782
        %v852 = vsel %vm844, %v835, %v851
        %v853 = vsel %vm843, %v850, %v852
        %v854 = vsel %vm842, %v832, %v835
        %v855 = vsel %vm845, %v841, 1326507024
        %v856 = vsel %vm844, %v838, %v855
        %v857 = vsel %vm843, %v854, %v856
        %v858 = vshll.u32 %v818, 8
        %v859 = vmul.u32.u64.compose %v858, %v857
        %v860 = vextract.low.u32 %v859
        %v861 = vextract.high.u32 %v859
        %v862 = vmul.u32.u64.compose %v858, %v853
        %v863 = vextract.low.u32 %v862
        %v864 = vextract.high.u32 %v862
        %v865 = vmul.u32 %v858, %v849
        %v866 = vadd.s32 %v861, %v863
        %vm867 = vc.u32 %v861, %v863
        %v868 = vadd.s32 %v864, 1
        %v869 = vsel %vm867, %v868, %v864
        %v870 = vadd.s32 %v865, %v869
        %v871 = vadd.s32 %v870, 536870912
        %v872 = vshrl.u32 %v871, 30
        %v873 = vshll.u32 %v872, 30
        %v874 = vsub.s32 %v870, %v873
        %vm875 = vcmp.lt.s32.totalorder %v874, 0
        %v876 = vsub.s32 0, %v874
        %v877 = vsel %vm875, %v876, %v874
        %v878 = vclz %v877
        %v879 = vsub.s32 %v878, 2
        %vm880 = vcmp.gt.s32.totalorder 0, %v879
        %v881 = vsel %vm880, 0, %v879
        %v882 = vsub.s32 32, %v881
        %v883 = vshll.u32 %v874, %v881
        %v884 = vshrl.u32 %v866, %v882
        %v885 = vor.u32 %v883, %v884
        %v886 = vsub.s32 4294967266, %v881
        %v887 = vadd.s32 %v886, 127
        %v888 = vshll.u32 %v887, 23
        %v889 = vor.u32 4788187, %v888
        %v890 = vand.u32 2147483647, %v889
        %v892 = vcvt.s32.f32 %v885
        %v893 = vmul.f32 %v892, %v890
        %v894 = vxor.u32 %v893, 2147483648
        %v895 = vsel %vm812, %v894, %v893
        %v896 = vsub.s32 4, %v872
        %v897 = vsel %vm812, %v896, %v872
        %v898 = vsel %vm811, %v390, %v895
        %v899 = vsel %vm811, 0, %v897
        %v900 = vcosq.f32.pop %v898
        %v901 = vsinq.f32.pop %v898
        %vm902 = vweird.f32 %v390
        %v903 = vadd.s32 %v899, 3
        %v904 = vand.u32 %v903, 3
        %vm905 = vcmp.lt.s32.totalorder %v904, 2
        %vm906 = vcmp.eq.s32.totalorder %v904, 0
        %v907 = vxor.u32 %v901, 2147483648
        %v908 = vsel %vm906, %v900, %v907
        %vm909 = vcmp.eq.s32.totalorder %v904, 2
        %v910 = vxor.u32 %v900, 2147483648
        %v911 = vsel %vm909, %v910, %v901
        %v912 = vsel %vm905, %v908, %v911
        %v913 = vsel %vm902, nan, %v912
        %v914 = vand.u32 2147483647, %v391
        %vm915 = vcmp.le.f32.partialorder %v914, 0.7853982
        %vm916 = vcmp.lt.s32.totalorder %v391, 0
        %v917 = vand.u32 %v391, 2139095040
        %v918 = vshrl.u32 %v917, 23
        %v919 = vsub.s32 %v918, 127
        %v920 = vand.u32 2147483647, %v391
        %v921 = vand.u32 %v920, 8388607
        %v922 = vor.u32 %v921, 8388608
        %v923 = vsub.s32 0, %v922
        %v924 = vadd.s32 %v919, 1
        %vm925 = vcmp.gt.s32.totalorder %v924, 0
        %v926 = vsel %vm925, %v924, 0
        %v927 = vshrl.u32 %v926, 5
        %v928 = vand.u32 %v926, 31
        %v929 = vsub.s32 32, %v928
        %v930 = vshrl.u32 683565275, %v929
        %v931 = vshll.u32 683565275, %v928
        %v932 = vshrl.u32 2475754826, %v929
        %v933 = vor.u32 %v931, %v932
        %v934 = vshll.u32 2475754826, %v928
        %v935 = vshrl.u32 2131351028, %v929
        %v936 = vor.u32 %v934, %v935
        %v937 = vshll.u32 2131351028, %v928
        %v938 = vshrl.u32 2102212464, %v929
        %v939 = vor.u32 %v937, %v938
        %v940 = vshll.u32 2102212464, %v928
        %v941 = vshrl.u32 920167782, %v929
        %v942 = vor.u32 %v940, %v941
        %v943 = vshll.u32 920167782, %v928
        %v944 = vshrl.u32 1326507024, %v929
        %v945 = vor.u32 %v943, %v944
        %vm946 = vcmp.lt.s32.totalorder %v927, 1
        %vm947 = vcmp.lt.s32.totalorder %v927, 2
        %vm948 = vcmp.lt.s32.totalorder %v927, 3
        %vm949 = vcmp.lt.s32.totalorder %v927, 4
        %v950 = vsel %vm946, %v930, %v933
        %v951 = vsel %vm949, %v939, 2102212464
        %v952 = vsel %vm948, %v936, %v951
        %v953 = vsel %vm947, %v950, %v952
        %v954 = vsel %vm946, %v933, %v936
        %v955 = vsel %vm949, %v942, 920167782
        %v956 = vsel %vm948, %v939, %v955
        %v957 = vsel %vm947, %v954, %v956
        %v958 = vsel %vm946, %v936, %v939
        %v959 = vsel %vm949, %v945, 1326507024
        %v960 = vsel %vm948, %v942, %v959
        %v961 = vsel %vm947, %v958, %v960
        %v962 = vshll.u32 %v922, 8
        %v963 = vmul.u32.u64.compose %v962, %v961
        %v964 = vextract.low.u32 %v963
        %v965 = vextract.high.u32 %v963
        %v966 = vmul.u32.u64.compose %v962, %v957
        %v967 = vextract.low.u32 %v966
        %v968 = vextract.high.u32 %v966
        %v969 = vmul.u32 %v962, %v953
        %v970 = vadd.s32 %v965, %v967
        %vm971 = vc.u32 %v965, %v967
        %v972 = vadd.s32 %v968, 1
        %v973 = vsel %vm971, %v972, %v968
        %v974 = vadd.s32 %v969, %v973
        %v975 = vadd.s32 %v974, 536870912
        %v976 = vshrl.u32 %v975, 30
        %v977 = vshll.u32 %v976, 30
        %v978 = vsub.s32 %v974, %v977
        %vm979 = vcmp.lt.s32.totalorder %v978, 0
        %v980 = vsub.s32 0, %v978
        %v981 = vsel %vm979, %v980, %v978
        %v982 = vclz %v981
        %v983 = vsub.s32 %v982, 2
        %vm984 = vcmp.gt.s32.totalorder 0, %v983
        %v985 = vsel %vm984, 0, %v983
        %v986 = vsub.s32 32, %v985
        %v987 = vshll.u32 %v978, %v985
        %v988 = vshrl.u32 %v970, %v986
        %v989 = vor.u32 %v987, %v988
        %v990 = vsub.s32 4294967266, %v985
        %v991 = vadd.s32 %v990, 127
        %v992 = vshll.u32 %v991, 23
        %v993 = vor.u32 4788187, %v992
        %v994 = vand.u32 2147483647, %v993
        %v996 = vcvt.s32.f32 %v989
        %v997 = vmul.f32 %v996, %v994
        %v998 = vxor.u32 %v997, 2147483648
        %v999 = vsel %vm916, %v998, %v997
        %v1000 = vsub.s32 4, %v976
        %v1001 = vsel %vm916, %v1000, %v976
        %v1002 = vsel %vm915, %v391, %v999
        %v1003 = vsel %vm915, 0, %v1001
        %v1004 = vcosq.f32.pop %v1002
        %v1005 = vsinq.f32.pop %v1002
        %vm1006 = vweird.f32 %v391
        %v1007 = vadd.s32 %v1003, 3
        %v1008 = vand.u32 %v1007, 3
        %vm1009 = vcmp.lt.s32.totalorder %v1008, 2
        %vm1010 = vcmp.eq.s32.totalorder %v1008, 0
        %v1011 = vxor.u32 %v1005, 2147483648
        %v1012 = vsel %vm1010, %v1004, %v1011
        %vm1013 = vcmp.eq.s32.totalorder %v1008, 2
        %v1014 = vxor.u32 %v1004, 2147483648
        %v1015 = vsel %vm1013, %v1014, %v1005
        %v1016 = vsel %vm1009, %v1012, %v1015
        %v1017 = vsel %vm1006, nan, %v1016
        %v1018 = vand.u32 2147483647, %v392
        %vm1019 = vcmp.le.f32.partialorder %v1018, 0.7853982
        %vm1020 = vcmp.lt.s32.totalorder %v392, 0
        %v1021 = vand.u32 %v392, 2139095040
        %v1022 = vshrl.u32 %v1021, 23
        %v1023 = vsub.s32 %v1022, 127
        %v1024 = vand.u32 2147483647, %v392
        %v1025 = vand.u32 %v1024, 8388607
        %v1026 = vor.u32 %v1025, 8388608
        %v1027 = vsub.s32 0, %v1026
        %v1028 = vadd.s32 %v1023, 1
        %vm1029 = vcmp.gt.s32.totalorder %v1028, 0
        %v1030 = vsel %vm1029, %v1028, 0
        %v1031 = vshrl.u32 %v1030, 5
        %v1032 = vand.u32 %v1030, 31
        %v1033 = vsub.s32 32, %v1032
        %v1034 = vshrl.u32 683565275, %v1033
        %v1035 = vshll.u32 683565275, %v1032
        %v1036 = vshrl.u32 2475754826, %v1033
        %v1037 = vor.u32 %v1035, %v1036
        %v1038 = vshll.u32 2475754826, %v1032
        %v1039 = vshrl.u32 2131351028, %v1033
        %v1040 = vor.u32 %v1038, %v1039
        %v1041 = vshll.u32 2131351028, %v1032
        %v1042 = vshrl.u32 2102212464, %v1033
        %v1043 = vor.u32 %v1041, %v1042
        %v1044 = vshll.u32 2102212464, %v1032
        %v1045 = vshrl.u32 920167782, %v1033
        %v1046 = vor.u32 %v1044, %v1045
        %v1047 = vshll.u32 920167782, %v1032
        %v1048 = vshrl.u32 1326507024, %v1033
        %v1049 = vor.u32 %v1047, %v1048
        %vm1050 = vcmp.lt.s32.totalorder %v1031, 1
        %vm1051 = vcmp.lt.s32.totalorder %v1031, 2
        %vm1052 = vcmp.lt.s32.totalorder %v1031, 3
        %vm1053 = vcmp.lt.s32.totalorder %v1031, 4
        %v1054 = vsel %vm1050, %v1034, %v1037
        %v1055 = vsel %vm1053, %v1043, 2102212464
        %v1056 = vsel %vm1052, %v1040, %v1055
        %v1057 = vsel %vm1051, %v1054, %v1056
        %v1058 = vsel %vm1050, %v1037, %v1040
        %v1059 = vsel %vm1053, %v1046, 920167782
        %v1060 = vsel %vm1052, %v1043, %v1059
        %v1061 = vsel %vm1051, %v1058, %v1060
        %v1062 = vsel %vm1050, %v1040, %v1043
        %v1063 = vsel %vm1053, %v1049, 1326507024
        %v1064 = vsel %vm1052, %v1046, %v1063
        %v1065 = vsel %vm1051, %v1062, %v1064
        %v1066 = vshll.u32 %v1026, 8
        %v1067 = vmul.u32.u64.compose %v1066, %v1065
        %v1068 = vextract.low.u32 %v1067
        %v1069 = vextract.high.u32 %v1067
        %v1070 = vmul.u32.u64.compose %v1066, %v1061
        %v1071 = vextract.low.u32 %v1070
        %v1072 = vextract.high.u32 %v1070
        %v1073 = vmul.u32 %v1066, %v1057
        %v1074 = vadd.s32 %v1069, %v1071
        %vm1075 = vc.u32 %v1069, %v1071
        %v1076 = vadd.s32 %v1072, 1
        %v1077 = vsel %vm1075, %v1076, %v1072
        %v1078 = vadd.s32 %v1073, %v1077
        %v1079 = vadd.s32 %v1078, 536870912
        %v1080 = vshrl.u32 %v1079, 30
        %v1081 = vshll.u32 %v1080, 30
        %v1082 = vsub.s32 %v1078, %v1081
        %vm1083 = vcmp.lt.s32.totalorder %v1082, 0
        %v1084 = vsub.s32 0, %v1082
        %v1085 = vsel %vm1083, %v1084, %v1082
        %v1086 = vclz %v1085
        %v1087 = vsub.s32 %v1086, 2
        %vm1088 = vcmp.gt.s32.totalorder 0, %v1087
        %v1089 = vsel %vm1088, 0, %v1087
        %v1090 = vsub.s32 32, %v1089
        %v1091 = vshll.u32 %v1082, %v1089
        %v1092 = vshrl.u32 %v1074, %v1090
        %v1093 = vor.u32 %v1091, %v1092
        %v1094 = vsub.s32 4294967266, %v1089
        %v1095 = vadd.s32 %v1094, 127
        %v1096 = vshll.u32 %v1095, 23
        %v1097 = vor.u32 4788187, %v1096
        %v1098 = vand.u32 2147483647, %v1097
        %v1100 = vcvt.s32.f32 %v1093
        %v1101 = vmul.f32 %v1100, %v1098
        %v1102 = vxor.u32 %v1101, 2147483648
        %v1103 = vsel %vm1020, %v1102, %v1101
        %v1104 = vsub.s32 4, %v1080
        %v1105 = vsel %vm1020, %v1104, %v1080
        %v1106 = vsel %vm1019, %v392, %v1103
        %v1107 = vsel %vm1019, 0, %v1105
        %v1108 = vcosq.f32.pop %v1106
        %v1109 = vsinq.f32.pop %v1106
        %vm1110 = vweird.f32 %v392
        %v1111 = vadd.s32 %v1107, 3
        %v1112 = vand.u32 %v1111, 3
        %vm1113 = vcmp.lt.s32.totalorder %v1112, 2
        %vm1114 = vcmp.eq.s32.totalorder %v1112, 0
        %v1115 = vxor.u32 %v1109, 2147483648
        %v1116 = vsel %vm1114, %v1108, %v1115
        %vm1117 = vcmp.eq.s32.totalorder %v1112, 2
        %v1118 = vxor.u32 %v1108, 2147483648
        %v1119 = vsel %vm1117, %v1118, %v1109
        %v1120 = vsel %vm1113, %v1116, %v1119
        %v1121 = vsel %vm1110, nan, %v1120
        %v1122 = vand.u32 2147483647, %v393
        %vm1123 = vcmp.le.f32.partialorder %v1122, 0.7853982
        %vm1124 = vcmp.lt.s32.totalorder %v393, 0
        %v1125 = vand.u32 %v393, 2139095040
        %v1126 = vshrl.u32 %v1125, 23
        %v1127 = vsub.s32 %v1126, 127
        %v1128 = vand.u32 2147483647, %v393
        %v1129 = vand.u32 %v1128, 8388607
        %v1130 = vor.u32 %v1129, 8388608
        %v1131 = vsub.s32 0, %v1130
        %v1132 = vadd.s32 %v1127, 1
        %vm1133 = vcmp.gt.s32.totalorder %v1132, 0
        %v1134 = vsel %vm1133, %v1132, 0
        %v1135 = vshrl.u32 %v1134, 5
        %v1136 = vand.u32 %v1134, 31
        %v1137 = vsub.s32 32, %v1136
        %v1138 = vshrl.u32 683565275, %v1137
        %v1139 = vshll.u32 683565275, %v1136
        %v1140 = vshrl.u32 2475754826, %v1137
        %v1141 = vor.u32 %v1139, %v1140
        %v1142 = vshll.u32 2475754826, %v1136
        %v1143 = vshrl.u32 2131351028, %v1137
        %v1144 = vor.u32 %v1142, %v1143
        %v1145 = vshll.u32 2131351028, %v1136
        %v1146 = vshrl.u32 2102212464, %v1137
        %v1147 = vor.u32 %v1145, %v1146
        %v1148 = vshll.u32 2102212464, %v1136
        %v1149 = vshrl.u32 920167782, %v1137
        %v1150 = vor.u32 %v1148, %v1149
        %v1151 = vshll.u32 920167782, %v1136
        %v1152 = vshrl.u32 1326507024, %v1137
        %v1153 = vor.u32 %v1151, %v1152
        %vm1154 = vcmp.lt.s32.totalorder %v1135, 1
        %vm1155 = vcmp.lt.s32.totalorder %v1135, 2
        %vm1156 = vcmp.lt.s32.totalorder %v1135, 3
        %vm1157 = vcmp.lt.s32.totalorder %v1135, 4
        %v1158 = vsel %vm1154, %v1138, %v1141
        %v1159 = vsel %vm1157, %v1147, 2102212464
        %v1160 = vsel %vm1156, %v1144, %v1159
        %v1161 = vsel %vm1155, %v1158, %v1160
        %v1162 = vsel %vm1154, %v1141, %v1144
        %v1163 = vsel %vm1157, %v1150, 920167782
        %v1164 = vsel %vm1156, %v1147, %v1163
        %v1165 = vsel %vm1155, %v1162, %v1164
        %v1166 = vsel %vm1154, %v1144, %v1147
        %v1167 = vsel %vm1157, %v1153, 1326507024
        %v1168 = vsel %vm1156, %v1150, %v1167
        %v1169 = vsel %vm1155, %v1166, %v1168
        %v1170 = vshll.u32 %v1130, 8
        %v1171 = vmul.u32.u64.compose %v1170, %v1169
        %v1172 = vextract.low.u32 %v1171
        %v1173 = vextract.high.u32 %v1171
        %v1174 = vmul.u32.u64.compose %v1170, %v1165
        %v1175 = vextract.low.u32 %v1174
        %v1176 = vextract.high.u32 %v1174
        %v1177 = vmul.u32 %v1170, %v1161
        %v1178 = vadd.s32 %v1173, %v1175
        %vm1179 = vc.u32 %v1173, %v1175
        %v1180 = vadd.s32 %v1176, 1
        %v1181 = vsel %vm1179, %v1180, %v1176
        %v1182 = vadd.s32 %v1177, %v1181
        %v1183 = vadd.s32 %v1182, 536870912
        %v1184 = vshrl.u32 %v1183, 30
        %v1185 = vshll.u32 %v1184, 30
        %v1186 = vsub.s32 %v1182, %v1185
        %vm1187 = vcmp.lt.s32.totalorder %v1186, 0
        %v1188 = vsub.s32 0, %v1186
        %v1189 = vsel %vm1187, %v1188, %v1186
        %v1190 = vclz %v1189
        %v1191 = vsub.s32 %v1190, 2
        %vm1192 = vcmp.gt.s32.totalorder 0, %v1191
        %v1193 = vsel %vm1192, 0, %v1191
        %v1194 = vsub.s32 32, %v1193
        %v1195 = vshll.u32 %v1186, %v1193
        %v1196 = vshrl.u32 %v1178, %v1194
        %v1197 = vor.u32 %v1195, %v1196
        %v1198 = vsub.s32 4294967266, %v1193
        %v1199 = vadd.s32 %v1198, 127
        %v1200 = vshll.u32 %v1199, 23
        %v1201 = vor.u32 4788187, %v1200
        %v1202 = vand.u32 2147483647, %v1201
        %v1204 = vcvt.s32.f32 %v1197
        %v1205 = vmul.f32 %v1204, %v1202
        %v1206 = vxor.u32 %v1205, 2147483648
        %v1207 = vsel %vm1124, %v1206, %v1205
        %v1208 = vsub.s32 4, %v1184
        %v1209 = vsel %vm1124, %v1208, %v1184
        %v1210 = vsel %vm1123, %v393, %v1207
        %v1211 = vsel %vm1123, 0, %v1209
        %v1212 = vcosq.f32.pop %v1210
        %v1213 = vsinq.f32.pop %v1210
        %vm1214 = vweird.f32 %v393
        %v1215 = vadd.s32 %v1211, 3
        %v1216 = vand.u32 %v1215, 3
        %vm1217 = vcmp.lt.s32.totalorder %v1216, 2
        %vm1218 = vcmp.eq.s32.totalorder %v1216, 0
        %v1219 = vxor.u32 %v1213, 2147483648
        %v1220 = vsel %vm1218, %v1212, %v1219
        %vm1221 = vcmp.eq.s32.totalorder %v1216, 2
        %v1222 = vxor.u32 %v1212, 2147483648
        %v1223 = vsel %vm1221, %v1222, %v1213
        %v1224 = vsel %vm1217, %v1220, %v1223
        %v1225 = vsel %vm1214, nan, %v1224
        %v1226 = vand.u32 2147483647, %v386
        %vm1227 = vcmp.le.f32.partialorder %v1226, 0.7853982
        %vm1228 = vcmp.lt.s32.totalorder %v386, 0
        %v1229 = vand.u32 %v386, 2139095040
        %v1230 = vshrl.u32 %v1229, 23
        %v1231 = vsub.s32 %v1230, 127
        %v1232 = vand.u32 2147483647, %v386
        %v1233 = vand.u32 %v1232, 8388607
        %v1234 = vor.u32 %v1233, 8388608
        %v1235 = vsub.s32 0, %v1234
        %v1236 = vadd.s32 %v1231, 1
        %vm1237 = vcmp.gt.s32.totalorder %v1236, 0
        %v1238 = vsel %vm1237, %v1236, 0
        %v1239 = vshrl.u32 %v1238, 5
        %v1240 = vand.u32 %v1238, 31
        %v1241 = vsub.s32 32, %v1240
        %v1242 = vshrl.u32 683565275, %v1241
        %v1243 = vshll.u32 683565275, %v1240
        %v1244 = vshrl.u32 2475754826, %v1241
        %v1245 = vor.u32 %v1243, %v1244
        %v1246 = vshll.u32 2475754826, %v1240
        %v1247 = vshrl.u32 2131351028, %v1241
        %v1248 = vor.u32 %v1246, %v1247
        %v1249 = vshll.u32 2131351028, %v1240
        %v1250 = vshrl.u32 2102212464, %v1241
        %v1251 = vor.u32 %v1249, %v1250
        %v1252 = vshll.u32 2102212464, %v1240
        %v1253 = vshrl.u32 920167782, %v1241
        %v1254 = vor.u32 %v1252, %v1253
        %v1255 = vshll.u32 920167782, %v1240
        %v1256 = vshrl.u32 1326507024, %v1241
        %v1257 = vor.u32 %v1255, %v1256
        %vm1258 = vcmp.lt.s32.totalorder %v1239, 1
        %vm1259 = vcmp.lt.s32.totalorder %v1239, 2
        %vm1260 = vcmp.lt.s32.totalorder %v1239, 3
        %vm1261 = vcmp.lt.s32.totalorder %v1239, 4
        %v1262 = vsel %vm1258, %v1242, %v1245
        %v1263 = vsel %vm1261, %v1251, 2102212464
        %v1264 = vsel %vm1260, %v1248, %v1263
        %v1265 = vsel %vm1259, %v1262, %v1264
        %v1266 = vsel %vm1258, %v1245, %v1248
        %v1267 = vsel %vm1261, %v1254, 920167782
        %v1268 = vsel %vm1260, %v1251, %v1267
        %v1269 = vsel %vm1259, %v1266, %v1268
        %v1270 = vsel %vm1258, %v1248, %v1251
        %v1271 = vsel %vm1261, %v1257, 1326507024
        %v1272 = vsel %vm1260, %v1254, %v1271
        %v1273 = vsel %vm1259, %v1270, %v1272
        %v1274 = vshll.u32 %v1234, 8
        %v1275 = vmul.u32.u64.compose %v1274, %v1273
        %v1276 = vextract.low.u32 %v1275
        %v1277 = vextract.high.u32 %v1275
        %v1278 = vmul.u32.u64.compose %v1274, %v1269
        %v1279 = vextract.low.u32 %v1278
        %v1280 = vextract.high.u32 %v1278
        %v1281 = vmul.u32 %v1274, %v1265
        %v1282 = vadd.s32 %v1277, %v1279
        %vm1283 = vc.u32 %v1277, %v1279
        %v1284 = vadd.s32 %v1280, 1
        %v1285 = vsel %vm1283, %v1284, %v1280
        %v1286 = vadd.s32 %v1281, %v1285
        %v1287 = vadd.s32 %v1286, 536870912
        %v1288 = vshrl.u32 %v1287, 30
        %v1289 = vshll.u32 %v1288, 30
        %v1290 = vsub.s32 %v1286, %v1289
        %vm1291 = vcmp.lt.s32.totalorder %v1290, 0
        %v1292 = vsub.s32 0, %v1290
        %v1293 = vsel %vm1291, %v1292, %v1290
        %v1294 = vclz %v1293
        %v1295 = vsub.s32 %v1294, 2
        %vm1296 = vcmp.gt.s32.totalorder 0, %v1295
        %v1297 = vsel %vm1296, 0, %v1295
        %v1298 = vsub.s32 32, %v1297
        %v1299 = vshll.u32 %v1290, %v1297
        %v1300 = vshrl.u32 %v1282, %v1298
        %v1301 = vor.u32 %v1299, %v1300
        %v1302 = vsub.s32 4294967266, %v1297
        %v1303 = vadd.s32 %v1302, 127
        %v1304 = vshll.u32 %v1303, 23
        %v1305 = vor.u32 4788187, %v1304
        %v1306 = vand.u32 2147483647, %v1305
        %v1308 = vcvt.s32.f32 %v1301
        %v1309 = vmul.f32 %v1308, %v1306
        %v1310 = vxor.u32 %v1309, 2147483648
        %v1311 = vsel %vm1228, %v1310, %v1309
        %v1312 = vsub.s32 4, %v1288
        %v1313 = vsel %vm1228, %v1312, %v1288
        %v1314 = vsel %vm1227, %v386, %v1311
        %v1315 = vsel %vm1227, 0, %v1313
        %v1316 = vcosq.f32.pop %v1314
        %v1317 = vsinq.f32.pop %v1314
        %vm1318 = vweird.f32 %v386
        %v1319 = vand.u32 %v1315, 3
        %vm1320 = vcmp.lt.s32.totalorder %v1319, 2
        %vm1321 = vcmp.eq.s32.totalorder %v1319, 0
        %v1322 = vxor.u32 %v1317, 2147483648
        %v1323 = vsel %vm1321, %v1316, %v1322
        %vm1324 = vcmp.eq.s32.totalorder %v1319, 2
        %v1325 = vxor.u32 %v1316, 2147483648
        %v1326 = vsel %vm1324, %v1325, %v1317
        %v1327 = vsel %vm1320, %v1323, %v1326
        %v1328 = vsel %vm1318, nan, %v1327
        %v1329 = vand.u32 2147483647, %v387
        %vm1330 = vcmp.le.f32.partialorder %v1329, 0.7853982
        %vm1331 = vcmp.lt.s32.totalorder %v387, 0
        %v1332 = vand.u32 %v387, 2139095040
        %v1333 = vshrl.u32 %v1332, 23
        %v1334 = vsub.s32 %v1333, 127
        %v1335 = vand.u32 2147483647, %v387
        %v1336 = vand.u32 %v1335, 8388607
        %v1337 = vor.u32 %v1336, 8388608
        %v1338 = vsub.s32 0, %v1337
        %v1339 = vadd.s32 %v1334, 1
        %vm1340 = vcmp.gt.s32.totalorder %v1339, 0
        %v1341 = vsel %vm1340, %v1339, 0
        %v1342 = vshrl.u32 %v1341, 5
        %v1343 = vand.u32 %v1341, 31
        %v1344 = vsub.s32 32, %v1343
        %v1345 = vshrl.u32 683565275, %v1344
        %v1346 = vshll.u32 683565275, %v1343
        %v1347 = vshrl.u32 2475754826, %v1344
        %v1348 = vor.u32 %v1346, %v1347
        %v1349 = vshll.u32 2475754826, %v1343
        %v1350 = vshrl.u32 2131351028, %v1344
        %v1351 = vor.u32 %v1349, %v1350
        %v1352 = vshll.u32 2131351028, %v1343
        %v1353 = vshrl.u32 2102212464, %v1344
        %v1354 = vor.u32 %v1352, %v1353
        %v1355 = vshll.u32 2102212464, %v1343
        %v1356 = vshrl.u32 920167782, %v1344
        %v1357 = vor.u32 %v1355, %v1356
        %v1358 = vshll.u32 920167782, %v1343
        %v1359 = vshrl.u32 1326507024, %v1344
        %v1360 = vor.u32 %v1358, %v1359
        %vm1361 = vcmp.lt.s32.totalorder %v1342, 1
        %vm1362 = vcmp.lt.s32.totalorder %v1342, 2
        %vm1363 = vcmp.lt.s32.totalorder %v1342, 3
        %vm1364 = vcmp.lt.s32.totalorder %v1342, 4
        %v1365 = vsel %vm1361, %v1345, %v1348
        %v1366 = vsel %vm1364, %v1354, 2102212464
        %v1367 = vsel %vm1363, %v1351, %v1366
        %v1368 = vsel %vm1362, %v1365, %v1367
        %v1369 = vsel %vm1361, %v1348, %v1351
        %v1370 = vsel %vm1364, %v1357, 920167782
        %v1371 = vsel %vm1363, %v1354, %v1370
        %v1372 = vsel %vm1362, %v1369, %v1371
        %v1373 = vsel %vm1361, %v1351, %v1354
        %v1374 = vsel %vm1364, %v1360, 1326507024
        %v1375 = vsel %vm1363, %v1357, %v1374
        %v1376 = vsel %vm1362, %v1373, %v1375
        %v1377 = vshll.u32 %v1337, 8
        %v1378 = vmul.u32.u64.compose %v1377, %v1376
        %v1379 = vextract.low.u32 %v1378
        %v1380 = vextract.high.u32 %v1378
        %v1381 = vmul.u32.u64.compose %v1377, %v1372
        %v1382 = vextract.low.u32 %v1381
        %v1383 = vextract.high.u32 %v1381
        %v1384 = vmul.u32 %v1377, %v1368
        %v1385 = vadd.s32 %v1380, %v1382
        %vm1386 = vc.u32 %v1380, %v1382
        %v1387 = vadd.s32 %v1383, 1
        %v1388 = vsel %vm1386, %v1387, %v1383
        %v1389 = vadd.s32 %v1384, %v1388
        %v1390 = vadd.s32 %v1389, 536870912
        %v1391 = vshrl.u32 %v1390, 30
        %v1392 = vshll.u32 %v1391, 30
        %v1393 = vsub.s32 %v1389, %v1392
        %vm1394 = vcmp.lt.s32.totalorder %v1393, 0
        %v1395 = vsub.s32 0, %v1393
        %v1396 = vsel %vm1394, %v1395, %v1393
        %v1397 = vclz %v1396
        %v1398 = vsub.s32 %v1397, 2
        %vm1399 = vcmp.gt.s32.totalorder 0, %v1398
        %v1400 = vsel %vm1399, 0, %v1398
        %v1401 = vsub.s32 32, %v1400
        %v1402 = vshll.u32 %v1393, %v1400
        %v1403 = vshrl.u32 %v1385, %v1401
        %v1404 = vor.u32 %v1402, %v1403
        %v1405 = vsub.s32 4294967266, %v1400
        %v1406 = vadd.s32 %v1405, 127
        %v1407 = vshll.u32 %v1406, 23
        %v1408 = vor.u32 4788187, %v1407
        %v1409 = vand.u32 2147483647, %v1408
        %v1411 = vcvt.s32.f32 %v1404
        %v1412 = vmul.f32 %v1411, %v1409
        %v1413 = vxor.u32 %v1412, 2147483648
        %v1414 = vsel %vm1331, %v1413, %v1412
        %v1415 = vsub.s32 4, %v1391
        %v1416 = vsel %vm1331, %v1415, %v1391
        %v1417 = vsel %vm1330, %v387, %v1414
        %v1418 = vsel %vm1330, 0, %v1416
        %v1419 = vcosq.f32.pop %v1417
        %v1420 = vsinq.f32.pop %v1417
        %vm1421 = vweird.f32 %v387
        %v1422 = vand.u32 %v1418, 3
        %vm1423 = vcmp.lt.s32.totalorder %v1422, 2
        %vm1424 = vcmp.eq.s32.totalorder %v1422, 0
        %v1425 = vxor.u32 %v1420, 2147483648
        %v1426 = vsel %vm1424, %v1419, %v1425
        %vm1427 = vcmp.eq.s32.totalorder %v1422, 2
        %v1428 = vxor.u32 %v1419, 2147483648
        %v1429 = vsel %vm1427, %v1428, %v1420
        %v1430 = vsel %vm1423, %v1426, %v1429
        %v1431 = vsel %vm1421, nan, %v1430
        %v1432 = vand.u32 2147483647, %v388
        %vm1433 = vcmp.le.f32.partialorder %v1432, 0.7853982
        %vm1434 = vcmp.lt.s32.totalorder %v388, 0
        %v1435 = vand.u32 %v388, 2139095040
        %v1436 = vshrl.u32 %v1435, 23
        %v1437 = vsub.s32 %v1436, 127
        %v1438 = vand.u32 2147483647, %v388
        %v1439 = vand.u32 %v1438, 8388607
        %v1440 = vor.u32 %v1439, 8388608
        %v1441 = vsub.s32 0, %v1440
        %v1442 = vadd.s32 %v1437, 1
        %vm1443 = vcmp.gt.s32.totalorder %v1442, 0
        %v1444 = vsel %vm1443, %v1442, 0
        %v1445 = vshrl.u32 %v1444, 5
        %v1446 = vand.u32 %v1444, 31
        %v1447 = vsub.s32 32, %v1446
        %v1448 = vshrl.u32 683565275, %v1447
        %v1449 = vshll.u32 683565275, %v1446
        %v1450 = vshrl.u32 2475754826, %v1447
        %v1451 = vor.u32 %v1449, %v1450
        %v1452 = vshll.u32 2475754826, %v1446
        %v1453 = vshrl.u32 2131351028, %v1447
        %v1454 = vor.u32 %v1452, %v1453
        %v1455 = vshll.u32 2131351028, %v1446
        %v1456 = vshrl.u32 2102212464, %v1447
        %v1457 = vor.u32 %v1455, %v1456
        %v1458 = vshll.u32 2102212464, %v1446
        %v1459 = vshrl.u32 920167782, %v1447
        %v1460 = vor.u32 %v1458, %v1459
        %v1461 = vshll.u32 920167782, %v1446
        %v1462 = vshrl.u32 1326507024, %v1447
        %v1463 = vor.u32 %v1461, %v1462
        %vm1464 = vcmp.lt.s32.totalorder %v1445, 1
        %vm1465 = vcmp.lt.s32.totalorder %v1445, 2
        %vm1466 = vcmp.lt.s32.totalorder %v1445, 3
        %vm1467 = vcmp.lt.s32.totalorder %v1445, 4
        %v1468 = vsel %vm1464, %v1448, %v1451
        %v1469 = vsel %vm1467, %v1457, 2102212464
        %v1470 = vsel %vm1466, %v1454, %v1469
        %v1471 = vsel %vm1465, %v1468, %v1470
        %v1472 = vsel %vm1464, %v1451, %v1454
        %v1473 = vsel %vm1467, %v1460, 920167782
        %v1474 = vsel %vm1466, %v1457, %v1473
        %v1475 = vsel %vm1465, %v1472, %v1474
        %v1476 = vsel %vm1464, %v1454, %v1457
        %v1477 = vsel %vm1467, %v1463, 1326507024
        %v1478 = vsel %vm1466, %v1460, %v1477
        %v1479 = vsel %vm1465, %v1476, %v1478
        %v1480 = vshll.u32 %v1440, 8
        %v1481 = vmul.u32.u64.compose %v1480, %v1479
        %v1482 = vextract.low.u32 %v1481
        %v1483 = vextract.high.u32 %v1481
        %v1484 = vmul.u32.u64.compose %v1480, %v1475
        %v1485 = vextract.low.u32 %v1484
        %v1486 = vextract.high.u32 %v1484
        %v1487 = vmul.u32 %v1480, %v1471
        %v1488 = vadd.s32 %v1483, %v1485
        %vm1489 = vc.u32 %v1483, %v1485
        %v1490 = vadd.s32 %v1486, 1
        %v1491 = vsel %vm1489, %v1490, %v1486
        %v1492 = vadd.s32 %v1487, %v1491
        %v1493 = vadd.s32 %v1492, 536870912
        %v1494 = vshrl.u32 %v1493, 30
        %v1495 = vshll.u32 %v1494, 30
        %v1496 = vsub.s32 %v1492, %v1495
        %vm1497 = vcmp.lt.s32.totalorder %v1496, 0
        %v1498 = vsub.s32 0, %v1496
        %v1499 = vsel %vm1497, %v1498, %v1496
        %v1500 = vclz %v1499
        %v1501 = vsub.s32 %v1500, 2
        %vm1502 = vcmp.gt.s32.totalorder 0, %v1501
        %v1503 = vsel %vm1502, 0, %v1501
        %v1504 = vsub.s32 32, %v1503
        %v1505 = vshll.u32 %v1496, %v1503
        %v1506 = vshrl.u32 %v1488, %v1504
        %v1507 = vor.u32 %v1505, %v1506
        %v1508 = vsub.s32 4294967266, %v1503
        %v1509 = vadd.s32 %v1508, 127
        %v1510 = vshll.u32 %v1509, 23
        %v1511 = vor.u32 4788187, %v1510
        %v1512 = vand.u32 2147483647, %v1511
        %v1514 = vcvt.s32.f32 %v1507
        %v1515 = vmul.f32 %v1514, %v1512
        %v1516 = vxor.u32 %v1515, 2147483648
        %v1517 = vsel %vm1434, %v1516, %v1515
        %v1518 = vsub.s32 4, %v1494
        %v1519 = vsel %vm1434, %v1518, %v1494
        %v1520 = vsel %vm1433, %v388, %v1517
        %v1521 = vsel %vm1433, 0, %v1519
        %v1522 = vcosq.f32.pop %v1520
        %v1523 = vsinq.f32.pop %v1520
        %vm1524 = vweird.f32 %v388
        %v1525 = vand.u32 %v1521, 3
        %vm1526 = vcmp.lt.s32.totalorder %v1525, 2
        %vm1527 = vcmp.eq.s32.totalorder %v1525, 0
        %v1528 = vxor.u32 %v1523, 2147483648
        %v1529 = vsel %vm1527, %v1522, %v1528
        %vm1530 = vcmp.eq.s32.totalorder %v1525, 2
        %v1531 = vxor.u32 %v1522, 2147483648
        %v1532 = vsel %vm1530, %v1531, %v1523
        %v1533 = vsel %vm1526, %v1529, %v1532
        %v1534 = vsel %vm1524, nan, %v1533
        %v1535 = vand.u32 2147483647, %v389
        %vm1536 = vcmp.le.f32.partialorder %v1535, 0.7853982
        %vm1537 = vcmp.lt.s32.totalorder %v389, 0
        %v1538 = vand.u32 %v389, 2139095040
        %v1539 = vshrl.u32 %v1538, 23
        %v1540 = vsub.s32 %v1539, 127
        %v1541 = vand.u32 2147483647, %v389
        %v1542 = vand.u32 %v1541, 8388607
        %v1543 = vor.u32 %v1542, 8388608
        %v1544 = vsub.s32 0, %v1543
        %v1545 = vadd.s32 %v1540, 1
        %vm1546 = vcmp.gt.s32.totalorder %v1545, 0
        %v1547 = vsel %vm1546, %v1545, 0
        %v1548 = vshrl.u32 %v1547, 5
        %v1549 = vand.u32 %v1547, 31
        %v1550 = vsub.s32 32, %v1549
        %v1551 = vshrl.u32 683565275, %v1550
        %v1552 = vshll.u32 683565275, %v1549
        %v1553 = vshrl.u32 2475754826, %v1550
        %v1554 = vor.u32 %v1552, %v1553
        %v1555 = vshll.u32 2475754826, %v1549
        %v1556 = vshrl.u32 2131351028, %v1550
        %v1557 = vor.u32 %v1555, %v1556
        %v1558 = vshll.u32 2131351028, %v1549
        %v1559 = vshrl.u32 2102212464, %v1550
        %v1560 = vor.u32 %v1558, %v1559
        %v1561 = vshll.u32 2102212464, %v1549
        %v1562 = vshrl.u32 920167782, %v1550
        %v1563 = vor.u32 %v1561, %v1562
        %v1564 = vshll.u32 920167782, %v1549
        %v1565 = vshrl.u32 1326507024, %v1550
        %v1566 = vor.u32 %v1564, %v1565
        %vm1567 = vcmp.lt.s32.totalorder %v1548, 1
        %vm1568 = vcmp.lt.s32.totalorder %v1548, 2
        %vm1569 = vcmp.lt.s32.totalorder %v1548, 3
        %vm1570 = vcmp.lt.s32.totalorder %v1548, 4
        %v1571 = vsel %vm1567, %v1551, %v1554
        %v1572 = vsel %vm1570, %v1560, 2102212464
        %v1573 = vsel %vm1569, %v1557, %v1572
        %v1574 = vsel %vm1568, %v1571, %v1573
        %v1575 = vsel %vm1567, %v1554, %v1557
        %v1576 = vsel %vm1570, %v1563, 920167782
        %v1577 = vsel %vm1569, %v1560, %v1576
        %v1578 = vsel %vm1568, %v1575, %v1577
        %v1579 = vsel %vm1567, %v1557, %v1560
        %v1580 = vsel %vm1570, %v1566, 1326507024
        %v1581 = vsel %vm1569, %v1563, %v1580
        %v1582 = vsel %vm1568, %v1579, %v1581
        %v1583 = vshll.u32 %v1543, 8
        %v1584 = vmul.u32.u64.compose %v1583, %v1582
        %v1585 = vextract.low.u32 %v1584
        %v1586 = vextract.high.u32 %v1584
        %v1587 = vmul.u32.u64.compose %v1583, %v1578
        %v1588 = vextract.low.u32 %v1587
        %v1589 = vextract.high.u32 %v1587
        %v1590 = vmul.u32 %v1583, %v1574
        %v1591 = vadd.s32 %v1586, %v1588
        %vm1592 = vc.u32 %v1586, %v1588
        %v1593 = vadd.s32 %v1589, 1
        %v1594 = vsel %vm1592, %v1593, %v1589
        %v1595 = vadd.s32 %v1590, %v1594
        %v1596 = vadd.s32 %v1595, 536870912
        %v1597 = vshrl.u32 %v1596, 30
        %v1598 = vshll.u32 %v1597, 30
        %v1599 = vsub.s32 %v1595, %v1598
        %vm1600 = vcmp.lt.s32.totalorder %v1599, 0
        %v1601 = vsub.s32 0, %v1599
        %v1602 = vsel %vm1600, %v1601, %v1599
        %v1603 = vclz %v1602
        %v1604 = vsub.s32 %v1603, 2
        %vm1605 = vcmp.gt.s32.totalorder 0, %v1604
        %v1606 = vsel %vm1605, 0, %v1604
        %v1607 = vsub.s32 32, %v1606
        %v1608 = vshll.u32 %v1599, %v1606
        %v1609 = vshrl.u32 %v1591, %v1607
        %v1610 = vor.u32 %v1608, %v1609
        %v1611 = vsub.s32 4294967266, %v1606
        %v1612 = vadd.s32 %v1611, 127
        %v1613 = vshll.u32 %v1612, 23
        %v1614 = vor.u32 4788187, %v1613
        %v1615 = vand.u32 2147483647, %v1614
        %v1617 = vcvt.s32.f32 %v1610
        %v1618 = vmul.f32 %v1617, %v1615
        %v1619 = vxor.u32 %v1618, 2147483648
        %v1620 = vsel %vm1537, %v1619, %v1618
        %v1621 = vsub.s32 4, %v1597
        %v1622 = vsel %vm1537, %v1621, %v1597
        %v1623 = vsel %vm1536, %v389, %v1620
        %v1624 = vsel %vm1536, 0, %v1622
        %v1625 = vcosq.f32.pop %v1623
        %v1626 = vsinq.f32.pop %v1623
        %vm1627 = vweird.f32 %v389
        %v1628 = vand.u32 %v1624, 3
        %vm1629 = vcmp.lt.s32.totalorder %v1628, 2
        %vm1630 = vcmp.eq.s32.totalorder %v1628, 0
        %v1631 = vxor.u32 %v1626, 2147483648
        %v1632 = vsel %vm1630, %v1625, %v1631
        %vm1633 = vcmp.eq.s32.totalorder %v1628, 2
        %v1634 = vxor.u32 %v1625, 2147483648
        %v1635 = vsel %vm1633, %v1634, %v1626
        %v1636 = vsel %vm1629, %v1632, %v1635
        %v1637 = vsel %vm1627, nan, %v1636
        %v1638 = vand.u32 2147483647, %v390
        %vm1639 = vcmp.le.f32.partialorder %v1638, 0.7853982
        %vm1640 = vcmp.lt.s32.totalorder %v390, 0
        %v1641 = vand.u32 %v390, 2139095040
        %v1642 = vshrl.u32 %v1641, 23
        %v1643 = vsub.s32 %v1642, 127
        %v1644 = vand.u32 2147483647, %v390
        %v1645 = vand.u32 %v1644, 8388607
        %v1646 = vor.u32 %v1645, 8388608
        %v1647 = vsub.s32 0, %v1646
        %v1648 = vadd.s32 %v1643, 1
        %vm1649 = vcmp.gt.s32.totalorder %v1648, 0
        %v1650 = vsel %vm1649, %v1648, 0
        %v1651 = vshrl.u32 %v1650, 5
        %v1652 = vand.u32 %v1650, 31
        %v1653 = vsub.s32 32, %v1652
        %v1654 = vshrl.u32 683565275, %v1653
        %v1655 = vshll.u32 683565275, %v1652
        %v1656 = vshrl.u32 2475754826, %v1653
        %v1657 = vor.u32 %v1655, %v1656
        %v1658 = vshll.u32 2475754826, %v1652
        %v1659 = vshrl.u32 2131351028, %v1653
        %v1660 = vor.u32 %v1658, %v1659
        %v1661 = vshll.u32 2131351028, %v1652
        %v1662 = vshrl.u32 2102212464, %v1653
        %v1663 = vor.u32 %v1661, %v1662
        %v1664 = vshll.u32 2102212464, %v1652
        %v1665 = vshrl.u32 920167782, %v1653
        %v1666 = vor.u32 %v1664, %v1665
        %v1667 = vshll.u32 920167782, %v1652
        %v1668 = vshrl.u32 1326507024, %v1653
        %v1669 = vor.u32 %v1667, %v1668
        %vm1670 = vcmp.lt.s32.totalorder %v1651, 1
        %vm1671 = vcmp.lt.s32.totalorder %v1651, 2
        %vm1672 = vcmp.lt.s32.totalorder %v1651, 3
        %vm1673 = vcmp.lt.s32.totalorder %v1651, 4
        %v1674 = vsel %vm1670, %v1654, %v1657
        %v1675 = vsel %vm1673, %v1663, 2102212464
        %v1676 = vsel %vm1672, %v1660, %v1675
        %v1677 = vsel %vm1671, %v1674, %v1676
        %v1678 = vsel %vm1670, %v1657, %v1660
        %v1679 = vsel %vm1673, %v1666, 920167782
        %v1680 = vsel %vm1672, %v1663, %v1679
        %v1681 = vsel %vm1671, %v1678, %v1680
        %v1682 = vsel %vm1670, %v1660, %v1663
        %v1683 = vsel %vm1673, %v1669, 1326507024
        %v1684 = vsel %vm1672, %v1666, %v1683
        %v1685 = vsel %vm1671, %v1682, %v1684
        %v1686 = vshll.u32 %v1646, 8
        %v1687 = vmul.u32.u64.compose %v1686, %v1685
        %v1688 = vextract.low.u32 %v1687
        %v1689 = vextract.high.u32 %v1687
        %v1690 = vmul.u32.u64.compose %v1686, %v1681
        %v1691 = vextract.low.u32 %v1690
        %v1692 = vextract.high.u32 %v1690
        %v1693 = vmul.u32 %v1686, %v1677
        %v1694 = vadd.s32 %v1689, %v1691
        %vm1695 = vc.u32 %v1689, %v1691
        %v1696 = vadd.s32 %v1692, 1
        %v1697 = vsel %vm1695, %v1696, %v1692
        %v1698 = vadd.s32 %v1693, %v1697
        %v1699 = vadd.s32 %v1698, 536870912
        %v1700 = vshrl.u32 %v1699, 30
        %v1701 = vshll.u32 %v1700, 30
        %v1702 = vsub.s32 %v1698, %v1701
        %vm1703 = vcmp.lt.s32.totalorder %v1702, 0
        %v1704 = vsub.s32 0, %v1702
        %v1705 = vsel %vm1703, %v1704, %v1702
        %v1706 = vclz %v1705
        %v1707 = vsub.s32 %v1706, 2
        %vm1708 = vcmp.gt.s32.totalorder 0, %v1707
        %v1709 = vsel %vm1708, 0, %v1707
        %v1710 = vsub.s32 32, %v1709
        %v1711 = vshll.u32 %v1702, %v1709
        %v1712 = vshrl.u32 %v1694, %v1710
        %v1713 = vor.u32 %v1711, %v1712
        %v1714 = vsub.s32 4294967266, %v1709
        %v1715 = vadd.s32 %v1714, 127
        %v1716 = vshll.u32 %v1715, 23
        %v1717 = vor.u32 4788187, %v1716
        %v1718 = vand.u32 2147483647, %v1717
        %v1720 = vcvt.s32.f32 %v1713
        %v1721 = vmul.f32 %v1720, %v1718
        %v1722 = vxor.u32 %v1721, 2147483648
        %v1723 = vsel %vm1640, %v1722, %v1721
        %v1724 = vsub.s32 4, %v1700
        %v1725 = vsel %vm1640, %v1724, %v1700
        %v1726 = vsel %vm1639, %v390, %v1723
        %v1727 = vsel %vm1639, 0, %v1725
        %v1728 = vcosq.f32.pop %v1726
        %v1729 = vsinq.f32.pop %v1726
        %vm1730 = vweird.f32 %v390
        %v1731 = vand.u32 %v1727, 3
        %vm1732 = vcmp.lt.s32.totalorder %v1731, 2
        %vm1733 = vcmp.eq.s32.totalorder %v1731, 0
        %v1734 = vxor.u32 %v1729, 2147483648
        %v1735 = vsel %vm1733, %v1728, %v1734
        %vm1736 = vcmp.eq.s32.totalorder %v1731, 2
        %v1737 = vxor.u32 %v1728, 2147483648
        %v1738 = vsel %vm1736, %v1737, %v1729
        %v1739 = vsel %vm1732, %v1735, %v1738
        %v1740 = vsel %vm1730, nan, %v1739
        %v1741 = vand.u32 2147483647, %v391
        %vm1742 = vcmp.le.f32.partialorder %v1741, 0.7853982
        %vm1743 = vcmp.lt.s32.totalorder %v391, 0
        %v1744 = vand.u32 %v391, 2139095040
        %v1745 = vshrl.u32 %v1744, 23
        %v1746 = vsub.s32 %v1745, 127
        %v1747 = vand.u32 2147483647, %v391
        %v1748 = vand.u32 %v1747, 8388607
        %v1749 = vor.u32 %v1748, 8388608
        %v1750 = vsub.s32 0, %v1749
        %v1751 = vadd.s32 %v1746, 1
        %vm1752 = vcmp.gt.s32.totalorder %v1751, 0
        %v1753 = vsel %vm1752, %v1751, 0
        %v1754 = vshrl.u32 %v1753, 5
        %v1755 = vand.u32 %v1753, 31
        %v1756 = vsub.s32 32, %v1755
        %v1757 = vshrl.u32 683565275, %v1756
        %v1758 = vshll.u32 683565275, %v1755
        %v1759 = vshrl.u32 2475754826, %v1756
        %v1760 = vor.u32 %v1758, %v1759
        %v1761 = vshll.u32 2475754826, %v1755
        %v1762 = vshrl.u32 2131351028, %v1756
        %v1763 = vor.u32 %v1761, %v1762
        %v1764 = vshll.u32 2131351028, %v1755
        %v1765 = vshrl.u32 2102212464, %v1756
        %v1766 = vor.u32 %v1764, %v1765
        %v1767 = vshll.u32 2102212464, %v1755
        %v1768 = vshrl.u32 920167782, %v1756
        %v1769 = vor.u32 %v1767, %v1768
        %v1770 = vshll.u32 920167782, %v1755
        %v1771 = vshrl.u32 1326507024, %v1756
        %v1772 = vor.u32 %v1770, %v1771
        %vm1773 = vcmp.lt.s32.totalorder %v1754, 1
        %vm1774 = vcmp.lt.s32.totalorder %v1754, 2
        %vm1775 = vcmp.lt.s32.totalorder %v1754, 3
        %vm1776 = vcmp.lt.s32.totalorder %v1754, 4
        %v1777 = vsel %vm1773, %v1757, %v1760
        %v1778 = vsel %vm1776, %v1766, 2102212464
        %v1779 = vsel %vm1775, %v1763, %v1778
        %v1780 = vsel %vm1774, %v1777, %v1779
        %v1781 = vsel %vm1773, %v1760, %v1763
        %v1782 = vsel %vm1776, %v1769, 920167782
        %v1783 = vsel %vm1775, %v1766, %v1782
        %v1784 = vsel %vm1774, %v1781, %v1783
        %v1785 = vsel %vm1773, %v1763, %v1766
        %v1786 = vsel %vm1776, %v1772, 1326507024
        %v1787 = vsel %vm1775, %v1769, %v1786
        %v1788 = vsel %vm1774, %v1785, %v1787
        %v1789 = vshll.u32 %v1749, 8
        %v1790 = vmul.u32.u64.compose %v1789, %v1788
        %v1791 = vextract.low.u32 %v1790
        %v1792 = vextract.high.u32 %v1790
        %v1793 = vmul.u32.u64.compose %v1789, %v1784
        %v1794 = vextract.low.u32 %v1793
        %v1795 = vextract.high.u32 %v1793
        %v1796 = vmul.u32 %v1789, %v1780
        %v1797 = vadd.s32 %v1792, %v1794
        %vm1798 = vc.u32 %v1792, %v1794
        %v1799 = vadd.s32 %v1795, 1
        %v1800 = vsel %vm1798, %v1799, %v1795
        %v1801 = vadd.s32 %v1796, %v1800
        %v1802 = vadd.s32 %v1801, 536870912
        %v1803 = vshrl.u32 %v1802, 30
        %v1804 = vshll.u32 %v1803, 30
        %v1805 = vsub.s32 %v1801, %v1804
        %vm1806 = vcmp.lt.s32.totalorder %v1805, 0
        %v1807 = vsub.s32 0, %v1805
        %v1808 = vsel %vm1806, %v1807, %v1805
        %v1809 = vclz %v1808
        %v1810 = vsub.s32 %v1809, 2
        %vm1811 = vcmp.gt.s32.totalorder 0, %v1810
        %v1812 = vsel %vm1811, 0, %v1810
        %v1813 = vsub.s32 32, %v1812
        %v1814 = vshll.u32 %v1805, %v1812
        %v1815 = vshrl.u32 %v1797, %v1813
        %v1816 = vor.u32 %v1814, %v1815
        %v1817 = vsub.s32 4294967266, %v1812
        %v1818 = vadd.s32 %v1817, 127
        %v1819 = vshll.u32 %v1818, 23
        %v1820 = vor.u32 4788187, %v1819
        %v1821 = vand.u32 2147483647, %v1820
        %v1823 = vcvt.s32.f32 %v1816
        %v1824 = vmul.f32 %v1823, %v1821
        %v1825 = vxor.u32 %v1824, 2147483648
        %v1826 = vsel %vm1743, %v1825, %v1824
        %v1827 = vsub.s32 4, %v1803
        %v1828 = vsel %vm1743, %v1827, %v1803
        %v1829 = vsel %vm1742, %v391, %v1826
        %v1830 = vsel %vm1742, 0, %v1828
        %v1831 = vcosq.f32.pop %v1829
        %v1832 = vsinq.f32.pop %v1829
        %vm1833 = vweird.f32 %v391
        %v1834 = vand.u32 %v1830, 3
        %vm1835 = vcmp.lt.s32.totalorder %v1834, 2
        %vm1836 = vcmp.eq.s32.totalorder %v1834, 0
        %v1837 = vxor.u32 %v1832, 2147483648
        %v1838 = vsel %vm1836, %v1831, %v1837
        %vm1839 = vcmp.eq.s32.totalorder %v1834, 2
        %v1840 = vxor.u32 %v1831, 2147483648
        %v1841 = vsel %vm1839, %v1840, %v1832
        %v1842 = vsel %vm1835, %v1838, %v1841
        %v1843 = vsel %vm1833, nan, %v1842
        %v1844 = vand.u32 2147483647, %v392
        %vm1845 = vcmp.le.f32.partialorder %v1844, 0.7853982
        %vm1846 = vcmp.lt.s32.totalorder %v392, 0
        %v1847 = vand.u32 %v392, 2139095040
        %v1848 = vshrl.u32 %v1847, 23
        %v1849 = vsub.s32 %v1848, 127
        %v1850 = vand.u32 2147483647, %v392
        %v1851 = vand.u32 %v1850, 8388607
        %v1852 = vor.u32 %v1851, 8388608
        %v1853 = vsub.s32 0, %v1852
        %v1854 = vadd.s32 %v1849, 1
        %vm1855 = vcmp.gt.s32.totalorder %v1854, 0
        %v1856 = vsel %vm1855, %v1854, 0
        %v1857 = vshrl.u32 %v1856, 5
        %v1858 = vand.u32 %v1856, 31
        %v1859 = vsub.s32 32, %v1858
        %v1860 = vshrl.u32 683565275, %v1859
        %v1861 = vshll.u32 683565275, %v1858
        %v1862 = vshrl.u32 2475754826, %v1859
        %v1863 = vor.u32 %v1861, %v1862
        %v1864 = vshll.u32 2475754826, %v1858
        %v1865 = vshrl.u32 2131351028, %v1859
        %v1866 = vor.u32 %v1864, %v1865
        %v1867 = vshll.u32 2131351028, %v1858
        %v1868 = vshrl.u32 2102212464, %v1859
        %v1869 = vor.u32 %v1867, %v1868
        %v1870 = vshll.u32 2102212464, %v1858
        %v1871 = vshrl.u32 920167782, %v1859
        %v1872 = vor.u32 %v1870, %v1871
        %v1873 = vshll.u32 920167782, %v1858
        %v1874 = vshrl.u32 1326507024, %v1859
        %v1875 = vor.u32 %v1873, %v1874
        %vm1876 = vcmp.lt.s32.totalorder %v1857, 1
        %vm1877 = vcmp.lt.s32.totalorder %v1857, 2
        %vm1878 = vcmp.lt.s32.totalorder %v1857, 3
        %vm1879 = vcmp.lt.s32.totalorder %v1857, 4
        %v1880 = vsel %vm1876, %v1860, %v1863
        %v1881 = vsel %vm1879, %v1869, 2102212464
        %v1882 = vsel %vm1878, %v1866, %v1881
        %v1883 = vsel %vm1877, %v1880, %v1882
        %v1884 = vsel %vm1876, %v1863, %v1866
        %v1885 = vsel %vm1879, %v1872, 920167782
        %v1886 = vsel %vm1878, %v1869, %v1885
        %v1887 = vsel %vm1877, %v1884, %v1886
        %v1888 = vsel %vm1876, %v1866, %v1869
        %v1889 = vsel %vm1879, %v1875, 1326507024
        %v1890 = vsel %vm1878, %v1872, %v1889
        %v1891 = vsel %vm1877, %v1888, %v1890
        %v1892 = vshll.u32 %v1852, 8
        %v1893 = vmul.u32.u64.compose %v1892, %v1891
        %v1894 = vextract.low.u32 %v1893
        %v1895 = vextract.high.u32 %v1893
        %v1896 = vmul.u32.u64.compose %v1892, %v1887
        %v1897 = vextract.low.u32 %v1896
        %v1898 = vextract.high.u32 %v1896
        %v1899 = vmul.u32 %v1892, %v1883
        %v1900 = vadd.s32 %v1895, %v1897
        %vm1901 = vc.u32 %v1895, %v1897
        %v1902 = vadd.s32 %v1898, 1
        %v1903 = vsel %vm1901, %v1902, %v1898
        %v1904 = vadd.s32 %v1899, %v1903
        %v1905 = vadd.s32 %v1904, 536870912
        %v1906 = vshrl.u32 %v1905, 30
        %v1907 = vshll.u32 %v1906, 30
        %v1908 = vsub.s32 %v1904, %v1907
        %vm1909 = vcmp.lt.s32.totalorder %v1908, 0
        %v1910 = vsub.s32 0, %v1908
        %v1911 = vsel %vm1909, %v1910, %v1908
        %v1912 = vclz %v1911
        %v1913 = vsub.s32 %v1912, 2
        %vm1914 = vcmp.gt.s32.totalorder 0, %v1913
        %v1915 = vsel %vm1914, 0, %v1913
        %v1916 = vsub.s32 32, %v1915
        %v1917 = vshll.u32 %v1908, %v1915
        %v1918 = vshrl.u32 %v1900, %v1916
        %v1919 = vor.u32 %v1917, %v1918
        %v1920 = vsub.s32 4294967266, %v1915
        %v1921 = vadd.s32 %v1920, 127
        %v1922 = vshll.u32 %v1921, 23
        %v1923 = vor.u32 4788187, %v1922
        %v1924 = vand.u32 2147483647, %v1923
        %v1926 = vcvt.s32.f32 %v1919
        %v1927 = vmul.f32 %v1926, %v1924
        %v1928 = vxor.u32 %v1927, 2147483648
        %v1929 = vsel %vm1846, %v1928, %v1927
        %v1930 = vsub.s32 4, %v1906
        %v1931 = vsel %vm1846, %v1930, %v1906
        %v1932 = vsel %vm1845, %v392, %v1929
        %v1933 = vsel %vm1845, 0, %v1931
        %v1934 = vcosq.f32.pop %v1932
        %v1935 = vsinq.f32.pop %v1932
        %vm1936 = vweird.f32 %v392
        %v1937 = vand.u32 %v1933, 3
        %vm1938 = vcmp.lt.s32.totalorder %v1937, 2
        %vm1939 = vcmp.eq.s32.totalorder %v1937, 0
        %v1940 = vxor.u32 %v1935, 2147483648
        %v1941 = vsel %vm1939, %v1934, %v1940
        %vm1942 = vcmp.eq.s32.totalorder %v1937, 2
        %v1943 = vxor.u32 %v1934, 2147483648
        %v1944 = vsel %vm1942, %v1943, %v1935
        %v1945 = vsel %vm1938, %v1941, %v1944
        %v1946 = vsel %vm1936, nan, %v1945
        %v1947 = vand.u32 2147483647, %v393
        %vm1948 = vcmp.le.f32.partialorder %v1947, 0.7853982
        %vm1949 = vcmp.lt.s32.totalorder %v393, 0
        %v1950 = vand.u32 %v393, 2139095040
        %v1951 = vshrl.u32 %v1950, 23
        %v1952 = vsub.s32 %v1951, 127
        %v1953 = vand.u32 2147483647, %v393
        %v1954 = vand.u32 %v1953, 8388607
        %v1955 = vor.u32 %v1954, 8388608
        %v1956 = vsub.s32 0, %v1955
        %v1957 = vadd.s32 %v1952, 1
        %vm1958 = vcmp.gt.s32.totalorder %v1957, 0
        %v1959 = vsel %vm1958, %v1957, 0
        %v1960 = vshrl.u32 %v1959, 5
        %v1961 = vand.u32 %v1959, 31
        %v1962 = vsub.s32 32, %v1961
        %v1963 = vshrl.u32 683565275, %v1962
        %v1964 = vshll.u32 683565275, %v1961
        %v1965 = vshrl.u32 2475754826, %v1962
        %v1966 = vor.u32 %v1964, %v1965
        %v1967 = vshll.u32 2475754826, %v1961
        %v1968 = vshrl.u32 2131351028, %v1962
        %v1969 = vor.u32 %v1967, %v1968
        %v1970 = vshll.u32 2131351028, %v1961
        %v1971 = vshrl.u32 2102212464, %v1962
        %v1972 = vor.u32 %v1970, %v1971
        %v1973 = vshll.u32 2102212464, %v1961
        %v1974 = vshrl.u32 920167782, %v1962
        %v1975 = vor.u32 %v1973, %v1974
        %v1976 = vshll.u32 920167782, %v1961
        %v1977 = vshrl.u32 1326507024, %v1962
        %v1978 = vor.u32 %v1976, %v1977
        %vm1979 = vcmp.lt.s32.totalorder %v1960, 1
        %vm1980 = vcmp.lt.s32.totalorder %v1960, 2
        %vm1981 = vcmp.lt.s32.totalorder %v1960, 3
        %vm1982 = vcmp.lt.s32.totalorder %v1960, 4
        %v1983 = vsel %vm1979, %v1963, %v1966
        %v1984 = vsel %vm1982, %v1972, 2102212464
        %v1985 = vsel %vm1981, %v1969, %v1984
        %v1986 = vsel %vm1980, %v1983, %v1985
        %v1987 = vsel %vm1979, %v1966, %v1969
        %v1988 = vsel %vm1982, %v1975, 920167782
        %v1989 = vsel %vm1981, %v1972, %v1988
        %v1990 = vsel %vm1980, %v1987, %v1989
        %v1991 = vsel %vm1979, %v1969, %v1972
        %v1992 = vsel %vm1982, %v1978, 1326507024
        %v1993 = vsel %vm1981, %v1975, %v1992
        %v1994 = vsel %vm1980, %v1991, %v1993
        %v1995 = vshll.u32 %v1955, 8
        %v1996 = vmul.u32.u64.compose %v1995, %v1994
        %v1997 = vextract.low.u32 %v1996
        %v1998 = vextract.high.u32 %v1996
        %v1999 = vmul.u32.u64.compose %v1995, %v1990
        %v2000 = vextract.low.u32 %v1999
        %v2001 = vextract.high.u32 %v1999
        %v2002 = vmul.u32 %v1995, %v1986
        %v2003 = vadd.s32 %v1998, %v2000
        %vm2004 = vc.u32 %v1998, %v2000
        %v2005 = vadd.s32 %v2001, 1
        %v2006 = vsel %vm2004, %v2005, %v2001
        %v2007 = vadd.s32 %v2002, %v2006
        %v2008 = vadd.s32 %v2007, 536870912
        %v2009 = vshrl.u32 %v2008, 30
        %v2010 = vshll.u32 %v2009, 30
        %v2011 = vsub.s32 %v2007, %v2010
        %vm2012 = vcmp.lt.s32.totalorder %v2011, 0
        %v2013 = vsub.s32 0, %v2011
        %v2014 = vsel %vm2012, %v2013, %v2011
        %v2015 = vclz %v2014
        %v2016 = vsub.s32 %v2015, 2
        %vm2017 = vcmp.gt.s32.totalorder 0, %v2016
        %v2018 = vsel %vm2017, 0, %v2016
        %v2019 = vsub.s32 32, %v2018
        %v2020 = vshll.u32 %v2011, %v2018
        %v2021 = vshrl.u32 %v2003, %v2019
        %v2022 = vor.u32 %v2020, %v2021
        %v2023 = vsub.s32 4294967266, %v2018
        %v2024 = vadd.s32 %v2023, 127
        %v2025 = vshll.u32 %v2024, 23
        %v2026 = vor.u32 4788187, %v2025
        %v2027 = vand.u32 2147483647, %v2026
        %v2029 = vcvt.s32.f32 %v2022
        %v2030 = vmul.f32 %v2029, %v2027
        %v2031 = vxor.u32 %v2030, 2147483648
        %v2032 = vsel %vm1949, %v2031, %v2030
        %v2033 = vsub.s32 4, %v2009
        %v2034 = vsel %vm1949, %v2033, %v2009
        %v2035 = vsel %vm1948, %v393, %v2032
        %v2036 = vsel %vm1948, 0, %v2034
        %v2037 = vcosq.f32.pop %v2035
        %v2038 = vsinq.f32.pop %v2035
        %vm2039 = vweird.f32 %v393
        %v2040 = vand.u32 %v2036, 3
        %vm2041 = vcmp.lt.s32.totalorder %v2040, 2
        %vm2042 = vcmp.eq.s32.totalorder %v2040, 0
        %v2043 = vxor.u32 %v2038, 2147483648
        %v2044 = vsel %vm2042, %v2037, %v2043
        %vm2045 = vcmp.eq.s32.totalorder %v2040, 2
        %v2046 = vxor.u32 %v2037, 2147483648
        %v2047 = vsel %vm2045, %v2046, %v2038
        %v2048 = vsel %vm2041, %v2044, %v2047
        %v2049 = vsel %vm2039, nan, %v2048
        %2051 = vset.pattern.permute.xlu0 0
        %2052 = vperm.xlu0 %2051, %v369
        %v2053 = vpop.permute.xlu0 %2052
        %2056 = vset.pattern.permute.xlu0 0
        %2057 = vperm.xlu0 %2056, %v370
        %v2058 = vpop.permute.xlu0 %2057
        %2061 = vset.pattern.permute.xlu0 0
        %2062 = vperm.xlu0 %2061, %v371
        %v2063 = vpop.permute.xlu0 %2062
        %2066 = vset.pattern.permute.xlu0 0
        %2067 = vperm.xlu0 %2066, %v372
        %v2068 = vpop.permute.xlu0 %2067
        %2071 = vset.pattern.permute.xlu0 0
        %2072 = vperm.xlu0 %2071, %v373
        %v2073 = vpop.permute.xlu0 %2072
        %2076 = vset.pattern.permute.xlu0 0
        %2077 = vperm.xlu0 %2076, %v374
        %v2078 = vpop.permute.xlu0 %2077
        %2081 = vset.pattern.permute.xlu0 0
        %2082 = vperm.xlu0 %2081, %v375
        %v2083 = vpop.permute.xlu0 %2082
        %2086 = vset.pattern.permute.xlu0 0
        %2087 = vperm.xlu0 %2086, %v376
        %v2088 = vpop.permute.xlu0 %2087
        %v2090 = vlaneseq
        %v2091 = vshrl.u32 %v2090, 7
        %v2092 = vsub.s32 0, %v2091
        %v2093 = vrot.slane %v377, %v2092
        %v2094 = vmul.f32 %v2053, %v2093
        %v2095 = vmul.f32 %v2058, %v2093
        %v2096 = vmul.f32 %v2063, %v2093
        %v2097 = vmul.f32 %v2068, %v2093
        %v2098 = vmul.f32 %v2073, %v2093
        %v2099 = vmul.f32 %v2078, %v2093
        %v2100 = vmul.f32 %v2083, %v2093
        %v2101 = vmul.f32 %v2088, %v2093
        %2102 = vset.pattern.permute.xlu0 1
        %2103 = vperm.xlu0 %2102, %v369
        %v2104 = vpop.permute.xlu0 %2103
        %2106 = vset.pattern.permute.xlu0 1
        %2107 = vperm.xlu0 %2106, %v370
        %v2108 = vpop.permute.xlu0 %2107
        %2110 = vset.pattern.permute.xlu0 1
        %2111 = vperm.xlu0 %2110, %v371
        %v2112 = vpop.permute.xlu0 %2111
        %2114 = vset.pattern.permute.xlu0 1
        %2115 = vperm.xlu0 %2114, %v372
        %v2116 = vpop.permute.xlu0 %2115
        %2118 = vset.pattern.permute.xlu0 1
        %2119 = vperm.xlu0 %2118, %v373
        %v2120 = vpop.permute.xlu0 %2119
        %2122 = vset.pattern.permute.xlu0 1
        %2123 = vperm.xlu0 %2122, %v374
        %v2124 = vpop.permute.xlu0 %2123
        %2126 = vset.pattern.permute.xlu0 1
        %2127 = vperm.xlu0 %2126, %v375
        %v2128 = vpop.permute.xlu0 %2127
        %2130 = vset.pattern.permute.xlu0 1
        %2131 = vperm.xlu0 %2130, %v376
        %v2132 = vpop.permute.xlu0 %2131
        %v2134 = vlaneseq
        %v2135 = vshrl.u32 %v2134, 7
        %v2136 = vsub.s32 1, %v2135
        %v2137 = vrot.slane %v377, %v2136
        %v2138 = vmul.f32 %v2104, %v2137
        %v2139 = vmul.f32 %v2108, %v2137
        %v2140 = vmul.f32 %v2112, %v2137
        %v2141 = vmul.f32 %v2116, %v2137
        %v2142 = vmul.f32 %v2120, %v2137
        %v2143 = vmul.f32 %v2124, %v2137
        %v2144 = vmul.f32 %v2128, %v2137
        %v2145 = vmul.f32 %v2132, %v2137
        %v2146 = vadd.f32 %v2094, %v2138
        %v2147 = vadd.f32 %v2095, %v2139
        %v2148 = vadd.f32 %v2096, %v2140
        %v2149 = vadd.f32 %v2097, %v2141
        %v2150 = vadd.f32 %v2098, %v2142
        %v2151 = vadd.f32 %v2099, %v2143
        %v2152 = vadd.f32 %v2100, %v2144
        %v2153 = vadd.f32 %v2101, %v2145
        %2155 = vset.pattern.permute.xlu0 0
        %2156 = vperm.xlu0 %2155, %v497
        %v2157 = vpop.permute.xlu0 %2156
        %2160 = vset.pattern.permute.xlu0 0
        %2161 = vperm.xlu0 %2160, %v601
        %v2162 = vpop.permute.xlu0 %2161
        %2165 = vset.pattern.permute.xlu0 0
        %2166 = vperm.xlu0 %2165, %v705
        %v2167 = vpop.permute.xlu0 %2166
        %2170 = vset.pattern.permute.xlu0 0
        %2171 = vperm.xlu0 %2170, %v809
        %v2172 = vpop.permute.xlu0 %2171
        %2175 = vset.pattern.permute.xlu0 0
        %2176 = vperm.xlu0 %2175, %v913
        %v2177 = vpop.permute.xlu0 %2176
        %2180 = vset.pattern.permute.xlu0 0
        %2181 = vperm.xlu0 %2180, %v1017
        %v2182 = vpop.permute.xlu0 %2181
        %2185 = vset.pattern.permute.xlu0 0
        %2186 = vperm.xlu0 %2185, %v1121
        %v2187 = vpop.permute.xlu0 %2186
        %2190 = vset.pattern.permute.xlu0 0
        %2191 = vperm.xlu0 %2190, %v1225
        %v2192 = vpop.permute.xlu0 %2191
        %v2194 = vlaneseq
        %v2195 = vshrl.u32 %v2194, 7
        %v2196 = vsub.s32 2, %v2195
        %v2197 = vrot.slane %v377, %v2196
        %v2198 = vmul.f32 %v2157, %v2197
        %v2199 = vmul.f32 %v2162, %v2197
        %v2200 = vmul.f32 %v2167, %v2197
        %v2201 = vmul.f32 %v2172, %v2197
        %v2202 = vmul.f32 %v2177, %v2197
        %v2203 = vmul.f32 %v2182, %v2197
        %v2204 = vmul.f32 %v2187, %v2197
        %v2205 = vmul.f32 %v2192, %v2197
        %v2206 = vadd.f32 %v2146, %v2198
        %v2207 = vadd.f32 %v2147, %v2199
        %v2208 = vadd.f32 %v2148, %v2200
        %v2209 = vadd.f32 %v2149, %v2201
        %v2210 = vadd.f32 %v2150, %v2202
        %v2211 = vadd.f32 %v2151, %v2203
        %v2212 = vadd.f32 %v2152, %v2204
        %v2213 = vadd.f32 %v2153, %v2205
        %2215 = vset.pattern.permute.xlu0 0
        %2216 = vperm.xlu0 %2215, %v1328
        %v2217 = vpop.permute.xlu0 %2216
        %2220 = vset.pattern.permute.xlu0 0
        %2221 = vperm.xlu0 %2220, %v1431
        %v2222 = vpop.permute.xlu0 %2221
        %2225 = vset.pattern.permute.xlu0 0
        %2226 = vperm.xlu0 %2225, %v1534
        %v2227 = vpop.permute.xlu0 %2226
        %2230 = vset.pattern.permute.xlu0 0
        %2231 = vperm.xlu0 %2230, %v1637
        %v2232 = vpop.permute.xlu0 %2231
        %2235 = vset.pattern.permute.xlu0 0
        %2236 = vperm.xlu0 %2235, %v1740
        %v2237 = vpop.permute.xlu0 %2236
        %2240 = vset.pattern.permute.xlu0 0
        %2241 = vperm.xlu0 %2240, %v1843
        %v2242 = vpop.permute.xlu0 %2241
        %2245 = vset.pattern.permute.xlu0 0
        %2246 = vperm.xlu0 %2245, %v1946
        %v2247 = vpop.permute.xlu0 %2246
        %2250 = vset.pattern.permute.xlu0 0
        %2251 = vperm.xlu0 %2250, %v2049
        %v2252 = vpop.permute.xlu0 %2251
        %v2254 = vlaneseq
        %v2255 = vshrl.u32 %v2254, 7
        %v2256 = vsub.s32 3, %v2255
        %v2257 = vrot.slane %v377, %v2256
        %v2258 = vmul.f32 %v2217, %v2257
        %v2259 = vmul.f32 %v2222, %v2257
        %v2260 = vmul.f32 %v2227, %v2257
        %v2261 = vmul.f32 %v2232, %v2257
        %v2262 = vmul.f32 %v2237, %v2257
        %v2263 = vmul.f32 %v2242, %v2257
        %v2264 = vmul.f32 %v2247, %v2257
        %v2265 = vmul.f32 %v2252, %v2257
        %v2266 = vadd.f32 %v2206, %v2258
        %v2267 = vadd.f32 %v2207, %v2259
        %v2268 = vadd.f32 %v2208, %v2260
        %v2269 = vadd.f32 %v2209, %v2261
        %v2270 = vadd.f32 %v2210, %v2262
        %v2271 = vadd.f32 %v2211, %v2263
        %v2272 = vadd.f32 %v2212, %v2264
        %v2273 = vadd.f32 %v2213, %v2265
        %v2274 = vld [vmem:[%s3] sm:$0x1]
        %v2276 = vlaneseq
        %v2277 = vshrl.u32 %v2276, 7
        %v2278 = vsub.s32 0, %v2277
        %v2279 = vrot.slane %v2274, %v2278
        %v2281 = vadd.f32 %v2266, %v2279
        %v2282 = vadd.f32 %v2267, %v2279
        %v2283 = vadd.f32 %v2268, %v2279
        %v2284 = vadd.f32 %v2269, %v2279
        %v2285 = vadd.f32 %v2270, %v2279
        %v2286 = vadd.f32 %v2271, %v2279
        %v2287 = vadd.f32 %v2272, %v2279
        %v2288 = vadd.f32 %v2273, %v2279
        %v2289 = vmax.f32 %v2281, 0.0
        %v2290 = vmax.f32 %v2282, 0.0
        %v2291 = vmax.f32 %v2283, 0.0
        %v2292 = vmax.f32 %v2284, 0.0
        %v2293 = vmax.f32 %v2285, 0.0
        %v2294 = vmax.f32 %v2286, 0.0
        %v2295 = vmax.f32 %v2287, 0.0
        %v2296 = vmax.f32 %v2288, 0.0
        %v2297 = vld [vmem:[%s4] sm:$0xff]
        %v2298 = vld [vmem:[%s4 + $0x8] sm:$0xff]
        %v2299 = vld [vmem:[%s4 + $0x10] sm:$0xff]
        %v2300 = vld [vmem:[%s4 + $0x18] sm:$0xff]
        %v2301 = vld [vmem:[%s4 + $0x20] sm:$0xff]
        %v2302 = vld [vmem:[%s4 + $0x28] sm:$0xff]
        %v2303 = vld [vmem:[%s4 + $0x30] sm:$0xff]
        %v2304 = vld [vmem:[%s4 + $0x38] sm:$0xff]
        %v2305 = vld [vmem:[%s5] sm:$0x1]
        %v2307 = vlaneseq
        %v2308 = vshrl.u32 %v2307, 7
        %v2309 = vsub.s32 0, %v2308
        %v2310 = vrot.slane %v2305, %v2309
        %vm2312 = vcmask 523264
        %v2314 = vsel %vm2312, %v2289, 0
        %v2317 = vsel %vm2312, %v2290, 0
        %v2320 = vsel %vm2312, %v2291, 0
        %v2323 = vsel %vm2312, %v2292, 0
        %v2326 = vsel %vm2312, %v2293, 0
        %v2329 = vsel %vm2312, %v2294, 0
        %v2332 = vsel %vm2312, %v2295, 0
        %v2335 = vsel %vm2312, %v2296, 0
        %2337 = vmatprep.subr.mxu0 0.0
        %v2338 = vand.u32 %v2297, 4294901760
        %2339 = vmatpush1.msra.mxu0 %v2338
        %2340 = vmatprep.subr.mxu0 0.0
        %v2341 = vand.u32 %v2298, 4294901760
        %2342 = vmatpush1.msra.mxu0 %v2341
        %2343 = vmatprep.subr.mxu0 0.0
        %v2344 = vand.u32 %v2299, 4294901760
        %2345 = vmatpush1.msra.mxu0 %v2344
        %2346 = vmatprep.subr.mxu0 0.0
        %v2347 = vand.u32 %v2300, 4294901760
        %2348 = vmatpush1.msra.mxu0 %v2347
        %2349 = vmatprep.subr.mxu0 0.0
        %v2350 = vand.u32 %v2301, 4294901760
        %2351 = vmatpush1.msra.mxu0 %v2350
        %2352 = vmatprep.subr.mxu0 0.0
        %v2353 = vand.u32 %v2302, 4294901760
        %2354 = vmatpush1.msra.mxu0 %v2353
        %2355 = vmatprep.subr.mxu0 0.0
        %v2356 = vand.u32 %v2303, 4294901760
        %2357 = vmatpush1.msra.mxu0 %v2356
        %2358 = vmatprep.subr.mxu0 0.0
        %v2359 = vand.u32 %v2304, 4294901760
        %2360 = vmatpush1.msra.mxu0 %v2359
        %2361 = vmatprep.subr.mxu0 0.0
        %2362 = vmatpush1.msra.mxu0 0.0
        %2363 = vmatprep.subr.mxu0 0.0
        %2364 = vmatpush1.msra.mxu0 0.0
        %2365 = vmatprep.subr.mxu0 0.0
        %2366 = vmatpush1.msra.mxu0 0.0
        %2367 = vmatprep.subr.mxu0 0.0
        %2368 = vmatpush1.msra.mxu0 0.0
        %2369 = vmatprep.subr.mxu0 0.0
        %2370 = vmatpush1.msra.mxu0 0.0
        %2371 = vmatprep.subr.mxu0 0.0
        %2372 = vmatpush1.msra.mxu0 0.0
        %2373 = vmatprep.subr.mxu0 0.0
        %2374 = vmatpush1.msra.mxu0 0.0
        %2375 = vmatprep.subr.mxu0 0.0
        %2376 = vmatpush1.msra.mxu0 0.0
        %2377 = vmatprep.subr.mxu0 0.0
        %2378 = vmatpush1.msra.mxu0 0.0
        %2379 = vmatprep.subr.mxu0 0.0
        %2380 = vmatpush1.msra.mxu0 0.0
        %2381 = vmatprep.subr.mxu0 0.0
        %2382 = vmatpush1.msra.mxu0 0.0
        %2383 = vmatprep.subr.mxu0 0.0
        %2384 = vmatpush1.msra.mxu0 0.0
        %2385 = vmatprep.subr.mxu0 0.0
        %2386 = vmatpush1.msra.mxu0 0.0
        %2387 = vmatprep.subr.mxu0 0.0
        %2388 = vmatpush1.msra.mxu0 0.0
        %2389 = vmatprep.subr.mxu0 0.0
        %2390 = vmatpush1.msra.mxu0 0.0
        %2391 = vmatprep.subr.mxu0 0.0
        %2392 = vmatpush1.msra.mxu0 0.0
        %2393 = vmatprep.subr.mxu0 0.0
        %2394 = vmatpush1.msra.mxu0 0.0
        %2395 = vmatprep.subr.mxu0 0.0
        %2396 = vmatpush1.msra.mxu0 0.0
        %2397 = vmatprep.subr.mxu0 0.0
        %2398 = vmatpush1.msra.mxu0 0.0
        %2399 = vmatprep.subr.mxu0 0.0
        %2400 = vmatpush1.msra.mxu0 0.0
        %2401 = vmatprep.subr.mxu0 0.0
        %2402 = vmatpush1.msra.mxu0 0.0
        %2403 = vmatprep.subr.mxu0 0.0
        %2404 = vmatpush1.msra.mxu0 0.0
        %2405 = vmatprep.subr.mxu0 0.0
        %2406 = vmatpush1.msra.mxu0 0.0
        %2407 = vmatprep.subr.mxu0 0.0
        %2408 = vmatpush1.msra.mxu0 0.0
        %2409 = vmatprep.mubr.f32.mxu0 0.0
        %v2410 = vand.u32 %v2314, 4294901760
        %v2411 = vsub.f32 %v2314, %v2410
        %v2412 = vand.u32 %v2411, 4294901760
        %v2413 = vsub.f32 %v2411, %v2412
        %v2414 = vand.u32 %v2413, 4294901760
        %2415 = vmatmul.mubr.f32.gmra.mrb[0].mxu0 %v2414
        %v2416 = vpop.f32.mrb[0].mxu0
        %v2417 = vadd.f32 %v2310, %v2416
        %v2418 = vpop.f32.mrb[0].mxu0
        %2419 = vmatprep.mubr.f32.mxu0 0.0
        %v2420 = vand.u32 %v2317, 4294901760
        %v2421 = vsub.f32 %v2317, %v2420
        %v2422 = vand.u32 %v2421, 4294901760
        %v2423 = vsub.f32 %v2421, %v2422
        %v2424 = vand.u32 %v2423, 4294901760
        %2425 = vmatmul.mubr.f32.gmra.mrb[0].mxu0 %v2424
        %v2426 = vpop.f32.mrb[0].mxu0
        %v2427 = vadd.f32 %v2310, %v2426
        %v2428 = vpop.f32.mrb[0].mxu0
        %2429 = vmatprep.mubr.f32.mxu0 0.0
        %v2430 = vand.u32 %v2320, 4294901760
        %v2431 = vsub.f32 %v2320, %v2430
        %v2432 = vand.u32 %v2431, 4294901760
        %v2433 = vsub.f32 %v2431, %v2432
        %v2434 = vand.u32 %v2433, 4294901760
        %2435 = vmatmul.mubr.f32.gmra.mrb[0].mxu0 %v2434
        %v2436 = vpop.f32.mrb[0].mxu0
        %v2437 = vadd.f32 %v2310, %v2436
        %v2438 = vpop.f32.mrb[0].mxu0
        %2439 = vmatprep.mubr.f32.mxu0 0.0
        %v2440 = vand.u32 %v2323, 4294901760
        %v2441 = vsub.f32 %v2323, %v2440
        %v2442 = vand.u32 %v2441, 4294901760
        %v2443 = vsub.f32 %v2441, %v2442
        %v2444 = vand.u32 %v2443, 4294901760
        %2445 = vmatmul.mubr.f32.gmra.mrb[0].mxu0 %v2444
        %v2446 = vpop.f32.mrb[0].mxu0
        %v2447 = vadd.f32 %v2310, %v2446
        %v2448 = vpop.f32.mrb[0].mxu0
        %2449 = vmatprep.mubr.f32.mxu0 0.0
        %v2450 = vand.u32 %v2326, 4294901760
        %v2451 = vsub.f32 %v2326, %v2450
        %v2452 = vand.u32 %v2451, 4294901760
        %v2453 = vsub.f32 %v2451, %v2452
        %v2454 = vand.u32 %v2453, 4294901760
        %2455 = vmatmul.mubr.f32.gmra.mrb[0].mxu0 %v2454
        %v2456 = vpop.f32.mrb[0].mxu0
        %v2457 = vadd.f32 %v2310, %v2456
        %v2458 = vpop.f32.mrb[0].mxu0
        %2459 = vmatprep.mubr.f32.mxu0 0.0
        %v2460 = vand.u32 %v2329, 4294901760
        %v2461 = vsub.f32 %v2329, %v2460
        %v2462 = vand.u32 %v2461, 4294901760
        %v2463 = vsub.f32 %v2461, %v2462
        %v2464 = vand.u32 %v2463, 4294901760
        %2465 = vmatmul.mubr.f32.gmra.mrb[0].mxu0 %v2464
        %v2466 = vpop.f32.mrb[0].mxu0
        %v2467 = vadd.f32 %v2310, %v2466
        %v2468 = vpop.f32.mrb[0].mxu0
        %2469 = vmatprep.mubr.f32.mxu0 0.0
        %v2470 = vand.u32 %v2332, 4294901760
        %v2471 = vsub.f32 %v2332, %v2470
        %v2472 = vand.u32 %v2471, 4294901760
        %v2473 = vsub.f32 %v2471, %v2472
        %v2474 = vand.u32 %v2473, 4294901760
        %2475 = vmatmul.mubr.f32.gmra.mrb[0].mxu0 %v2474
        %v2476 = vpop.f32.mrb[0].mxu0
        %v2477 = vadd.f32 %v2310, %v2476
        %v2478 = vpop.f32.mrb[0].mxu0
        %2479 = vmatprep.mubr.f32.mxu0 0.0
        %v2480 = vand.u32 %v2335, 4294901760
        %v2481 = vsub.f32 %v2335, %v2480
        %v2482 = vand.u32 %v2481, 4294901760
        %v2483 = vsub.f32 %v2481, %v2482
        %v2484 = vand.u32 %v2483, 4294901760
        %2485 = vmatmul.mubr.f32.gmra.mrb[0].mxu0 %v2484
        %v2486 = vpop.f32.mrb[0].mxu0
        %v2487 = vadd.f32 %v2310, %v2486
        %v2488 = vpop.f32.mrb[0].mxu0
        %2489 = vdwg.mxu0
        %2490 = vmatprep.subr.mxu0 0.0
        %v2491 = vand.u32 %v2297, 4294901760
        %v2492 = vsub.f32 %v2297, %v2491
        %v2493 = vand.u32 %v2492, 4294901760
        %v2494 = vsub.f32 %v2492, %v2493
        %v2495 = vand.u32 %v2494, 4294901760
        %2496 = vmatpush1.msra.mxu0 %v2495
        %2497 = vmatprep.subr.mxu0 0.0
        %v2498 = vand.u32 %v2298, 4294901760
        %v2499 = vsub.f32 %v2298, %v2498
        %v2500 = vand.u32 %v2499, 4294901760
        %v2501 = vsub.f32 %v2499, %v2500
        %v2502 = vand.u32 %v2501, 4294901760
        %2503 = vmatpush1.msra.mxu0 %v2502
        %2504 = vmatprep.subr.mxu0 0.0
        %v2505 = vand.u32 %v2299, 4294901760
        %v2506 = vsub.f32 %v2299, %v2505
        %v2507 = vand.u32 %v2506, 4294901760
        %v2508 = vsub.f32 %v2506, %v2507
        %v2509 = vand.u32 %v2508, 4294901760
        %2510 = vmatpush1.msra.mxu0 %v2509
        %2511 = vmatprep.subr.mxu0 0.0
        %v2512 = vand.u32 %v2300, 4294901760
        %v2513 = vsub.f32 %v2300, %v2512
        %v2514 = vand.u32 %v2513, 4294901760
        %v2515 = vsub.f32 %v2513, %v2514
        %v2516 = vand.u32 %v2515, 4294901760
        %2517 = vmatpush1.msra.mxu0 %v2516
        %2518 = vmatprep.subr.mxu0 0.0
        %v2519 = vand.u32 %v2301, 4294901760
        %v2520 = vsub.f32 %v2301, %v2519
        %v2521 = vand.u32 %v2520, 4294901760
        %v2522 = vsub.f32 %v2520, %v2521
        %v2523 = vand.u32 %v2522, 4294901760
        %2524 = vmatpush1.msra.mxu0 %v2523
        %2525 = vmatprep.subr.mxu0 0.0
        %v2526 = vand.u32 %v2302, 4294901760
        %v2527 = vsub.f32 %v2302, %v2526
        %v2528 = vand.u32 %v2527, 4294901760
        %v2529 = vsub.f32 %v2527, %v2528
        %v2530 = vand.u32 %v2529, 4294901760
        %2531 = vmatpush1.msra.mxu0 %v2530
        %2532 = vmatprep.subr.mxu0 0.0
        %v2533 = vand.u32 %v2303, 4294901760
        %v2534 = vsub.f32 %v2303, %v2533
        %v2535 = vand.u32 %v2534, 4294901760
        %v2536 = vsub.f32 %v2534, %v2535
        %v2537 = vand.u32 %v2536, 4294901760
        %2538 = vmatpush1.msra.mxu0 %v2537
        %2539 = vmatprep.subr.mxu0 0.0
        %v2540 = vand.u32 %v2304, 4294901760
        %v2541 = vsub.f32 %v2304, %v2540
        %v2542 = vand.u32 %v2541, 4294901760
        %v2543 = vsub.f32 %v2541, %v2542
        %v2544 = vand.u32 %v2543, 4294901760
        %2545 = vmatpush1.msra.mxu0 %v2544
        %2546 = vmatprep.subr.mxu0 0.0
        %2547 = vmatpush1.msra.mxu0 0.0
        %2548 = vmatprep.subr.mxu0 0.0
        %2549 = vmatpush1.msra.mxu0 0.0
        %2550 = vmatprep.subr.mxu0 0.0
        %2551 = vmatpush1.msra.mxu0 0.0
        %2552 = vmatprep.subr.mxu0 0.0
        %2553 = vmatpush1.msra.mxu0 0.0
        %2554 = vmatprep.subr.mxu0 0.0
        %2555 = vmatpush1.msra.mxu0 0.0
        %2556 = vmatprep.subr.mxu0 0.0
        %2557 = vmatpush1.msra.mxu0 0.0
        %2558 = vmatprep.subr.mxu0 0.0
        %2559 = vmatpush1.msra.mxu0 0.0
        %2560 = vmatprep.subr.mxu0 0.0
        %2561 = vmatpush1.msra.mxu0 0.0
        %2562 = vmatprep.subr.mxu0 0.0
        %2563 = vmatpush1.msra.mxu0 0.0
        %2564 = vmatprep.subr.mxu0 0.0
        %2565 = vmatpush1.msra.mxu0 0.0
        %2566 = vmatprep.subr.mxu0 0.0
        %2567 = vmatpush1.msra.mxu0 0.0
        %2568 = vmatprep.subr.mxu0 0.0
        %2569 = vmatpush1.msra.mxu0 0.0
        %2570 = vmatprep.subr.mxu0 0.0
        %2571 = vmatpush1.msra.mxu0 0.0
        %2572 = vmatprep.subr.mxu0 0.0
        %2573 = vmatpush1.msra.mxu0 0.0
        %2574 = vmatprep.subr.mxu0 0.0
        %2575 = vmatpush1.msra.mxu0 0.0
        %2576 = vmatprep.subr.mxu0 0.0
        %2577 = vmatpush1.msra.mxu0 0.0
        %2578 = vmatprep.subr.mxu0 0.0
        %2579 = vmatpush1.msra.mxu0 0.0
        %2580 = vmatprep.subr.mxu0 0.0
        %2581 = vmatpush1.msra.mxu0 0.0
        %2582 = vmatprep.subr.mxu0 0.0
        %2583 = vmatpush1.msra.mxu0 0.0
        %2584 = vmatprep.subr.mxu0 0.0
        %2585 = vmatpush1.msra.mxu0 0.0
        %2586 = vmatprep.subr.mxu0 0.0
        %2587 = vmatpush1.msra.mxu0 0.0
        %2588 = vmatprep.subr.mxu0 0.0
        %2589 = vmatpush1.msra.mxu0 0.0
        %2590 = vmatprep.subr.mxu0 0.0
        %2591 = vmatpush1.msra.mxu0 0.0
        %2592 = vmatprep.subr.mxu0 0.0
        %2593 = vmatpush1.msra.mxu0 0.0
        %2594 = vmatprep.mubr.f32.mxu0 0.0
        %v2595 = vand.u32 %v2314, 4294901760
        %2596 = vmatmul.mubr.f32.gmra.mrb[0].mxu0 %v2595
        %v2597 = vpop.f32.mrb[0].mxu0
        %v2598 = vadd.f32 %v2417, %v2597
        %v2599 = vpop.f32.mrb[0].mxu0
        %2600 = vmatprep.mubr.f32.mxu0 0.0
        %v2601 = vand.u32 %v2317, 4294901760
        %2602 = vmatmul.mubr.f32.gmra.mrb[0].mxu0 %v2601
        %v2603 = vpop.f32.mrb[0].mxu0
        %v2604 = vadd.f32 %v2427, %v2603
        %v2605 = vpop.f32.mrb[0].mxu0
        %2606 = vmatprep.mubr.f32.mxu0 0.0
        %v2607 = vand.u32 %v2320, 4294901760
        %2608 = vmatmul.mubr.f32.gmra.mrb[0].mxu0 %v2607
        %v2609 = vpop.f32.mrb[0].mxu0
        %v2610 = vadd.f32 %v2437, %v2609
        %v2611 = vpop.f32.mrb[0].mxu0
        %2612 = vmatprep.mubr.f32.mxu0 0.0
        %v2613 = vand.u32 %v2323, 4294901760
        %2614 = vmatmul.mubr.f32.gmra.mrb[0].mxu0 %v2613
        %v2615 = vpop.f32.mrb[0].mxu0
        %v2616 = vadd.f32 %v2447, %v2615
        %v2617 = vpop.f32.mrb[0].mxu0
        %2618 = vmatprep.mubr.f32.mxu0 0.0
        %v2619 = vand.u32 %v2326, 4294901760
        %2620 = vmatmul.mubr.f32.gmra.mrb[0].mxu0 %v2619
        %v2621 = vpop.f32.mrb[0].mxu0
        %v2622 = vadd.f32 %v2457, %v2621
        %v2623 = vpop.f32.mrb[0].mxu0
        %2624 = vmatprep.mubr.f32.mxu0 0.0
        %v2625 = vand.u32 %v2329, 4294901760
        %2626 = vmatmul.mubr.f32.gmra.mrb[0].mxu0 %v2625
        %v2627 = vpop.f32.mrb[0].mxu0
        %v2628 = vadd.f32 %v2467, %v2627
        %v2629 = vpop.f32.mrb[0].mxu0
        %2630 = vmatprep.mubr.f32.mxu0 0.0
        %v2631 = vand.u32 %v2332, 4294901760
        %2632 = vmatmul.mubr.f32.gmra.mrb[0].mxu0 %v2631
        %v2633 = vpop.f32.mrb[0].mxu0
        %v2634 = vadd.f32 %v2477, %v2633
        %v2635 = vpop.f32.mrb[0].mxu0
        %2636 = vmatprep.mubr.f32.mxu0 0.0
        %v2637 = vand.u32 %v2335, 4294901760
        %2638 = vmatmul.mubr.f32.gmra.mrb[0].mxu0 %v2637
        %v2639 = vpop.f32.mrb[0].mxu0
        %v2640 = vadd.f32 %v2487, %v2639
        %v2641 = vpop.f32.mrb[0].mxu0
        %2642 = vdwg.mxu0
        %2643 = vmatprep.subr.mxu0 0.0
        %v2644 = vand.u32 %v2297, 4294901760
        %v2645 = vsub.f32 %v2297, %v2644
        %2646 = vmatpush1.msra.mxu0 %v2645
        %2647 = vmatprep.subr.mxu0 0.0
        %v2648 = vand.u32 %v2298, 4294901760
        %v2649 = vsub.f32 %v2298, %v2648
        %2650 = vmatpush1.msra.mxu0 %v2649
        %2651 = vmatprep.subr.mxu0 0.0
        %v2652 = vand.u32 %v2299, 4294901760
        %v2653 = vsub.f32 %v2299, %v2652
        %2654 = vmatpush1.msra.mxu0 %v2653
        %2655 = vmatprep.subr.mxu0 0.0
        %v2656 = vand.u32 %v2300, 4294901760
        %v2657 = vsub.f32 %v2300, %v2656
        %2658 = vmatpush1.msra.mxu0 %v2657
        %2659 = vmatprep.subr.mxu0 0.0
        %v2660 = vand.u32 %v2301, 4294901760
        %v2661 = vsub.f32 %v2301, %v2660
        %2662 = vmatpush1.msra.mxu0 %v2661
        %2663 = vmatprep.subr.mxu0 0.0
        %v2664 = vand.u32 %v2302, 4294901760
        %v2665 = vsub.f32 %v2302, %v2664
        %2666 = vmatpush1.msra.mxu0 %v2665
        %2667 = vmatprep.subr.mxu0 0.0
        %v2668 = vand.u32 %v2303, 4294901760
        %v2669 = vsub.f32 %v2303, %v2668
        %2670 = vmatpush1.msra.mxu0 %v2669
        %2671 = vmatprep.subr.mxu0 0.0
        %v2672 = vand.u32 %v2304, 4294901760
        %v2673 = vsub.f32 %v2304, %v2672
        %2674 = vmatpush1.msra.mxu0 %v2673
        %2675 = vmatprep.subr.mxu0 0.0
        %2676 = vmatpush1.msra.mxu0 0.0
        %2677 = vmatprep.subr.mxu0 0.0
        %2678 = vmatpush1.msra.mxu0 0.0
        %2679 = vmatprep.subr.mxu0 0.0
        %2680 = vmatpush1.msra.mxu0 0.0
        %2681 = vmatprep.subr.mxu0 0.0
        %2682 = vmatpush1.msra.mxu0 0.0
        %2683 = vmatprep.subr.mxu0 0.0
        %2684 = vmatpush1.msra.mxu0 0.0
        %2685 = vmatprep.subr.mxu0 0.0
        %2686 = vmatpush1.msra.mxu0 0.0
        %2687 = vmatprep.subr.mxu0 0.0
        %2688 = vmatpush1.msra.mxu0 0.0
        %2689 = vmatprep.subr.mxu0 0.0
        %2690 = vmatpush1.msra.mxu0 0.0
        %2691 = vmatprep.subr.mxu0 0.0
        %2692 = vmatpush1.msra.mxu0 0.0
        %2693 = vmatprep.subr.mxu0 0.0
        %2694 = vmatpush1.msra.mxu0 0.0
        %2695 = vmatprep.subr.mxu0 0.0
        %2696 = vmatpush1.msra.mxu0 0.0
        %2697 = vmatprep.subr.mxu0 0.0
        %2698 = vmatpush1.msra.mxu0 0.0
        %2699 = vmatprep.subr.mxu0 0.0
        %2700 = vmatpush1.msra.mxu0 0.0
        %2701 = vmatprep.subr.mxu0 0.0
        %2702 = vmatpush1.msra.mxu0 0.0
        %2703 = vmatprep.subr.mxu0 0.0
        %2704 = vmatpush1.msra.mxu0 0.0
        %2705 = vmatprep.subr.mxu0 0.0
        %2706 = vmatpush1.msra.mxu0 0.0
        %2707 = vmatprep.subr.mxu0 0.0
        %2708 = vmatpush1.msra.mxu0 0.0
        %2709 = vmatprep.subr.mxu0 0.0
        %2710 = vmatpush1.msra.mxu0 0.0
        %2711 = vmatprep.subr.mxu0 0.0
        %2712 = vmatpush1.msra.mxu0 0.0
        %2713 = vmatprep.subr.mxu0 0.0
        %2714 = vmatpush1.msra.mxu0 0.0
        %2715 = vmatprep.subr.mxu0 0.0
        %2716 = vmatpush1.msra.mxu0 0.0
        %2717 = vmatprep.subr.mxu0 0.0
        %2718 = vmatpush1.msra.mxu0 0.0
        %2719 = vmatprep.subr.mxu0 0.0
        %2720 = vmatpush1.msra.mxu0 0.0
        %2721 = vmatprep.subr.mxu0 0.0
        %2722 = vmatpush1.msra.mxu0 0.0
        %2723 = vmatprep.mubr.f32.mxu0 0.0
        %v2724 = vand.u32 %v2314, 4294901760
        %v2725 = vsub.f32 %v2314, %v2724
        %2726 = vmatmul.mubr.f32.gmra.mrb[0].mxu0 %v2725
        %v2727 = vpop.f32.mrb[0].mxu0
        %v2728 = vadd.f32 %v2598, %v2727
        %v2729 = vpop.f32.mrb[0].mxu0
        %2730 = vmatprep.mubr.f32.mxu0 0.0
        %v2731 = vand.u32 %v2317, 4294901760
        %v2732 = vsub.f32 %v2317, %v2731
        %2733 = vmatmul.mubr.f32.gmra.mrb[0].mxu0 %v2732
        %v2734 = vpop.f32.mrb[0].mxu0
        %v2735 = vadd.f32 %v2604, %v2734
        %v2736 = vpop.f32.mrb[0].mxu0
        %2737 = vmatprep.mubr.f32.mxu0 0.0
        %v2738 = vand.u32 %v2320, 4294901760
        %v2739 = vsub.f32 %v2320, %v2738
        %2740 = vmatmul.mubr.f32.gmra.mrb[0].mxu0 %v2739
        %v2741 = vpop.f32.mrb[0].mxu0
        %v2742 = vadd.f32 %v2610, %v2741
        %v2743 = vpop.f32.mrb[0].mxu0
        %2744 = vmatprep.mubr.f32.mxu0 0.0
        %v2745 = vand.u32 %v2323, 4294901760
        %v2746 = vsub.f32 %v2323, %v2745
        %2747 = vmatmul.mubr.f32.gmra.mrb[0].mxu0 %v2746
        %v2748 = vpop.f32.mrb[0].mxu0
        %v2749 = vadd.f32 %v2616, %v2748
        %v2750 = vpop.f32.mrb[0].mxu0
        %2751 = vmatprep.mubr.f32.mxu0 0.0
        %v2752 = vand.u32 %v2326, 4294901760
        %v2753 = vsub.f32 %v2326, %v2752
        %2754 = vmatmul.mubr.f32.gmra.mrb[0].mxu0 %v2753
        %v2755 = vpop.f32.mrb[0].mxu0
        %v2756 = vadd.f32 %v2622, %v2755
        %v2757 = vpop.f32.mrb[0].mxu0
        %2758 = vmatprep.mubr.f32.mxu0 0.0
        %v2759 = vand.u32 %v2329, 4294901760
        %v2760 = vsub.f32 %v2329, %v2759
        %2761 = vmatmul.mubr.f32.gmra.mrb[0].mxu0 %v2760
        %v2762 = vpop.f32.mrb[0].mxu0
        %v2763 = vadd.f32 %v2628, %v2762
        %v2764 = vpop.f32.mrb[0].mxu0
        %2765 = vmatprep.mubr.f32.mxu0 0.0
        %v2766 = vand.u32 %v2332, 4294901760
        %v2767 = vsub.f32 %v2332, %v2766
        %2768 = vmatmul.mubr.f32.gmra.mrb[0].mxu0 %v2767
        %v2769 = vpop.f32.mrb[0].mxu0
        %v2770 = vadd.f32 %v2634, %v2769
        %v2771 = vpop.f32.mrb[0].mxu0
        %2772 = vmatprep.mubr.f32.mxu0 0.0
        %v2773 = vand.u32 %v2335, 4294901760
        %v2774 = vsub.f32 %v2335, %v2773
        %2775 = vmatmul.mubr.f32.gmra.mrb[0].mxu0 %v2774
        %v2776 = vpop.f32.mrb[0].mxu0
        %v2777 = vadd.f32 %v2640, %v2776
        %v2778 = vpop.f32.mrb[0].mxu0
        %2779 = vdwg.mxu0
        %2780 = vmatprep.subr.mxu0 0.0
        %v2781 = vand.u32 %v2297, 4294901760
        %2782 = vmatpush1.msra.mxu0 %v2781
        %2783 = vmatprep.subr.mxu0 0.0
        %v2784 = vand.u32 %v2298, 4294901760
        %2785 = vmatpush1.msra.mxu0 %v2784
        %2786 = vmatprep.subr.mxu0 0.0
        %v2787 = vand.u32 %v2299, 4294901760
        %2788 = vmatpush1.msra.mxu0 %v2787
        %2789 = vmatprep.subr.mxu0 0.0
        %v2790 = vand.u32 %v2300, 4294901760
        %2791 = vmatpush1.msra.mxu0 %v2790
        %2792 = vmatprep.subr.mxu0 0.0
        %v2793 = vand.u32 %v2301, 4294901760
        %2794 = vmatpush1.msra.mxu0 %v2793
        %2795 = vmatprep.subr.mxu0 0.0
        %v2796 = vand.u32 %v2302, 4294901760
        %2797 = vmatpush1.msra.mxu0 %v2796
        %2798 = vmatprep.subr.mxu0 0.0
        %v2799 = vand.u32 %v2303, 4294901760
        %2800 = vmatpush1.msra.mxu0 %v2799
        %2801 = vmatprep.subr.mxu0 0.0
        %v2802 = vand.u32 %v2304, 4294901760
        %2803 = vmatpush1.msra.mxu0 %v2802
        %2804 = vmatprep.subr.mxu0 0.0
        %2805 = vmatpush1.msra.mxu0 0.0
        %2806 = vmatprep.subr.mxu0 0.0
        %2807 = vmatpush1.msra.mxu0 0.0
        %2808 = vmatprep.subr.mxu0 0.0
        %2809 = vmatpush1.msra.mxu0 0.0
        %2810 = vmatprep.subr.mxu0 0.0
        %2811 = vmatpush1.msra.mxu0 0.0
        %2812 = vmatprep.subr.mxu0 0.0
        %2813 = vmatpush1.msra.mxu0 0.0
        %2814 = vmatprep.subr.mxu0 0.0
        %2815 = vmatpush1.msra.mxu0 0.0
        %2816 = vmatprep.subr.mxu0 0.0
        %2817 = vmatpush1.msra.mxu0 0.0
        %2818 = vmatprep.subr.mxu0 0.0
        %2819 = vmatpush1.msra.mxu0 0.0
        %2820 = vmatprep.subr.mxu0 0.0
        %2821 = vmatpush1.msra.mxu0 0.0
        %2822 = vmatprep.subr.mxu0 0.0
        %2823 = vmatpush1.msra.mxu0 0.0
        %2824 = vmatprep.subr.mxu0 0.0
        %2825 = vmatpush1.msra.mxu0 0.0
        %2826 = vmatprep.subr.mxu0 0.0
        %2827 = vmatpush1.msra.mxu0 0.0
        %2828 = vmatprep.subr.mxu0 0.0
        %2829 = vmatpush1.msra.mxu0 0.0
        %2830 = vmatprep.subr.mxu0 0.0
        %2831 = vmatpush1.msra.mxu0 0.0
        %2832 = vmatprep.subr.mxu0 0.0
        %2833 = vmatpush1.msra.mxu0 0.0
        %2834 = vmatprep.subr.mxu0 0.0
        %2835 = vmatpush1.msra.mxu0 0.0
        %2836 = vmatprep.subr.mxu0 0.0
        %2837 = vmatpush1.msra.mxu0 0.0
        %2838 = vmatprep.subr.mxu0 0.0
        %2839 = vmatpush1.msra.mxu0 0.0
        %2840 = vmatprep.subr.mxu0 0.0
        %2841 = vmatpush1.msra.mxu0 0.0
        %2842 = vmatprep.subr.mxu0 0.0
        %2843 = vmatpush1.msra.mxu0 0.0
        %2844 = vmatprep.subr.mxu0 0.0
        %2845 = vmatpush1.msra.mxu0 0.0
        %2846 = vmatprep.subr.mxu0 0.0
        %2847 = vmatpush1.msra.mxu0 0.0
        %2848 = vmatprep.subr.mxu0 0.0
        %2849 = vmatpush1.msra.mxu0 0.0
        %2850 = vmatprep.subr.mxu0 0.0
        %2851 = vmatpush1.msra.mxu0 0.0
        %2852 = vmatprep.mubr.f32.mxu0 0.0
        %v2853 = vand.u32 %v2314, 4294901760
        %v2854 = vsub.f32 %v2314, %v2853
        %v2855 = vand.u32 %v2854, 4294901760
        %2856 = vmatmul.mubr.f32.gmra.mrb[0].mxu0 %v2855
        %v2857 = vpop.f32.mrb[0].mxu0
        %v2858 = vadd.f32 %v2728, %v2857
        %v2859 = vpop.f32.mrb[0].mxu0
        %2860 = vmatprep.mubr.f32.mxu0 0.0
        %v2861 = vand.u32 %v2317, 4294901760
        %v2862 = vsub.f32 %v2317, %v2861
        %v2863 = vand.u32 %v2862, 4294901760
        %2864 = vmatmul.mubr.f32.gmra.mrb[0].mxu0 %v2863
        %v2865 = vpop.f32.mrb[0].mxu0
        %v2866 = vadd.f32 %v2735, %v2865
        %v2867 = vpop.f32.mrb[0].mxu0
        %2868 = vmatprep.mubr.f32.mxu0 0.0
        %v2869 = vand.u32 %v2320, 4294901760
        %v2870 = vsub.f32 %v2320, %v2869
        %v2871 = vand.u32 %v2870, 4294901760
        %2872 = vmatmul.mubr.f32.gmra.mrb[0].mxu0 %v2871
        %v2873 = vpop.f32.mrb[0].mxu0
        %v2874 = vadd.f32 %v2742, %v2873
        %v2875 = vpop.f32.mrb[0].mxu0
        %2876 = vmatprep.mubr.f32.mxu0 0.0
        %v2877 = vand.u32 %v2323, 4294901760
        %v2878 = vsub.f32 %v2323, %v2877
        %v2879 = vand.u32 %v2878, 4294901760
        %2880 = vmatmul.mubr.f32.gmra.mrb[0].mxu0 %v2879
        %v2881 = vpop.f32.mrb[0].mxu0
        %v2882 = vadd.f32 %v2749, %v2881
        %v2883 = vpop.f32.mrb[0].mxu0
        %2884 = vmatprep.mubr.f32.mxu0 0.0
        %v2885 = vand.u32 %v2326, 4294901760
        %v2886 = vsub.f32 %v2326, %v2885
        %v2887 = vand.u32 %v2886, 4294901760
        %2888 = vmatmul.mubr.f32.gmra.mrb[0].mxu0 %v2887
        %v2889 = vpop.f32.mrb[0].mxu0
        %v2890 = vadd.f32 %v2756, %v2889
        %v2891 = vpop.f32.mrb[0].mxu0
        %2892 = vmatprep.mubr.f32.mxu0 0.0
        %v2893 = vand.u32 %v2329, 4294901760
        %v2894 = vsub.f32 %v2329, %v2893
        %v2895 = vand.u32 %v2894, 4294901760
        %2896 = vmatmul.mubr.f32.gmra.mrb[0].mxu0 %v2895
        %v2897 = vpop.f32.mrb[0].mxu0
        %v2898 = vadd.f32 %v2763, %v2897
        %v2899 = vpop.f32.mrb[0].mxu0
        %2900 = vmatprep.mubr.f32.mxu0 0.0
        %v2901 = vand.u32 %v2332, 4294901760
        %v2902 = vsub.f32 %v2332, %v2901
        %v2903 = vand.u32 %v2902, 4294901760
        %2904 = vmatmul.mubr.f32.gmra.mrb[0].mxu0 %v2903
        %v2905 = vpop.f32.mrb[0].mxu0
        %v2906 = vadd.f32 %v2770, %v2905
        %v2907 = vpop.f32.mrb[0].mxu0
        %2908 = vmatprep.mubr.f32.mxu0 0.0
        %v2909 = vand.u32 %v2335, 4294901760
        %v2910 = vsub.f32 %v2335, %v2909
        %v2911 = vand.u32 %v2910, 4294901760
        %2912 = vmatmul.mubr.f32.gmra.mrb[0].mxu0 %v2911
        %v2913 = vpop.f32.mrb[0].mxu0
        %v2914 = vadd.f32 %v2777, %v2913
        %v2915 = vpop.f32.mrb[0].mxu0
        %2916 = vdwg.mxu0
        %2917 = vmatprep.subr.mxu0 0.0
        %v2918 = vand.u32 %v2297, 4294901760
        %v2919 = vsub.f32 %v2297, %v2918
        %v2920 = vand.u32 %v2919, 4294901760
        %2921 = vmatpush1.msra.mxu0 %v2920
        %2922 = vmatprep.subr.mxu0 0.0
        %v2923 = vand.u32 %v2298, 4294901760
        %v2924 = vsub.f32 %v2298, %v2923
        %v2925 = vand.u32 %v2924, 4294901760
        %2926 = vmatpush1.msra.mxu0 %v2925
        %2927 = vmatprep.subr.mxu0 0.0
        %v2928 = vand.u32 %v2299, 4294901760
        %v2929 = vsub.f32 %v2299, %v2928
        %v2930 = vand.u32 %v2929, 4294901760
        %2931 = vmatpush1.msra.mxu0 %v2930
        %2932 = vmatprep.subr.mxu0 0.0
        %v2933 = vand.u32 %v2300, 4294901760
        %v2934 = vsub.f32 %v2300, %v2933
        %v2935 = vand.u32 %v2934, 4294901760
        %2936 = vmatpush1.msra.mxu0 %v2935
        %2937 = vmatprep.subr.mxu0 0.0
        %v2938 = vand.u32 %v2301, 4294901760
        %v2939 = vsub.f32 %v2301, %v2938
        %v2940 = vand.u32 %v2939, 4294901760
        %2941 = vmatpush1.msra.mxu0 %v2940
        %2942 = vmatprep.subr.mxu0 0.0
        %v2943 = vand.u32 %v2302, 4294901760
        %v2944 = vsub.f32 %v2302, %v2943
        %v2945 = vand.u32 %v2944, 4294901760
        %2946 = vmatpush1.msra.mxu0 %v2945
        %2947 = vmatprep.subr.mxu0 0.0
        %v2948 = vand.u32 %v2303, 4294901760
        %v2949 = vsub.f32 %v2303, %v2948
        %v2950 = vand.u32 %v2949, 4294901760
        %2951 = vmatpush1.msra.mxu0 %v2950
        %2952 = vmatprep.subr.mxu0 0.0
        %v2953 = vand.u32 %v2304, 4294901760
        %v2954 = vsub.f32 %v2304, %v2953
        %v2955 = vand.u32 %v2954, 4294901760
        %2956 = vmatpush1.msra.mxu0 %v2955
        %2957 = vmatprep.subr.mxu0 0.0
        %2958 = vmatpush1.msra.mxu0 0.0
        %2959 = vmatprep.subr.mxu0 0.0
        %2960 = vmatpush1.msra.mxu0 0.0
        %2961 = vmatprep.subr.mxu0 0.0
        %2962 = vmatpush1.msra.mxu0 0.0
        %2963 = vmatprep.subr.mxu0 0.0
        %2964 = vmatpush1.msra.mxu0 0.0
        %2965 = vmatprep.subr.mxu0 0.0
        %2966 = vmatpush1.msra.mxu0 0.0
        %2967 = vmatprep.subr.mxu0 0.0
        %2968 = vmatpush1.msra.mxu0 0.0
        %2969 = vmatprep.subr.mxu0 0.0
        %2970 = vmatpush1.msra.mxu0 0.0
        %2971 = vmatprep.subr.mxu0 0.0
        %2972 = vmatpush1.msra.mxu0 0.0
        %2973 = vmatprep.subr.mxu0 0.0
        %2974 = vmatpush1.msra.mxu0 0.0
        %2975 = vmatprep.subr.mxu0 0.0
        %2976 = vmatpush1.msra.mxu0 0.0
        %2977 = vmatprep.subr.mxu0 0.0
        %2978 = vmatpush1.msra.mxu0 0.0
        %2979 = vmatprep.subr.mxu0 0.0
        %2980 = vmatpush1.msra.mxu0 0.0
        %2981 = vmatprep.subr.mxu0 0.0
        %2982 = vmatpush1.msra.mxu0 0.0
        %2983 = vmatprep.subr.mxu0 0.0
        %2984 = vmatpush1.msra.mxu0 0.0
        %2985 = vmatprep.subr.mxu0 0.0
        %2986 = vmatpush1.msra.mxu0 0.0
        %2987 = vmatprep.subr.mxu0 0.0
        %2988 = vmatpush1.msra.mxu0 0.0
        %2989 = vmatprep.subr.mxu0 0.0
        %2990 = vmatpush1.msra.mxu0 0.0
        %2991 = vmatprep.subr.mxu0 0.0
        %2992 = vmatpush1.msra.mxu0 0.0
        %2993 = vmatprep.subr.mxu0 0.0
        %2994 = vmatpush1.msra.mxu0 0.0
        %2995 = vmatprep.subr.mxu0 0.0
        %2996 = vmatpush1.msra.mxu0 0.0
        %2997 = vmatprep.subr.mxu0 0.0
        %2998 = vmatpush1.msra.mxu0 0.0
        %2999 = vmatprep.subr.mxu0 0.0
        %3000 = vmatpush1.msra.mxu0 0.0
        %3001 = vmatprep.subr.mxu0 0.0
        %3002 = vmatpush1.msra.mxu0 0.0
        %3003 = vmatprep.subr.mxu0 0.0
        %3004 = vmatpush1.msra.mxu0 0.0
        %3005 = vmatprep.mubr.f32.mxu0 0.0
        %v3006 = vand.u32 %v2314, 4294901760
        %3007 = vmatmul.mubr.f32.gmra.mrb[0].mxu0 %v3006
        %v3008 = vpop.f32.mrb[0].mxu0
        %v3009 = vadd.f32 %v2858, %v3008
        %v3010 = vpop.f32.mrb[0].mxu0
        %3011 = vmatprep.mubr.f32.mxu0 0.0
        %v3012 = vand.u32 %v2317, 4294901760
        %3013 = vmatmul.mubr.f32.gmra.mrb[0].mxu0 %v3012
        %v3014 = vpop.f32.mrb[0].mxu0
        %v3015 = vadd.f32 %v2866, %v3014
        %v3016 = vpop.f32.mrb[0].mxu0
        %3017 = vmatprep.mubr.f32.mxu0 0.0
        %v3018 = vand.u32 %v2320, 4294901760
        %3019 = vmatmul.mubr.f32.gmra.mrb[0].mxu0 %v3018
        %v3020 = vpop.f32.mrb[0].mxu0
        %v3021 = vadd.f32 %v2874, %v3020
        %v3022 = vpop.f32.mrb[0].mxu0
        %3023 = vmatprep.mubr.f32.mxu0 0.0
        %v3024 = vand.u32 %v2323, 4294901760
        %3025 = vmatmul.mubr.f32.gmra.mrb[0].mxu0 %v3024
        %v3026 = vpop.f32.mrb[0].mxu0
        %v3027 = vadd.f32 %v2882, %v3026
        %v3028 = vpop.f32.mrb[0].mxu0
        %3029 = vmatprep.mubr.f32.mxu0 0.0
        %v3030 = vand.u32 %v2326, 4294901760
        %3031 = vmatmul.mubr.f32.gmra.mrb[0].mxu0 %v3030
        %v3032 = vpop.f32.mrb[0].mxu0
        %v3033 = vadd.f32 %v2890, %v3032
        %v3034 = vpop.f32.mrb[0].mxu0
        %3035 = vmatprep.mubr.f32.mxu0 0.0
        %v3036 = vand.u32 %v2329, 4294901760
        %3037 = vmatmul.mubr.f32.gmra.mrb[0].mxu0 %v3036
        %v3038 = vpop.f32.mrb[0].mxu0
        %v3039 = vadd.f32 %v2898, %v3038
        %v3040 = vpop.f32.mrb[0].mxu0
        %3041 = vmatprep.mubr.f32.mxu0 0.0
        %v3042 = vand.u32 %v2332, 4294901760
        %3043 = vmatmul.mubr.f32.gmra.mrb[0].mxu0 %v3042
        %v3044 = vpop.f32.mrb[0].mxu0
        %v3045 = vadd.f32 %v2906, %v3044
        %v3046 = vpop.f32.mrb[0].mxu0
        %3047 = vmatprep.mubr.f32.mxu0 0.0
        %v3048 = vand.u32 %v2335, 4294901760
        %3049 = vmatmul.mubr.f32.gmra.mrb[0].mxu0 %v3048
        %v3050 = vpop.f32.mrb[0].mxu0
        %v3051 = vadd.f32 %v2914, %v3050
        %v3052 = vpop.f32.mrb[0].mxu0
        %3053 = vdwg.mxu0
        %3054 = vmatprep.subr.mxu0 0.0
        %v3055 = vand.u32 %v2297, 4294901760
        %3056 = vmatpush1.msra.mxu0 %v3055
        %3057 = vmatprep.subr.mxu0 0.0
        %v3058 = vand.u32 %v2298, 4294901760
        %3059 = vmatpush1.msra.mxu0 %v3058
        %3060 = vmatprep.subr.mxu0 0.0
        %v3061 = vand.u32 %v2299, 4294901760
        %3062 = vmatpush1.msra.mxu0 %v3061
        %3063 = vmatprep.subr.mxu0 0.0
        %v3064 = vand.u32 %v2300, 4294901760
        %3065 = vmatpush1.msra.mxu0 %v3064
        %3066 = vmatprep.subr.mxu0 0.0
        %v3067 = vand.u32 %v2301, 4294901760
        %3068 = vmatpush1.msra.mxu0 %v3067
        %3069 = vmatprep.subr.mxu0 0.0
        %v3070 = vand.u32 %v2302, 4294901760
        %3071 = vmatpush1.msra.mxu0 %v3070
        %3072 = vmatprep.subr.mxu0 0.0
        %v3073 = vand.u32 %v2303, 4294901760
        %3074 = vmatpush1.msra.mxu0 %v3073
        %3075 = vmatprep.subr.mxu0 0.0
        %v3076 = vand.u32 %v2304, 4294901760
        %3077 = vmatpush1.msra.mxu0 %v3076
        %3078 = vmatprep.subr.mxu0 0.0
        %3079 = vmatpush1.msra.mxu0 0.0
        %3080 = vmatprep.subr.mxu0 0.0
        %3081 = vmatpush1.msra.mxu0 0.0
        %3082 = vmatprep.subr.mxu0 0.0
        %3083 = vmatpush1.msra.mxu0 0.0
        %3084 = vmatprep.subr.mxu0 0.0
        %3085 = vmatpush1.msra.mxu0 0.0
        %3086 = vmatprep.subr.mxu0 0.0
        %3087 = vmatpush1.msra.mxu0 0.0
        %3088 = vmatprep.subr.mxu0 0.0
        %3089 = vmatpush1.msra.mxu0 0.0
        %3090 = vmatprep.subr.mxu0 0.0
        %3091 = vmatpush1.msra.mxu0 0.0
        %3092 = vmatprep.subr.mxu0 0.0
        %3093 = vmatpush1.msra.mxu0 0.0
        %3094 = vmatprep.subr.mxu0 0.0
        %3095 = vmatpush1.msra.mxu0 0.0
        %3096 = vmatprep.subr.mxu0 0.0
        %3097 = vmatpush1.msra.mxu0 0.0
        %3098 = vmatprep.subr.mxu0 0.0
        %3099 = vmatpush1.msra.mxu0 0.0
        %3100 = vmatprep.subr.mxu0 0.0
        %3101 = vmatpush1.msra.mxu0 0.0
        %3102 = vmatprep.subr.mxu0 0.0
        %3103 = vmatpush1.msra.mxu0 0.0
        %3104 = vmatprep.subr.mxu0 0.0
        %3105 = vmatpush1.msra.mxu0 0.0
        %3106 = vmatprep.subr.mxu0 0.0
        %3107 = vmatpush1.msra.mxu0 0.0
        %3108 = vmatprep.subr.mxu0 0.0
        %3109 = vmatpush1.msra.mxu0 0.0
        %3110 = vmatprep.subr.mxu0 0.0
        %3111 = vmatpush1.msra.mxu0 0.0
        %3112 = vmatprep.subr.mxu0 0.0
        %3113 = vmatpush1.msra.mxu0 0.0
        %3114 = vmatprep.subr.mxu0 0.0
        %3115 = vmatpush1.msra.mxu0 0.0
        %3116 = vmatprep.subr.mxu0 0.0
        %3117 = vmatpush1.msra.mxu0 0.0
        %3118 = vmatprep.subr.mxu0 0.0
        %3119 = vmatpush1.msra.mxu0 0.0
        %3120 = vmatprep.subr.mxu0 0.0
        %3121 = vmatpush1.msra.mxu0 0.0
        %3122 = vmatprep.subr.mxu0 0.0
        %3123 = vmatpush1.msra.mxu0 0.0
        %3124 = vmatprep.subr.mxu0 0.0
        %3125 = vmatpush1.msra.mxu0 0.0
        %3126 = vmatprep.mubr.f32.mxu0 0.0
        %v3127 = vand.u32 %v2314, 4294901760
        %3128 = vmatmul.mubr.f32.gmra.mrb[0].mxu0 %v3127
        %v3129 = vpop.f32.mrb[0].mxu0
        %v3130 = vadd.f32 %v3009, %v3129
        %v3131 = vpop.f32.mrb[0].mxu0
        %3132 = vmatprep.mubr.f32.mxu0 0.0
        %v3133 = vand.u32 %v2317, 4294901760
        %3134 = vmatmul.mubr.f32.gmra.mrb[0].mxu0 %v3133
        %v3135 = vpop.f32.mrb[0].mxu0
        %v3136 = vadd.f32 %v3015, %v3135
        %v3137 = vpop.f32.mrb[0].mxu0
        %3138 = vmatprep.mubr.f32.mxu0 0.0
        %v3139 = vand.u32 %v2320, 4294901760
        %3140 = vmatmul.mubr.f32.gmra.mrb[0].mxu0 %v3139
        %v3141 = vpop.f32.mrb[0].mxu0
        %v3142 = vadd.f32 %v3021, %v3141
        %v3143 = vpop.f32.mrb[0].mxu0
        %3144 = vmatprep.mubr.f32.mxu0 0.0
        %v3145 = vand.u32 %v2323, 4294901760
        %3146 = vmatmul.mubr.f32.gmra.mrb[0].mxu0 %v3145
        %v3147 = vpop.f32.mrb[0].mxu0
        %v3148 = vadd.f32 %v3027, %v3147
        %v3149 = vpop.f32.mrb[0].mxu0
        %3150 = vmatprep.mubr.f32.mxu0 0.0
        %v3151 = vand.u32 %v2326, 4294901760
        %3152 = vmatmul.mubr.f32.gmra.mrb[0].mxu0 %v3151
        %v3153 = vpop.f32.mrb[0].mxu0
        %v3154 = vadd.f32 %v3033, %v3153
        %v3155 = vpop.f32.mrb[0].mxu0
        %3156 = vmatprep.mubr.f32.mxu0 0.0
        %v3157 = vand.u32 %v2329, 4294901760
        %3158 = vmatmul.mubr.f32.gmra.mrb[0].mxu0 %v3157
        %v3159 = vpop.f32.mrb[0].mxu0
        %v3160 = vadd.f32 %v3039, %v3159
        %v3161 = vpop.f32.mrb[0].mxu0
        %3162 = vmatprep.mubr.f32.mxu0 0.0
        %v3163 = vand.u32 %v2332, 4294901760
        %3164 = vmatmul.mubr.f32.gmra.mrb[0].mxu0 %v3163
        %v3165 = vpop.f32.mrb[0].mxu0
        %v3166 = vadd.f32 %v3045, %v3165
        %v3167 = vpop.f32.mrb[0].mxu0
        %3168 = vmatprep.mubr.f32.mxu0 0.0
        %v3169 = vand.u32 %v2335, 4294901760
        %3170 = vmatmul.mubr.f32.gmra.mrb[0].mxu0 %v3169
        %v3171 = vpop.f32.mrb[0].mxu0
        %v3172 = vadd.f32 %v3051, %v3171
        %v3173 = vpop.f32.mrb[0].mxu0
        %3174 = vdwg.mxu0
        %v3175 = vmax.f32 %v3130, 0.0
        %v3176 = vmax.f32 %v3136, 0.0
        %v3177 = vmax.f32 %v3142, 0.0
        %v3178 = vmax.f32 %v3148, 0.0
        %v3179 = vmax.f32 %v3154, 0.0
        %v3180 = vmax.f32 %v3160, 0.0
        %v3181 = vmax.f32 %v3166, 0.0
        %v3182 = vmax.f32 %v3172, 0.0
        %v3183 = vld [vmem:[%s6] sm:$0xff]
        %v3184 = vld [vmem:[%s6 + $0x8] sm:$0xff]
        %v3185 = vld [vmem:[%s6 + $0x10] sm:$0xff]
        %v3186 = vld [vmem:[%s6 + $0x18] sm:$0xff]
        %v3187 = vld [vmem:[%s6 + $0x20] sm:$0xff]
        %v3188 = vld [vmem:[%s6 + $0x28] sm:$0xff]
        %v3189 = vld [vmem:[%s6 + $0x30] sm:$0xff]
        %v3190 = vld [vmem:[%s6 + $0x38] sm:$0xff]
        %v3191 = vld [vmem:[%s6 + $0x40] sm:$0xff]
        %v3192 = vld [vmem:[%s6 + $0x48] sm:$0xff]
        %v3193 = vld [vmem:[%s6 + $0x50] sm:$0xff]
        %v3194 = vld [vmem:[%s6 + $0x58] sm:$0xff]
        %v3195 = vld [vmem:[%s6 + $0x60] sm:$0xff]
        %v3196 = vld [vmem:[%s6 + $0x68] sm:$0xff]
        %v3197 = vld [vmem:[%s6 + $0x70] sm:$0xff]
        %v3198 = vld [vmem:[%s6 + $0x78] sm:$0xff]
        %v3199 = vld [vmem:[%s7] sm:$0x1]
        %v3201 = vlaneseq
        %v3202 = vshrl.u32 %v3201, 7
        %v3203 = vsub.s32 0, %v3202
        %v3204 = vrot.slane %v3199, %v3203
        %3206 = vmatprep.subr.mxu0 0.0
        %v3207 = vand.u32 %v3183, 4294901760
        %3208 = vmatpush1.msra.mxu0 %v3207
        %3209 = vmatprep.subr.mxu0 0.0
        %v3210 = vand.u32 %v3184, 4294901760
        %3211 = vmatpush1.msra.mxu0 %v3210
        %3212 = vmatprep.subr.mxu0 0.0
        %v3213 = vand.u32 %v3185, 4294901760
        %3214 = vmatpush1.msra.mxu0 %v3213
        %3215 = vmatprep.subr.mxu0 0.0
        %v3216 = vand.u32 %v3186, 4294901760
        %3217 = vmatpush1.msra.mxu0 %v3216
        %3218 = vmatprep.subr.mxu0 0.0
        %v3219 = vand.u32 %v3187, 4294901760
        %3220 = vmatpush1.msra.mxu0 %v3219
        %3221 = vmatprep.subr.mxu0 0.0
        %v3222 = vand.u32 %v3188, 4294901760
        %3223 = vmatpush1.msra.mxu0 %v3222
        %3224 = vmatprep.subr.mxu0 0.0
        %v3225 = vand.u32 %v3189, 4294901760
        %3226 = vmatpush1.msra.mxu0 %v3225
        %3227 = vmatprep.subr.mxu0 0.0
        %v3228 = vand.u32 %v3190, 4294901760
        %3229 = vmatpush1.msra.mxu0 %v3228
        %3230 = vmatprep.subr.mxu0 0.0
        %v3231 = vand.u32 %v3191, 4294901760
        %3232 = vmatpush1.msra.mxu0 %v3231
        %3233 = vmatprep.subr.mxu0 0.0
        %v3234 = vand.u32 %v3192, 4294901760
        %3235 = vmatpush1.msra.mxu0 %v3234
        %3236 = vmatprep.subr.mxu0 0.0
        %v3237 = vand.u32 %v3193, 4294901760
        %3238 = vmatpush1.msra.mxu0 %v3237
        %3239 = vmatprep.subr.mxu0 0.0
        %v3240 = vand.u32 %v3194, 4294901760
        %3241 = vmatpush1.msra.mxu0 %v3240
        %3242 = vmatprep.subr.mxu0 0.0
        %v3243 = vand.u32 %v3195, 4294901760
        %3244 = vmatpush1.msra.mxu0 %v3243
        %3245 = vmatprep.subr.mxu0 0.0
        %v3246 = vand.u32 %v3196, 4294901760
        %3247 = vmatpush1.msra.mxu0 %v3246
        %3248 = vmatprep.subr.mxu0 0.0
        %v3249 = vand.u32 %v3197, 4294901760
        %3250 = vmatpush1.msra.mxu0 %v3249
        %3251 = vmatprep.subr.mxu0 0.0
        %v3252 = vand.u32 %v3198, 4294901760
        %3253 = vmatpush1.msra.mxu0 %v3252
        %3254 = vmatprep.subr.mxu0 0.0
        %3255 = vmatpush1.msra.mxu0 0.0
        %3256 = vmatprep.subr.mxu0 0.0
        %3257 = vmatpush1.msra.mxu0 0.0
        %3258 = vmatprep.subr.mxu0 0.0
        %3259 = vmatpush1.msra.mxu0 0.0
        %3260 = vmatprep.subr.mxu0 0.0
        %3261 = vmatpush1.msra.mxu0 0.0
        %3262 = vmatprep.subr.mxu0 0.0
        %3263 = vmatpush1.msra.mxu0 0.0
        %3264 = vmatprep.subr.mxu0 0.0
        %3265 = vmatpush1.msra.mxu0 0.0
        %3266 = vmatprep.subr.mxu0 0.0
        %3267 = vmatpush1.msra.mxu0 0.0
        %3268 = vmatprep.subr.mxu0 0.0
        %3269 = vmatpush1.msra.mxu0 0.0
        %3270 = vmatprep.subr.mxu0 0.0
        %3271 = vmatpush1.msra.mxu0 0.0
        %3272 = vmatprep.subr.mxu0 0.0
        %3273 = vmatpush1.msra.mxu0 0.0
        %3274 = vmatprep.subr.mxu0 0.0
        %3275 = vmatpush1.msra.mxu0 0.0
        %3276 = vmatprep.subr.mxu0 0.0
        %3277 = vmatpush1.msra.mxu0 0.0
        %3278 = vmatprep.subr.mxu0 0.0
        %3279 = vmatpush1.msra.mxu0 0.0
        %3280 = vmatprep.subr.mxu0 0.0
        %3281 = vmatpush1.msra.mxu0 0.0
        %3282 = vmatprep.subr.mxu0 0.0
        %3283 = vmatpush1.msra.mxu0 0.0
        %3284 = vmatprep.subr.mxu0 0.0
        %3285 = vmatpush1.msra.mxu0 0.0
        %3286 = vmatprep.mubr.f32.mxu0 0.0
        %v3287 = vand.u32 %v3175, 4294901760
        %v3288 = vsub.f32 %v3175, %v3287
        %v3289 = vand.u32 %v3288, 4294901760
        %v3290 = vsub.f32 %v3288, %v3289
        %v3291 = vand.u32 %v3290, 4294901760
        %3292 = vmatmul.mubr.f32.gmra.mrb[0].mxu0 %v3291
        %v3293 = vpop.f32.mrb[0].mxu0
        %v3294 = vadd.f32 %v3204, %v3293
        %v3295 = vpop.f32.mrb[0].mxu0
        %3296 = vmatprep.mubr.f32.mxu0 0.0
        %v3297 = vand.u32 %v3176, 4294901760
        %v3298 = vsub.f32 %v3176, %v3297
        %v3299 = vand.u32 %v3298, 4294901760
        %v3300 = vsub.f32 %v3298, %v3299
        %v3301 = vand.u32 %v3300, 4294901760
        %3302 = vmatmul.mubr.f32.gmra.mrb[0].mxu0 %v3301
        %v3303 = vpop.f32.mrb[0].mxu0
        %v3304 = vadd.f32 %v3204, %v3303
        %v3305 = vpop.f32.mrb[0].mxu0
        %3306 = vmatprep.mubr.f32.mxu0 0.0
        %v3307 = vand.u32 %v3177, 4294901760
        %v3308 = vsub.f32 %v3177, %v3307
        %v3309 = vand.u32 %v3308, 4294901760
        %v3310 = vsub.f32 %v3308, %v3309
        %v3311 = vand.u32 %v3310, 4294901760
        %3312 = vmatmul.mubr.f32.gmra.mrb[0].mxu0 %v3311
        %v3313 = vpop.f32.mrb[0].mxu0
        %v3314 = vadd.f32 %v3204, %v3313
        %v3315 = vpop.f32.mrb[0].mxu0
        %3316 = vmatprep.mubr.f32.mxu0 0.0
        %v3317 = vand.u32 %v3178, 4294901760
        %v3318 = vsub.f32 %v3178, %v3317
        %v3319 = vand.u32 %v3318, 4294901760
        %v3320 = vsub.f32 %v3318, %v3319
        %v3321 = vand.u32 %v3320, 4294901760
        %3322 = vmatmul.mubr.f32.gmra.mrb[0].mxu0 %v3321
        %v3323 = vpop.f32.mrb[0].mxu0
        %v3324 = vadd.f32 %v3204, %v3323
        %v3325 = vpop.f32.mrb[0].mxu0
        %3326 = vmatprep.mubr.f32.mxu0 0.0
        %v3327 = vand.u32 %v3179, 4294901760
        %v3328 = vsub.f32 %v3179, %v3327
        %v3329 = vand.u32 %v3328, 4294901760
        %v3330 = vsub.f32 %v3328, %v3329
        %v3331 = vand.u32 %v3330, 4294901760
        %3332 = vmatmul.mubr.f32.gmra.mrb[0].mxu0 %v3331
        %v3333 = vpop.f32.mrb[0].mxu0
        %v3334 = vadd.f32 %v3204, %v3333
        %v3335 = vpop.f32.mrb[0].mxu0
        %3336 = vmatprep.mubr.f32.mxu0 0.0
        %v3337 = vand.u32 %v3180, 4294901760
        %v3338 = vsub.f32 %v3180, %v3337
        %v3339 = vand.u32 %v3338, 4294901760
        %v3340 = vsub.f32 %v3338, %v3339
        %v3341 = vand.u32 %v3340, 4294901760
        %3342 = vmatmul.mubr.f32.gmra.mrb[0].mxu0 %v3341
        %v3343 = vpop.f32.mrb[0].mxu0
        %v3344 = vadd.f32 %v3204, %v3343
        %v3345 = vpop.f32.mrb[0].mxu0
        %3346 = vmatprep.mubr.f32.mxu0 0.0
        %v3347 = vand.u32 %v3181, 4294901760
        %v3348 = vsub.f32 %v3181, %v3347
        %v3349 = vand.u32 %v3348, 4294901760
        %v3350 = vsub.f32 %v3348, %v3349
        %v3351 = vand.u32 %v3350, 4294901760
        %3352 = vmatmul.mubr.f32.gmra.mrb[0].mxu0 %v3351
        %v3353 = vpop.f32.mrb[0].mxu0
        %v3354 = vadd.f32 %v3204, %v3353
        %v3355 = vpop.f32.mrb[0].mxu0
        %3356 = vmatprep.mubr.f32.mxu0 0.0
        %v3357 = vand.u32 %v3182, 4294901760
        %v3358 = vsub.f32 %v3182, %v3357
        %v3359 = vand.u32 %v3358, 4294901760
        %v3360 = vsub.f32 %v3358, %v3359
        %v3361 = vand.u32 %v3360, 4294901760
        %3362 = vmatmul.mubr.f32.gmra.mrb[0].mxu0 %v3361
        %v3363 = vpop.f32.mrb[0].mxu0
        %v3364 = vadd.f32 %v3204, %v3363
        %v3365 = vpop.f32.mrb[0].mxu0
        %3366 = vdwg.mxu0
        %3367 = vmatprep.subr.mxu0 0.0
        %v3368 = vand.u32 %v3183, 4294901760
        %v3369 = vsub.f32 %v3183, %v3368
        %v3370 = vand.u32 %v3369, 4294901760
        %v3371 = vsub.f32 %v3369, %v3370
        %v3372 = vand.u32 %v3371, 4294901760
        %3373 = vmatpush1.msra.mxu0 %v3372
        %3374 = vmatprep.subr.mxu0 0.0
        %v3375 = vand.u32 %v3184, 4294901760
        %v3376 = vsub.f32 %v3184, %v3375
        %v3377 = vand.u32 %v3376, 4294901760
        %v3378 = vsub.f32 %v3376, %v3377
        %v3379 = vand.u32 %v3378, 4294901760
        %3380 = vmatpush1.msra.mxu0 %v3379
        %3381 = vmatprep.subr.mxu0 0.0
        %v3382 = vand.u32 %v3185, 4294901760
        %v3383 = vsub.f32 %v3185, %v3382
        %v3384 = vand.u32 %v3383, 4294901760
        %v3385 = vsub.f32 %v3383, %v3384
        %v3386 = vand.u32 %v3385, 4294901760
        %3387 = vmatpush1.msra.mxu0 %v3386
        %3388 = vmatprep.subr.mxu0 0.0
        %v3389 = vand.u32 %v3186, 4294901760
        %v3390 = vsub.f32 %v3186, %v3389
        %v3391 = vand.u32 %v3390, 4294901760
        %v3392 = vsub.f32 %v3390, %v3391
        %v3393 = vand.u32 %v3392, 4294901760
        %3394 = vmatpush1.msra.mxu0 %v3393
        %3395 = vmatprep.subr.mxu0 0.0
        %v3396 = vand.u32 %v3187, 4294901760
        %v3397 = vsub.f32 %v3187, %v3396
        %v3398 = vand.u32 %v3397, 4294901760
        %v3399 = vsub.f32 %v3397, %v3398
        %v3400 = vand.u32 %v3399, 4294901760
        %3401 = vmatpush1.msra.mxu0 %v3400
        %3402 = vmatprep.subr.mxu0 0.0
        %v3403 = vand.u32 %v3188, 4294901760
        %v3404 = vsub.f32 %v3188, %v3403
        %v3405 = vand.u32 %v3404, 4294901760
        %v3406 = vsub.f32 %v3404, %v3405
        %v3407 = vand.u32 %v3406, 4294901760
        %3408 = vmatpush1.msra.mxu0 %v3407
        %3409 = vmatprep.subr.mxu0 0.0
        %v3410 = vand.u32 %v3189, 4294901760
        %v3411 = vsub.f32 %v3189, %v3410
        %v3412 = vand.u32 %v3411, 4294901760
        %v3413 = vsub.f32 %v3411, %v3412
        %v3414 = vand.u32 %v3413, 4294901760
        %3415 = vmatpush1.msra.mxu0 %v3414
        %3416 = vmatprep.subr.mxu0 0.0
        %v3417 = vand.u32 %v3190, 4294901760
        %v3418 = vsub.f32 %v3190, %v3417
        %v3419 = vand.u32 %v3418, 4294901760
        %v3420 = vsub.f32 %v3418, %v3419
        %v3421 = vand.u32 %v3420, 4294901760
        %3422 = vmatpush1.msra.mxu0 %v3421
        %3423 = vmatprep.subr.mxu0 0.0
        %v3424 = vand.u32 %v3191, 4294901760
        %v3425 = vsub.f32 %v3191, %v3424
        %v3426 = vand.u32 %v3425, 4294901760
        %v3427 = vsub.f32 %v3425, %v3426
        %v3428 = vand.u32 %v3427, 4294901760
        %3429 = vmatpush1.msra.mxu0 %v3428
        %3430 = vmatprep.subr.mxu0 0.0
        %v3431 = vand.u32 %v3192, 4294901760
        %v3432 = vsub.f32 %v3192, %v3431
        %v3433 = vand.u32 %v3432, 4294901760
        %v3434 = vsub.f32 %v3432, %v3433
        %v3435 = vand.u32 %v3434, 4294901760
        %3436 = vmatpush1.msra.mxu0 %v3435
        %3437 = vmatprep.subr.mxu0 0.0
        %v3438 = vand.u32 %v3193, 4294901760
        %v3439 = vsub.f32 %v3193, %v3438
        %v3440 = vand.u32 %v3439, 4294901760
        %v3441 = vsub.f32 %v3439, %v3440
        %v3442 = vand.u32 %v3441, 4294901760
        %3443 = vmatpush1.msra.mxu0 %v3442
        %3444 = vmatprep.subr.mxu0 0.0
        %v3445 = vand.u32 %v3194, 4294901760
        %v3446 = vsub.f32 %v3194, %v3445
        %v3447 = vand.u32 %v3446, 4294901760
        %v3448 = vsub.f32 %v3446, %v3447
        %v3449 = vand.u32 %v3448, 4294901760
        %3450 = vmatpush1.msra.mxu0 %v3449
        %3451 = vmatprep.subr.mxu0 0.0
        %v3452 = vand.u32 %v3195, 4294901760
        %v3453 = vsub.f32 %v3195, %v3452
        %v3454 = vand.u32 %v3453, 4294901760
        %v3455 = vsub.f32 %v3453, %v3454
        %v3456 = vand.u32 %v3455, 4294901760
        %3457 = vmatpush1.msra.mxu0 %v3456
        %3458 = vmatprep.subr.mxu0 0.0
        %v3459 = vand.u32 %v3196, 4294901760
        %v3460 = vsub.f32 %v3196, %v3459
        %v3461 = vand.u32 %v3460, 4294901760
        %v3462 = vsub.f32 %v3460, %v3461
        %v3463 = vand.u32 %v3462, 4294901760
        %3464 = vmatpush1.msra.mxu0 %v3463
        %3465 = vmatprep.subr.mxu0 0.0
        %v3466 = vand.u32 %v3197, 4294901760
        %v3467 = vsub.f32 %v3197, %v3466
        %v3468 = vand.u32 %v3467, 4294901760
        %v3469 = vsub.f32 %v3467, %v3468
        %v3470 = vand.u32 %v3469, 4294901760
        %3471 = vmatpush1.msra.mxu0 %v3470
        %3472 = vmatprep.subr.mxu0 0.0
        %v3473 = vand.u32 %v3198, 4294901760
        %v3474 = vsub.f32 %v3198, %v3473
        %v3475 = vand.u32 %v3474, 4294901760
        %v3476 = vsub.f32 %v3474, %v3475
        %v3477 = vand.u32 %v3476, 4294901760
        %3478 = vmatpush1.msra.mxu0 %v3477
        %3479 = vmatprep.subr.mxu0 0.0
        %3480 = vmatpush1.msra.mxu0 0.0
        %3481 = vmatprep.subr.mxu0 0.0
        %3482 = vmatpush1.msra.mxu0 0.0
        %3483 = vmatprep.subr.mxu0 0.0
        %3484 = vmatpush1.msra.mxu0 0.0
        %3485 = vmatprep.subr.mxu0 0.0
        %3486 = vmatpush1.msra.mxu0 0.0
        %3487 = vmatprep.subr.mxu0 0.0
        %3488 = vmatpush1.msra.mxu0 0.0
        %3489 = vmatprep.subr.mxu0 0.0
        %3490 = vmatpush1.msra.mxu0 0.0
        %3491 = vmatprep.subr.mxu0 0.0
        %3492 = vmatpush1.msra.mxu0 0.0
        %3493 = vmatprep.subr.mxu0 0.0
        %3494 = vmatpush1.msra.mxu0 0.0
        %3495 = vmatprep.subr.mxu0 0.0
        %3496 = vmatpush1.msra.mxu0 0.0
        %3497 = vmatprep.subr.mxu0 0.0
        %3498 = vmatpush1.msra.mxu0 0.0
        %3499 = vmatprep.subr.mxu0 0.0
        %3500 = vmatpush1.msra.mxu0 0.0
        %3501 = vmatprep.subr.mxu0 0.0
        %3502 = vmatpush1.msra.mxu0 0.0
        %3503 = vmatprep.subr.mxu0 0.0
        %3504 = vmatpush1.msra.mxu0 0.0
        %3505 = vmatprep.subr.mxu0 0.0
        %3506 = vmatpush1.msra.mxu0 0.0
        %3507 = vmatprep.subr.mxu0 0.0
        %3508 = vmatpush1.msra.mxu0 0.0
        %3509 = vmatprep.subr.mxu0 0.0
        %3510 = vmatpush1.msra.mxu0 0.0
        %3511 = vmatprep.mubr.f32.mxu0 0.0
        %v3512 = vand.u32 %v3175, 4294901760
        %3513 = vmatmul.mubr.f32.gmra.mrb[0].mxu0 %v3512
        %v3514 = vpop.f32.mrb[0].mxu0
        %v3515 = vadd.f32 %v3294, %v3514
        %v3516 = vpop.f32.mrb[0].mxu0
        %3517 = vmatprep.mubr.f32.mxu0 0.0
        %v3518 = vand.u32 %v3176, 4294901760
        %3519 = vmatmul.mubr.f32.gmra.mrb[0].mxu0 %v3518
        %v3520 = vpop.f32.mrb[0].mxu0
        %v3521 = vadd.f32 %v3304, %v3520
        %v3522 = vpop.f32.mrb[0].mxu0
        %3523 = vmatprep.mubr.f32.mxu0 0.0
        %v3524 = vand.u32 %v3177, 4294901760
        %3525 = vmatmul.mubr.f32.gmra.mrb[0].mxu0 %v3524
        %v3526 = vpop.f32.mrb[0].mxu0
        %v3527 = vadd.f32 %v3314, %v3526
        %v3528 = vpop.f32.mrb[0].mxu0
        %3529 = vmatprep.mubr.f32.mxu0 0.0
        %v3530 = vand.u32 %v3178, 4294901760
        %3531 = vmatmul.mubr.f32.gmra.mrb[0].mxu0 %v3530
        %v3532 = vpop.f32.mrb[0].mxu0
        %v3533 = vadd.f32 %v3324, %v3532
        %v3534 = vpop.f32.mrb[0].mxu0
        %3535 = vmatprep.mubr.f32.mxu0 0.0
        %v3536 = vand.u32 %v3179, 4294901760
        %3537 = vmatmul.mubr.f32.gmra.mrb[0].mxu0 %v3536
        %v3538 = vpop.f32.mrb[0].mxu0
        %v3539 = vadd.f32 %v3334, %v3538
        %v3540 = vpop.f32.mrb[0].mxu0
        %3541 = vmatprep.mubr.f32.mxu0 0.0
        %v3542 = vand.u32 %v3180, 4294901760
        %3543 = vmatmul.mubr.f32.gmra.mrb[0].mxu0 %v3542
        %v3544 = vpop.f32.mrb[0].mxu0
        %v3545 = vadd.f32 %v3344, %v3544
        %v3546 = vpop.f32.mrb[0].mxu0
        %3547 = vmatprep.mubr.f32.mxu0 0.0
        %v3548 = vand.u32 %v3181, 4294901760
        %3549 = vmatmul.mubr.f32.gmra.mrb[0].mxu0 %v3548
        %v3550 = vpop.f32.mrb[0].mxu0
        %v3551 = vadd.f32 %v3354, %v3550
        %v3552 = vpop.f32.mrb[0].mxu0
        %3553 = vmatprep.mubr.f32.mxu0 0.0
        %v3554 = vand.u32 %v3182, 4294901760
        %3555 = vmatmul.mubr.f32.gmra.mrb[0].mxu0 %v3554
        %v3556 = vpop.f32.mrb[0].mxu0
        %v3557 = vadd.f32 %v3364, %v3556
        %v3558 = vpop.f32.mrb[0].mxu0
        %3559 = vdwg.mxu0
        %3560 = vmatprep.subr.mxu0 0.0
        %v3561 = vand.u32 %v3183, 4294901760
        %v3562 = vsub.f32 %v3183, %v3561
        %3563 = vmatpush1.msra.mxu0 %v3562
        %3564 = vmatprep.subr.mxu0 0.0
        %v3565 = vand.u32 %v3184, 4294901760
        %v3566 = vsub.f32 %v3184, %v3565
        %3567 = vmatpush1.msra.mxu0 %v3566
        %3568 = vmatprep.subr.mxu0 0.0
        %v3569 = vand.u32 %v3185, 4294901760
        %v3570 = vsub.f32 %v3185, %v3569
        %3571 = vmatpush1.msra.mxu0 %v3570
        %3572 = vmatprep.subr.mxu0 0.0
        %v3573 = vand.u32 %v3186, 4294901760
        %v3574 = vsub.f32 %v3186, %v3573
        %3575 = vmatpush1.msra.mxu0 %v3574
        %3576 = vmatprep.subr.mxu0 0.0
        %v3577 = vand.u32 %v3187, 4294901760
        %v3578 = vsub.f32 %v3187, %v3577
        %3579 = vmatpush1.msra.mxu0 %v3578
        %3580 = vmatprep.subr.mxu0 0.0
        %v3581 = vand.u32 %v3188, 4294901760
        %v3582 = vsub.f32 %v3188, %v3581
        %3583 = vmatpush1.msra.mxu0 %v3582
        %3584 = vmatprep.subr.mxu0 0.0
        %v3585 = vand.u32 %v3189, 4294901760
        %v3586 = vsub.f32 %v3189, %v3585
        %3587 = vmatpush1.msra.mxu0 %v3586
        %3588 = vmatprep.subr.mxu0 0.0
        %v3589 = vand.u32 %v3190, 4294901760
        %v3590 = vsub.f32 %v3190, %v3589
        %3591 = vmatpush1.msra.mxu0 %v3590
        %3592 = vmatprep.subr.mxu0 0.0
        %v3593 = vand.u32 %v3191, 4294901760
        %v3594 = vsub.f32 %v3191, %v3593
        %3595 = vmatpush1.msra.mxu0 %v3594
        %3596 = vmatprep.subr.mxu0 0.0
        %v3597 = vand.u32 %v3192, 4294901760
        %v3598 = vsub.f32 %v3192, %v3597
        %3599 = vmatpush1.msra.mxu0 %v3598
        %3600 = vmatprep.subr.mxu0 0.0
        %v3601 = vand.u32 %v3193, 4294901760
        %v3602 = vsub.f32 %v3193, %v3601
        %3603 = vmatpush1.msra.mxu0 %v3602
        %3604 = vmatprep.subr.mxu0 0.0
        %v3605 = vand.u32 %v3194, 4294901760
        %v3606 = vsub.f32 %v3194, %v3605
        %3607 = vmatpush1.msra.mxu0 %v3606
        %3608 = vmatprep.subr.mxu0 0.0
        %v3609 = vand.u32 %v3195, 4294901760
        %v3610 = vsub.f32 %v3195, %v3609
        %3611 = vmatpush1.msra.mxu0 %v3610
        %3612 = vmatprep.subr.mxu0 0.0
        %v3613 = vand.u32 %v3196, 4294901760
        %v3614 = vsub.f32 %v3196, %v3613
        %3615 = vmatpush1.msra.mxu0 %v3614
        %3616 = vmatprep.subr.mxu0 0.0
        %v3617 = vand.u32 %v3197, 4294901760
        %v3618 = vsub.f32 %v3197, %v3617
        %3619 = vmatpush1.msra.mxu0 %v3618
        %3620 = vmatprep.subr.mxu0 0.0
        %v3621 = vand.u32 %v3198, 4294901760
        %v3622 = vsub.f32 %v3198, %v3621
        %3623 = vmatpush1.msra.mxu0 %v3622
        %3624 = vmatprep.subr.mxu0 0.0
        %3625 = vmatpush1.msra.mxu0 0.0
        %3626 = vmatprep.subr.mxu0 0.0
        %3627 = vmatpush1.msra.mxu0 0.0
        %3628 = vmatprep.subr.mxu0 0.0
        %3629 = vmatpush1.msra.mxu0 0.0
        %3630 = vmatprep.subr.mxu0 0.0
        %3631 = vmatpush1.msra.mxu0 0.0
        %3632 = vmatprep.subr.mxu0 0.0
        %3633 = vmatpush1.msra.mxu0 0.0
        %3634 = vmatprep.subr.mxu0 0.0
        %3635 = vmatpush1.msra.mxu0 0.0
        %3636 = vmatprep.subr.mxu0 0.0
        %3637 = vmatpush1.msra.mxu0 0.0
        %3638 = vmatprep.subr.mxu0 0.0
        %3639 = vmatpush1.msra.mxu0 0.0
        %3640 = vmatprep.subr.mxu0 0.0
        %3641 = vmatpush1.msra.mxu0 0.0
        %3642 = vmatprep.subr.mxu0 0.0
        %3643 = vmatpush1.msra.mxu0 0.0
        %3644 = vmatprep.subr.mxu0 0.0
        %3645 = vmatpush1.msra.mxu0 0.0
        %3646 = vmatprep.subr.mxu0 0.0
        %3647 = vmatpush1.msra.mxu0 0.0
        %3648 = vmatprep.subr.mxu0 0.0
        %3649 = vmatpush1.msra.mxu0 0.0
        %3650 = vmatprep.subr.mxu0 0.0
        %3651 = vmatpush1.msra.mxu0 0.0
        %3652 = vmatprep.subr.mxu0 0.0
        %3653 = vmatpush1.msra.mxu0 0.0
        %3654 = vmatprep.subr.mxu0 0.0
        %3655 = vmatpush1.msra.mxu0 0.0
        %3656 = vmatprep.mubr.f32.mxu0 0.0
        %v3657 = vand.u32 %v3175, 4294901760
        %v3658 = vsub.f32 %v3175, %v3657
        %3659 = vmatmul.mubr.f32.gmra.mrb[0].mxu0 %v3658
        %v3660 = vpop.f32.mrb[0].mxu0
        %v3661 = vadd.f32 %v3515, %v3660
        %v3662 = vpop.f32.mrb[0].mxu0
        %3663 = vmatprep.mubr.f32.mxu0 0.0
        %v3664 = vand.u32 %v3176, 4294901760
        %v3665 = vsub.f32 %v3176, %v3664
        %3666 = vmatmul.mubr.f32.gmra.mrb[0].mxu0 %v3665
        %v3667 = vpop.f32.mrb[0].mxu0
        %v3668 = vadd.f32 %v3521, %v3667
        %v3669 = vpop.f32.mrb[0].mxu0
        %3670 = vmatprep.mubr.f32.mxu0 0.0
        %v3671 = vand.u32 %v3177, 4294901760
        %v3672 = vsub.f32 %v3177, %v3671
        %3673 = vmatmul.mubr.f32.gmra.mrb[0].mxu0 %v3672
        %v3674 = vpop.f32.mrb[0].mxu0
        %v3675 = vadd.f32 %v3527, %v3674
        %v3676 = vpop.f32.mrb[0].mxu0
        %3677 = vmatprep.mubr.f32.mxu0 0.0
        %v3678 = vand.u32 %v3178, 4294901760
        %v3679 = vsub.f32 %v3178, %v3678
        %3680 = vmatmul.mubr.f32.gmra.mrb[0].mxu0 %v3679
        %v3681 = vpop.f32.mrb[0].mxu0
        %v3682 = vadd.f32 %v3533, %v3681
        %v3683 = vpop.f32.mrb[0].mxu0
        %3684 = vmatprep.mubr.f32.mxu0 0.0
        %v3685 = vand.u32 %v3179, 4294901760
        %v3686 = vsub.f32 %v3179, %v3685
        %3687 = vmatmul.mubr.f32.gmra.mrb[0].mxu0 %v3686
        %v3688 = vpop.f32.mrb[0].mxu0
        %v3689 = vadd.f32 %v3539, %v3688
        %v3690 = vpop.f32.mrb[0].mxu0
        %3691 = vmatprep.mubr.f32.mxu0 0.0
        %v3692 = vand.u32 %v3180, 4294901760
        %v3693 = vsub.f32 %v3180, %v3692
        %3694 = vmatmul.mubr.f32.gmra.mrb[0].mxu0 %v3693
        %v3695 = vpop.f32.mrb[0].mxu0
        %v3696 = vadd.f32 %v3545, %v3695
        %v3697 = vpop.f32.mrb[0].mxu0
        %3698 = vmatprep.mubr.f32.mxu0 0.0
        %v3699 = vand.u32 %v3181, 4294901760
        %v3700 = vsub.f32 %v3181, %v3699
        %3701 = vmatmul.mubr.f32.gmra.mrb[0].mxu0 %v3700
        %v3702 = vpop.f32.mrb[0].mxu0
        %v3703 = vadd.f32 %v3551, %v3702
        %v3704 = vpop.f32.mrb[0].mxu0
        %3705 = vmatprep.mubr.f32.mxu0 0.0
        %v3706 = vand.u32 %v3182, 4294901760
        %v3707 = vsub.f32 %v3182, %v3706
        %3708 = vmatmul.mubr.f32.gmra.mrb[0].mxu0 %v3707
        %v3709 = vpop.f32.mrb[0].mxu0
        %v3710 = vadd.f32 %v3557, %v3709
        %v3711 = vpop.f32.mrb[0].mxu0
        %3712 = vdwg.mxu0
        %3713 = vmatprep.subr.mxu0 0.0
        %v3714 = vand.u32 %v3183, 4294901760
        %3715 = vmatpush1.msra.mxu0 %v3714
        %3716 = vmatprep.subr.mxu0 0.0
        %v3717 = vand.u32 %v3184, 4294901760
        %3718 = vmatpush1.msra.mxu0 %v3717
        %3719 = vmatprep.subr.mxu0 0.0
        %v3720 = vand.u32 %v3185, 4294901760
        %3721 = vmatpush1.msra.mxu0 %v3720
        %3722 = vmatprep.subr.mxu0 0.0
        %v3723 = vand.u32 %v3186, 4294901760
        %3724 = vmatpush1.msra.mxu0 %v3723
        %3725 = vmatprep.subr.mxu0 0.0
        %v3726 = vand.u32 %v3187, 4294901760
        %3727 = vmatpush1.msra.mxu0 %v3726
        %3728 = vmatprep.subr.mxu0 0.0
        %v3729 = vand.u32 %v3188, 4294901760
        %3730 = vmatpush1.msra.mxu0 %v3729
        %3731 = vmatprep.subr.mxu0 0.0
        %v3732 = vand.u32 %v3189, 4294901760
        %3733 = vmatpush1.msra.mxu0 %v3732
        %3734 = vmatprep.subr.mxu0 0.0
        %v3735 = vand.u32 %v3190, 4294901760
        %3736 = vmatpush1.msra.mxu0 %v3735
        %3737 = vmatprep.subr.mxu0 0.0
        %v3738 = vand.u32 %v3191, 4294901760
        %3739 = vmatpush1.msra.mxu0 %v3738
        %3740 = vmatprep.subr.mxu0 0.0
        %v3741 = vand.u32 %v3192, 4294901760
        %3742 = vmatpush1.msra.mxu0 %v3741
        %3743 = vmatprep.subr.mxu0 0.0
        %v3744 = vand.u32 %v3193, 4294901760
        %3745 = vmatpush1.msra.mxu0 %v3744
        %3746 = vmatprep.subr.mxu0 0.0
        %v3747 = vand.u32 %v3194, 4294901760
        %3748 = vmatpush1.msra.mxu0 %v3747
        %3749 = vmatprep.subr.mxu0 0.0
        %v3750 = vand.u32 %v3195, 4294901760
        %3751 = vmatpush1.msra.mxu0 %v3750
        %3752 = vmatprep.subr.mxu0 0.0
        %v3753 = vand.u32 %v3196, 4294901760
        %3754 = vmatpush1.msra.mxu0 %v3753
        %3755 = vmatprep.subr.mxu0 0.0
        %v3756 = vand.u32 %v3197, 4294901760
        %3757 = vmatpush1.msra.mxu0 %v3756
        %3758 = vmatprep.subr.mxu0 0.0
        %v3759 = vand.u32 %v3198, 4294901760
        %3760 = vmatpush1.msra.mxu0 %v3759
        %3761 = vmatprep.subr.mxu0 0.0
        %3762 = vmatpush1.msra.mxu0 0.0
        %3763 = vmatprep.subr.mxu0 0.0
        %3764 = vmatpush1.msra.mxu0 0.0
        %3765 = vmatprep.subr.mxu0 0.0
        %3766 = vmatpush1.msra.mxu0 0.0
        %3767 = vmatprep.subr.mxu0 0.0
        %3768 = vmatpush1.msra.mxu0 0.0
        %3769 = vmatprep.subr.mxu0 0.0
        %3770 = vmatpush1.msra.mxu0 0.0
        %3771 = vmatprep.subr.mxu0 0.0
        %3772 = vmatpush1.msra.mxu0 0.0
        %3773 = vmatprep.subr.mxu0 0.0
        %3774 = vmatpush1.msra.mxu0 0.0
        %3775 = vmatprep.subr.mxu0 0.0
        %3776 = vmatpush1.msra.mxu0 0.0
        %3777 = vmatprep.subr.mxu0 0.0
        %3778 = vmatpush1.msra.mxu0 0.0
        %3779 = vmatprep.subr.mxu0 0.0
        %3780 = vmatpush1.msra.mxu0 0.0
        %3781 = vmatprep.subr.mxu0 0.0
        %3782 = vmatpush1.msra.mxu0 0.0
        %3783 = vmatprep.subr.mxu0 0.0
        %3784 = vmatpush1.msra.mxu0 0.0
        %3785 = vmatprep.subr.mxu0 0.0
        %3786 = vmatpush1.msra.mxu0 0.0
        %3787 = vmatprep.subr.mxu0 0.0
        %3788 = vmatpush1.msra.mxu0 0.0
        %3789 = vmatprep.subr.mxu0 0.0
        %3790 = vmatpush1.msra.mxu0 0.0
        %3791 = vmatprep.subr.mxu0 0.0
        %3792 = vmatpush1.msra.mxu0 0.0
        %3793 = vmatprep.mubr.f32.mxu0 0.0
        %v3794 = vand.u32 %v3175, 4294901760
        %v3795 = vsub.f32 %v3175, %v3794
        %v3796 = vand.u32 %v3795, 4294901760
        %3797 = vmatmul.mubr.f32.gmra.mrb[0].mxu0 %v3796
        %v3798 = vpop.f32.mrb[0].mxu0
        %v3799 = vadd.f32 %v3661, %v3798
        %v3800 = vpop.f32.mrb[0].mxu0
        %3801 = vmatprep.mubr.f32.mxu0 0.0
        %v3802 = vand.u32 %v3176, 4294901760
        %v3803 = vsub.f32 %v3176, %v3802
        %v3804 = vand.u32 %v3803, 4294901760
        %3805 = vmatmul.mubr.f32.gmra.mrb[0].mxu0 %v3804
        %v3806 = vpop.f32.mrb[0].mxu0
        %v3807 = vadd.f32 %v3668, %v3806
        %v3808 = vpop.f32.mrb[0].mxu0
        %3809 = vmatprep.mubr.f32.mxu0 0.0
        %v3810 = vand.u32 %v3177, 4294901760
        %v3811 = vsub.f32 %v3177, %v3810
        %v3812 = vand.u32 %v3811, 4294901760
        %3813 = vmatmul.mubr.f32.gmra.mrb[0].mxu0 %v3812
        %v3814 = vpop.f32.mrb[0].mxu0
        %v3815 = vadd.f32 %v3675, %v3814
        %v3816 = vpop.f32.mrb[0].mxu0
        %3817 = vmatprep.mubr.f32.mxu0 0.0
        %v3818 = vand.u32 %v3178, 4294901760
        %v3819 = vsub.f32 %v3178, %v3818
        %v3820 = vand.u32 %v3819, 4294901760
        %3821 = vmatmul.mubr.f32.gmra.mrb[0].mxu0 %v3820
        %v3822 = vpop.f32.mrb[0].mxu0
        %v3823 = vadd.f32 %v3682, %v3822
        %v3824 = vpop.f32.mrb[0].mxu0
        %3825 = vmatprep.mubr.f32.mxu0 0.0
        %v3826 = vand.u32 %v3179, 4294901760
        %v3827 = vsub.f32 %v3179, %v3826
        %v3828 = vand.u32 %v3827, 4294901760
        %3829 = vmatmul.mubr.f32.gmra.mrb[0].mxu0 %v3828
        %v3830 = vpop.f32.mrb[0].mxu0
        %v3831 = vadd.f32 %v3689, %v3830
        %v3832 = vpop.f32.mrb[0].mxu0
        %3833 = vmatprep.mubr.f32.mxu0 0.0
        %v3834 = vand.u32 %v3180, 4294901760
        %v3835 = vsub.f32 %v3180, %v3834
        %v3836 = vand.u32 %v3835, 4294901760
        %3837 = vmatmul.mubr.f32.gmra.mrb[0].mxu0 %v3836
        %v3838 = vpop.f32.mrb[0].mxu0
        %v3839 = vadd.f32 %v3696, %v3838
        %v3840 = vpop.f32.mrb[0].mxu0
        %3841 = vmatprep.mubr.f32.mxu0 0.0
        %v3842 = vand.u32 %v3181, 4294901760
        %v3843 = vsub.f32 %v3181, %v3842
        %v3844 = vand.u32 %v3843, 4294901760
        %3845 = vmatmul.mubr.f32.gmra.mrb[0].mxu0 %v3844
        %v3846 = vpop.f32.mrb[0].mxu0
        %v3847 = vadd.f32 %v3703, %v3846
        %v3848 = vpop.f32.mrb[0].mxu0
        %3849 = vmatprep.mubr.f32.mxu0 0.0
        %v3850 = vand.u32 %v3182, 4294901760
        %v3851 = vsub.f32 %v3182, %v3850
        %v3852 = vand.u32 %v3851, 4294901760
        %3853 = vmatmul.mubr.f32.gmra.mrb[0].mxu0 %v3852
        %v3854 = vpop.f32.mrb[0].mxu0
        %v3855 = vadd.f32 %v3710, %v3854
        %v3856 = vpop.f32.mrb[0].mxu0
        %3857 = vdwg.mxu0
        %3858 = vmatprep.subr.mxu0 0.0
        %v3859 = vand.u32 %v3183, 4294901760
        %v3860 = vsub.f32 %v3183, %v3859
        %v3861 = vand.u32 %v3860, 4294901760
        %3862 = vmatpush1.msra.mxu0 %v3861
        %3863 = vmatprep.subr.mxu0 0.0
        %v3864 = vand.u32 %v3184, 4294901760
        %v3865 = vsub.f32 %v3184, %v3864
        %v3866 = vand.u32 %v3865, 4294901760
        %3867 = vmatpush1.msra.mxu0 %v3866
        %3868 = vmatprep.subr.mxu0 0.0
        %v3869 = vand.u32 %v3185, 4294901760
        %v3870 = vsub.f32 %v3185, %v3869
        %v3871 = vand.u32 %v3870, 4294901760
        %3872 = vmatpush1.msra.mxu0 %v3871
        %3873 = vmatprep.subr.mxu0 0.0
        %v3874 = vand.u32 %v3186, 4294901760
        %v3875 = vsub.f32 %v3186, %v3874
        %v3876 = vand.u32 %v3875, 4294901760
        %3877 = vmatpush1.msra.mxu0 %v3876
        %3878 = vmatprep.subr.mxu0 0.0
        %v3879 = vand.u32 %v3187, 4294901760
        %v3880 = vsub.f32 %v3187, %v3879
        %v3881 = vand.u32 %v3880, 4294901760
        %3882 = vmatpush1.msra.mxu0 %v3881
        %3883 = vmatprep.subr.mxu0 0.0
        %v3884 = vand.u32 %v3188, 4294901760
        %v3885 = vsub.f32 %v3188, %v3884
        %v3886 = vand.u32 %v3885, 4294901760
        %3887 = vmatpush1.msra.mxu0 %v3886
        %3888 = vmatprep.subr.mxu0 0.0
        %v3889 = vand.u32 %v3189, 4294901760
        %v3890 = vsub.f32 %v3189, %v3889
        %v3891 = vand.u32 %v3890, 4294901760
        %3892 = vmatpush1.msra.mxu0 %v3891
        %3893 = vmatprep.subr.mxu0 0.0
        %v3894 = vand.u32 %v3190, 4294901760
        %v3895 = vsub.f32 %v3190, %v3894
        %v3896 = vand.u32 %v3895, 4294901760
        %3897 = vmatpush1.msra.mxu0 %v3896
        %3898 = vmatprep.subr.mxu0 0.0
        %v3899 = vand.u32 %v3191, 4294901760
        %v3900 = vsub.f32 %v3191, %v3899
        %v3901 = vand.u32 %v3900, 4294901760
        %3902 = vmatpush1.msra.mxu0 %v3901
        %3903 = vmatprep.subr.mxu0 0.0
        %v3904 = vand.u32 %v3192, 4294901760
        %v3905 = vsub.f32 %v3192, %v3904
        %v3906 = vand.u32 %v3905, 4294901760
        %3907 = vmatpush1.msra.mxu0 %v3906
        %3908 = vmatprep.subr.mxu0 0.0
        %v3909 = vand.u32 %v3193, 4294901760
        %v3910 = vsub.f32 %v3193, %v3909
        %v3911 = vand.u32 %v3910, 4294901760
        %3912 = vmatpush1.msra.mxu0 %v3911
        %3913 = vmatprep.subr.mxu0 0.0
        %v3914 = vand.u32 %v3194, 4294901760
        %v3915 = vsub.f32 %v3194, %v3914
        %v3916 = vand.u32 %v3915, 4294901760
        %3917 = vmatpush1.msra.mxu0 %v3916
        %3918 = vmatprep.subr.mxu0 0.0
        %v3919 = vand.u32 %v3195, 4294901760
        %v3920 = vsub.f32 %v3195, %v3919
        %v3921 = vand.u32 %v3920, 4294901760
        %3922 = vmatpush1.msra.mxu0 %v3921
        %3923 = vmatprep.subr.mxu0 0.0
        %v3924 = vand.u32 %v3196, 4294901760
        %v3925 = vsub.f32 %v3196, %v3924
        %v3926 = vand.u32 %v3925, 4294901760
        %3927 = vmatpush1.msra.mxu0 %v3926
        %3928 = vmatprep.subr.mxu0 0.0
        %v3929 = vand.u32 %v3197, 4294901760
        %v3930 = vsub.f32 %v3197, %v3929
        %v3931 = vand.u32 %v3930, 4294901760
        %3932 = vmatpush1.msra.mxu0 %v3931
        %3933 = vmatprep.subr.mxu0 0.0
        %v3934 = vand.u32 %v3198, 4294901760
        %v3935 = vsub.f32 %v3198, %v3934
        %v3936 = vand.u32 %v3935, 4294901760
        %3937 = vmatpush1.msra.mxu0 %v3936
        %3938 = vmatprep.subr.mxu0 0.0
        %3939 = vmatpush1.msra.mxu0 0.0
        %3940 = vmatprep.subr.mxu0 0.0
        %3941 = vmatpush1.msra.mxu0 0.0
        %3942 = vmatprep.subr.mxu0 0.0
        %3943 = vmatpush1.msra.mxu0 0.0
        %3944 = vmatprep.subr.mxu0 0.0
        %3945 = vmatpush1.msra.mxu0 0.0
        %3946 = vmatprep.subr.mxu0 0.0
        %3947 = vmatpush1.msra.mxu0 0.0
        %3948 = vmatprep.subr.mxu0 0.0
        %3949 = vmatpush1.msra.mxu0 0.0
        %3950 = vmatprep.subr.mxu0 0.0
        %3951 = vmatpush1.msra.mxu0 0.0
        %3952 = vmatprep.subr.mxu0 0.0
        %3953 = vmatpush1.msra.mxu0 0.0
        %3954 = vmatprep.subr.mxu0 0.0
        %3955 = vmatpush1.msra.mxu0 0.0
        %3956 = vmatprep.subr.mxu0 0.0
        %3957 = vmatpush1.msra.mxu0 0.0
        %3958 = vmatprep.subr.mxu0 0.0
        %3959 = vmatpush1.msra.mxu0 0.0
        %3960 = vmatprep.subr.mxu0 0.0
        %3961 = vmatpush1.msra.mxu0 0.0
        %3962 = vmatprep.subr.mxu0 0.0
        %3963 = vmatpush1.msra.mxu0 0.0
        %3964 = vmatprep.subr.mxu0 0.0
        %3965 = vmatpush1.msra.mxu0 0.0
        %3966 = vmatprep.subr.mxu0 0.0
        %3967 = vmatpush1.msra.mxu0 0.0
        %3968 = vmatprep.subr.mxu0 0.0
        %3969 = vmatpush1.msra.mxu0 0.0
        %3970 = vmatprep.mubr.f32.mxu0 0.0
        %v3971 = vand.u32 %v3175, 4294901760
        %3972 = vmatmul.mubr.f32.gmra.mrb[0].mxu0 %v3971
        %v3973 = vpop.f32.mrb[0].mxu0
        %v3974 = vadd.f32 %v3799, %v3973
        %v3975 = vpop.f32.mrb[0].mxu0
        %3976 = vmatprep.mubr.f32.mxu0 0.0
        %v3977 = vand.u32 %v3176, 4294901760
        %3978 = vmatmul.mubr.f32.gmra.mrb[0].mxu0 %v3977
        %v3979 = vpop.f32.mrb[0].mxu0
        %v3980 = vadd.f32 %v3807, %v3979
        %v3981 = vpop.f32.mrb[0].mxu0
        %3982 = vmatprep.mubr.f32.mxu0 0.0
        %v3983 = vand.u32 %v3177, 4294901760
        %3984 = vmatmul.mubr.f32.gmra.mrb[0].mxu0 %v3983
        %v3985 = vpop.f32.mrb[0].mxu0
        %v3986 = vadd.f32 %v3815, %v3985
        %v3987 = vpop.f32.mrb[0].mxu0
        %3988 = vmatprep.mubr.f32.mxu0 0.0
        %v3989 = vand.u32 %v3178, 4294901760
        %3990 = vmatmul.mubr.f32.gmra.mrb[0].mxu0 %v3989
        %v3991 = vpop.f32.mrb[0].mxu0
        %v3992 = vadd.f32 %v3823, %v3991
        %v3993 = vpop.f32.mrb[0].mxu0
        %3994 = vmatprep.mubr.f32.mxu0 0.0
        %v3995 = vand.u32 %v3179, 4294901760
        %3996 = vmatmul.mubr.f32.gmra.mrb[0].mxu0 %v3995
        %v3997 = vpop.f32.mrb[0].mxu0
        %v3998 = vadd.f32 %v3831, %v3997
        %v3999 = vpop.f32.mrb[0].mxu0
        %4000 = vmatprep.mubr.f32.mxu0 0.0
        %v4001 = vand.u32 %v3180, 4294901760
        %4002 = vmatmul.mubr.f32.gmra.mrb[0].mxu0 %v4001
        %v4003 = vpop.f32.mrb[0].mxu0
        %v4004 = vadd.f32 %v3839, %v4003
        %v4005 = vpop.f32.mrb[0].mxu0
        %4006 = vmatprep.mubr.f32.mxu0 0.0
        %v4007 = vand.u32 %v3181, 4294901760
        %4008 = vmatmul.mubr.f32.gmra.mrb[0].mxu0 %v4007
        %v4009 = vpop.f32.mrb[0].mxu0
        %v4010 = vadd.f32 %v3847, %v4009
        %v4011 = vpop.f32.mrb[0].mxu0
        %4012 = vmatprep.mubr.f32.mxu0 0.0
        %v4013 = vand.u32 %v3182, 4294901760
        %4014 = vmatmul.mubr.f32.gmra.mrb[0].mxu0 %v4013
        %v4015 = vpop.f32.mrb[0].mxu0
        %v4016 = vadd.f32 %v3855, %v4015
        %v4017 = vpop.f32.mrb[0].mxu0
        %4018 = vdwg.mxu0
        %4019 = vmatprep.subr.mxu0 0.0
        %v4020 = vand.u32 %v3183, 4294901760
        %4021 = vmatpush1.msra.mxu0 %v4020
        %4022 = vmatprep.subr.mxu0 0.0
        %v4023 = vand.u32 %v3184, 4294901760
        %4024 = vmatpush1.msra.mxu0 %v4023
        %4025 = vmatprep.subr.mxu0 0.0
        %v4026 = vand.u32 %v3185, 4294901760
        %4027 = vmatpush1.msra.mxu0 %v4026
        %4028 = vmatprep.subr.mxu0 0.0
        %v4029 = vand.u32 %v3186, 4294901760
        %4030 = vmatpush1.msra.mxu0 %v4029
        %4031 = vmatprep.subr.mxu0 0.0
        %v4032 = vand.u32 %v3187, 4294901760
        %4033 = vmatpush1.msra.mxu0 %v4032
        %4034 = vmatprep.subr.mxu0 0.0
        %v4035 = vand.u32 %v3188, 4294901760
        %4036 = vmatpush1.msra.mxu0 %v4035
        %4037 = vmatprep.subr.mxu0 0.0
        %v4038 = vand.u32 %v3189, 4294901760
        %4039 = vmatpush1.msra.mxu0 %v4038
        %4040 = vmatprep.subr.mxu0 0.0
        %v4041 = vand.u32 %v3190, 4294901760
        %4042 = vmatpush1.msra.mxu0 %v4041
        %4043 = vmatprep.subr.mxu0 0.0
        %v4044 = vand.u32 %v3191, 4294901760
        %4045 = vmatpush1.msra.mxu0 %v4044
        %4046 = vmatprep.subr.mxu0 0.0
        %v4047 = vand.u32 %v3192, 4294901760
        %4048 = vmatpush1.msra.mxu0 %v4047
        %4049 = vmatprep.subr.mxu0 0.0
        %v4050 = vand.u32 %v3193, 4294901760
        %4051 = vmatpush1.msra.mxu0 %v4050
        %4052 = vmatprep.subr.mxu0 0.0
        %v4053 = vand.u32 %v3194, 4294901760
        %4054 = vmatpush1.msra.mxu0 %v4053
        %4055 = vmatprep.subr.mxu0 0.0
        %v4056 = vand.u32 %v3195, 4294901760
        %4057 = vmatpush1.msra.mxu0 %v4056
        %4058 = vmatprep.subr.mxu0 0.0
        %v4059 = vand.u32 %v3196, 4294901760
        %4060 = vmatpush1.msra.mxu0 %v4059
        %4061 = vmatprep.subr.mxu0 0.0
        %v4062 = vand.u32 %v3197, 4294901760
        %4063 = vmatpush1.msra.mxu0 %v4062
        %4064 = vmatprep.subr.mxu0 0.0
        %v4065 = vand.u32 %v3198, 4294901760
        %4066 = vmatpush1.msra.mxu0 %v4065
        %4067 = vmatprep.subr.mxu0 0.0
        %4068 = vmatpush1.msra.mxu0 0.0
        %4069 = vmatprep.subr.mxu0 0.0
        %4070 = vmatpush1.msra.mxu0 0.0
        %4071 = vmatprep.subr.mxu0 0.0
        %4072 = vmatpush1.msra.mxu0 0.0
        %4073 = vmatprep.subr.mxu0 0.0
        %4074 = vmatpush1.msra.mxu0 0.0
        %4075 = vmatprep.subr.mxu0 0.0
        %4076 = vmatpush1.msra.mxu0 0.0
        %4077 = vmatprep.subr.mxu0 0.0
        %4078 = vmatpush1.msra.mxu0 0.0
        %4079 = vmatprep.subr.mxu0 0.0
        %4080 = vmatpush1.msra.mxu0 0.0
        %4081 = vmatprep.subr.mxu0 0.0
        %4082 = vmatpush1.msra.mxu0 0.0
        %4083 = vmatprep.subr.mxu0 0.0
        %4084 = vmatpush1.msra.mxu0 0.0
        %4085 = vmatprep.subr.mxu0 0.0
        %4086 = vmatpush1.msra.mxu0 0.0
        %4087 = vmatprep.subr.mxu0 0.0
        %4088 = vmatpush1.msra.mxu0 0.0
        %4089 = vmatprep.subr.mxu0 0.0
        %4090 = vmatpush1.msra.mxu0 0.0
        %4091 = vmatprep.subr.mxu0 0.0
        %4092 = vmatpush1.msra.mxu0 0.0
        %4093 = vmatprep.subr.mxu0 0.0
        %4094 = vmatpush1.msra.mxu0 0.0
        %4095 = vmatprep.subr.mxu0 0.0
        %4096 = vmatpush1.msra.mxu0 0.0
        %4097 = vmatprep.subr.mxu0 0.0
        %4098 = vmatpush1.msra.mxu0 0.0
        %4099 = vmatprep.mubr.f32.mxu0 0.0
        %v4100 = vand.u32 %v3175, 4294901760
        %4101 = vmatmul.mubr.f32.gmra.mrb[0].mxu0 %v4100
        %v4102 = vpop.f32.mrb[0].mxu0
        %v4103 = vadd.f32 %v3974, %v4102
        %v4104 = vpop.f32.mrb[0].mxu0
        %4105 = vmatprep.mubr.f32.mxu0 0.0
        %v4106 = vand.u32 %v3176, 4294901760
        %4107 = vmatmul.mubr.f32.gmra.mrb[0].mxu0 %v4106
        %v4108 = vpop.f32.mrb[0].mxu0
        %v4109 = vadd.f32 %v3980, %v4108
        %v4110 = vpop.f32.mrb[0].mxu0
        %4111 = vmatprep.mubr.f32.mxu0 0.0
        %v4112 = vand.u32 %v3177, 4294901760
        %4113 = vmatmul.mubr.f32.gmra.mrb[0].mxu0 %v4112
        %v4114 = vpop.f32.mrb[0].mxu0
        %v4115 = vadd.f32 %v3986, %v4114
        %v4116 = vpop.f32.mrb[0].mxu0
        %4117 = vmatprep.mubr.f32.mxu0 0.0
        %v4118 = vand.u32 %v3178, 4294901760
        %4119 = vmatmul.mubr.f32.gmra.mrb[0].mxu0 %v4118
        %v4120 = vpop.f32.mrb[0].mxu0
        %v4121 = vadd.f32 %v3992, %v4120
        %v4122 = vpop.f32.mrb[0].mxu0
        %4123 = vmatprep.mubr.f32.mxu0 0.0
        %v4124 = vand.u32 %v3179, 4294901760
        %4125 = vmatmul.mubr.f32.gmra.mrb[0].mxu0 %v4124
        %v4126 = vpop.f32.mrb[0].mxu0
        %v4127 = vadd.f32 %v3998, %v4126
        %v4128 = vpop.f32.mrb[0].mxu0
        %4129 = vmatprep.mubr.f32.mxu0 0.0
        %v4130 = vand.u32 %v3180, 4294901760
        %4131 = vmatmul.mubr.f32.gmra.mrb[0].mxu0 %v4130
        %v4132 = vpop.f32.mrb[0].mxu0
        %v4133 = vadd.f32 %v4004, %v4132
        %v4134 = vpop.f32.mrb[0].mxu0
        %4135 = vmatprep.mubr.f32.mxu0 0.0
        %v4136 = vand.u32 %v3181, 4294901760
        %4137 = vmatmul.mubr.f32.gmra.mrb[0].mxu0 %v4136
        %v4138 = vpop.f32.mrb[0].mxu0
        %v4139 = vadd.f32 %v4010, %v4138
        %v4140 = vpop.f32.mrb[0].mxu0
        %4141 = vmatprep.mubr.f32.mxu0 0.0
        %v4142 = vand.u32 %v3182, 4294901760
        %4143 = vmatmul.mubr.f32.gmra.mrb[0].mxu0 %v4142
        %v4144 = vpop.f32.mrb[0].mxu0
        %v4145 = vadd.f32 %v4016, %v4144
        %v4146 = vpop.f32.mrb[0].mxu0
        %4147 = vdwg.mxu0
        %v4148 = vmax.f32 %v4103, 0.0
        %v4149 = vmax.f32 %v4109, 0.0
        %v4150 = vmax.f32 %v4115, 0.0
        %v4151 = vmax.f32 %v4121, 0.0
        %v4152 = vmax.f32 %v4127, 0.0
        %v4153 = vmax.f32 %v4133, 0.0
        %v4154 = vmax.f32 %v4139, 0.0
        %v4155 = vmax.f32 %v4145, 0.0
        %4156 = vst.msk [vmem:[%s335] sm:$0xff] %vm2312, %v4148
        %4157 = vst.msk [vmem:[%s335 + $0x8] sm:$0xff] %vm2312, %v4149
        %4158 = vst.msk [vmem:[%s335 + $0x10] sm:$0xff] %vm2312, %v4150
        %4159 = vst.msk [vmem:[%s335 + $0x18] sm:$0xff] %vm2312, %v4151
        %4160 = vst.msk [vmem:[%s335 + $0x20] sm:$0xff] %vm2312, %v4152
        %4161 = vst.msk [vmem:[%s335 + $0x28] sm:$0xff] %vm2312, %v4153
        %4162 = vst.msk [vmem:[%s335 + $0x30] sm:$0xff] %vm2312, %v4154
        %4163 = vst.msk [vmem:[%s335 + $0x38] sm:$0xff] %vm2312, %v4155
        %s4164 = sand.u32 %s205, 1
        %s4165 = sand.u32 %s205, 1
        %s4166 = smul.addr %s4165, 64
        %s4167 = scalar_lea.vmem [#allocation2], %s4166
        // Predicated region
        $region53: #{spatial_position_extractor.1} parent=51 // pred_check
          %p4168 = pneg %p215
        $region54: #{spatial_position_extractor.1} parent=51 // pred_check_branch
          %4170 = sbr.rel (%p4168) target = $region56
        $region55: #{spatial_position_extractor.1} parent=51 // pred_region
          %s4171 = smul.u32 8, %s19
          %s4172 = ssub.s32 25, %s4171
          %p4173 = scmp.lt.s32.totalorder %s4172, 8
          %s4174 = scalar_select %p4173, %s4172, 8
          %s4175 = smul.u32 128, %s4174
          %p4176 = scmp.ne.s32.totalorder 0, %s4175
          %s4177 = smul.addr %s4171, 8
          %s4178 = scalar_lea.vmem %s8, %s4177
          // Predicated region
          $region57: #{spatial_position_extractor.1} parent=55 // pred_check
            %p4179 = pneg %p4176
          $region58: #{spatial_position_extractor.1} parent=55 // pred_check_branch
            %4181 = sbr.rel (%p4179) target = $region60
          $region59: #{spatial_position_extractor.1} parent=55 // pred_region
            // Predicated region
            $region61: #{spatial_position_extractor.1} parent=59 // pred_check
              _
            $region62: #{spatial_position_extractor.1} parent=59 // pred_check_branch
              %4183 = sbr.rel (0) target = $region64
            $region63: #{spatial_position_extractor.1} parent=59 // pred_region
              // Predicated region
              $region83: #{spatial_position_extractor.1} parent=63 // pred_check
                _
              $region84: #{spatial_position_extractor.1} parent=63 // pred_check_branch
                %4246 = sbr.rel (0) target = $region86
              $region85: #{spatial_position_extractor.1} parent=63 // pred_region
                %s4247 = sshrl.u32 %s4174, 3
                // While loop
                $region87: #{spatial_position_extractor.1} parent=85 // loop_pre_header
                  _
                $region88: #{spatial_position_extractor.1} parent=85 // loop_header
                  %s4249 = sphi 0, %s4251
                  %p4250 = scmp.ge.s32.totalorder %s4249, %s4247
                  %s4254 = sphi 0, %s4275
                  %s4255 = sphi %s4167, %s4278
                  %s4256 = sphi %s4178, %s4279
                $region89: #{spatial_position_extractor.1} parent=85 // loop_header_branch
                  %4253 = sbr.rel (%p4250) target = $region93
                $region90: #{spatial_position_extractor.1} parent=85 // loop_body
                  %v4257 = vld [vmem:[%s4255] sm:$0xff]
                  %4258 = vst [vmem:[%s4256] sm:$0xff] %v4257
                  %v4259 = vld [vmem:[%s4255 + $0x8] sm:$0xff]
                  %4260 = vst [vmem:[%s4256 + $0x8] sm:$0xff] %v4259
                  %v4261 = vld [vmem:[%s4255 + $0x10] sm:$0xff]
                  %4262 = vst [vmem:[%s4256 + $0x10] sm:$0xff] %v4261
                  %v4263 = vld [vmem:[%s4255 + $0x18] sm:$0xff]
                  %4264 = vst [vmem:[%s4256 + $0x18] sm:$0xff] %v4263
                  %v4265 = vld [vmem:[%s4255 + $0x20] sm:$0xff]
                  %4266 = vst [vmem:[%s4256 + $0x20] sm:$0xff] %v4265
                  %v4267 = vld [vmem:[%s4255 + $0x28] sm:$0xff]
                  %4268 = vst [vmem:[%s4256 + $0x28] sm:$0xff] %v4267
                  %v4269 = vld [vmem:[%s4255 + $0x30] sm:$0xff]
                  %4270 = vst [vmem:[%s4256 + $0x30] sm:$0xff] %v4269
                  %v4271 = vld [vmem:[%s4255 + $0x38] sm:$0xff]
                  %4272 = vst [vmem:[%s4256 + $0x38] sm:$0xff] %v4271
                  %s4273 = sadd.s32 1, %s4254
                  %p4274 = scmp.ge.s32.totalorder %s4273, %s4247
                  %s4275 = scalar_select %p4274, 0, %s4273
                  %s4276 = smul.u32 %s4275, 64
                  %s4277 = smul.u32 %s4275, 64
                  %s4278 = scalar_lea.vmem %s4167, %s4276 [#allocation2]
                  %s4279 = scalar_lea.vmem %s4178, %s4277
                $region91: #{spatial_position_extractor.1} parent=85 // loop_footer
                  %s4251 = sadd.s32 %s4249, 1
                $region92: #{spatial_position_extractor.1} parent=85 // loop_footer_branch
                  %4248 = sbr.rel target = $region88
                $region93: #{spatial_position_extractor.1} parent=85 // loop_exit
                  _
                %s4280 = sshrl.u32 %s4174, 3
                %s4281 = sand.u32 %s4174, 7
                %s4282 = smul.u32 %s4280, 8
                %s4283 = smul.u32 8, %s4282
                %s4284 = scalar_lea.vmem %s4167, %s4283 [#allocation2]
                %s4285 = smul.u32 8, %s4282
                %s4286 = scalar_lea.vmem %s4178, %s4285
                // While loop
                $region94: #{spatial_position_extractor.1} parent=85 // loop_pre_header
                  _
                $region95: #{spatial_position_extractor.1} parent=85 // loop_header
                  %s4288 = sphi 0, %s4290
                  %p4289 = scmp.ge.s32.totalorder %s4288, %s4281
                  %s4293 = sphi 0, %s4300
                  %s4294 = sphi %s4284, %s4303
                  %s4295 = sphi %s4286, %s4304
                $region96: #{spatial_position_extractor.1} parent=85 // loop_header_branch
                  %4292 = sbr.rel (%p4289) target = $region100
                $region97: #{spatial_position_extractor.1} parent=85 // loop_body
                  %v4296 = vld [vmem:[%s4294] sm:$0xff]
                  %4297 = vst [vmem:[%s4295] sm:$0xff] %v4296
                  %s4298 = sadd.s32 1, %s4293
                  %p4299 = scmp.ge.s32.totalorder %s4298, %s4281
                  %s4300 = scalar_select %p4299, 0, %s4298
                  %s4301 = smul.u32 %s4300, 8
                  %s4302 = smul.u32 %s4300, 8
                  %s4303 = scalar_lea.vmem %s4284, %s4301 [#allocation2]
                  %s4304 = scalar_lea.vmem %s4286, %s4302
                $region98: #{spatial_position_extractor.1} parent=85 // loop_footer
                  %s4290 = sadd.s32 %s4288, 1
                $region99: #{spatial_position_extractor.1} parent=85 // loop_footer_branch
                  %4287 = sbr.rel target = $region95
                $region100: #{spatial_position_extractor.1} parent=85 // loop_exit
                  _
              $region86: #{spatial_position_extractor.1} parent=63 // pred_fallthru
                _
              // Predicated region
              $region101: #{spatial_position_extractor.1} parent=63 // pred_check
                _
              $region102: #{spatial_position_extractor.1} parent=63 // pred_check_branch
                %4306 = sbr.rel target = $region104
              $region103: #{spatial_position_extractor.1} parent=63 // pred_region
                _
              $region104: #{spatial_position_extractor.1} parent=63 // pred_fallthru
                _
            $region64: #{spatial_position_extractor.1} parent=59 // pred_fallthru
              _
            // Predicated region
            $region65: #{spatial_position_extractor.1} parent=59 // pred_check
              _
            $region66: #{spatial_position_extractor.1} parent=59 // pred_check_branch
              %4185 = sbr.rel target = $region68
            $region67: #{spatial_position_extractor.1} parent=59 // pred_region
              %s4187 = sshrl.u32 %s4174, 3
              // While loop
              $region69: #{spatial_position_extractor.1} parent=67 // loop_pre_header
                _
              $region70: #{spatial_position_extractor.1} parent=67 // loop_header
                %s4189 = sphi 0, %s4191
                %p4190 = scmp.ge.s32.totalorder %s4189, %s4187
                %s4194 = sphi 0, %s4215
                %s4195 = sphi %s4167, %s4218
                %s4196 = sphi %s4178, %s4219
              $region71: #{spatial_position_extractor.1} parent=67 // loop_header_branch
                %4193 = sbr.rel (%p4190) target = $region75
              $region72: #{spatial_position_extractor.1} parent=67 // loop_body
                %v4197 = vld [vmem:[%s4195] sm:$0xff]
                %4198 = vst [vmem:[%s4196] sm:$0xff] %v4197
                %v4199 = vld [vmem:[%s4195 + $0x8] sm:$0xff]
                %4200 = vst [vmem:[%s4196 + $0x8] sm:$0xff] %v4199
                %v4201 = vld [vmem:[%s4195 + $0x10] sm:$0xff]
                %4202 = vst [vmem:[%s4196 + $0x10] sm:$0xff] %v4201
                %v4203 = vld [vmem:[%s4195 + $0x18] sm:$0xff]
                %4204 = vst [vmem:[%s4196 + $0x18] sm:$0xff] %v4203
                %v4205 = vld [vmem:[%s4195 + $0x20] sm:$0xff]
                %4206 = vst [vmem:[%s4196 + $0x20] sm:$0xff] %v4205
                %v4207 = vld [vmem:[%s4195 + $0x28] sm:$0xff]
                %4208 = vst [vmem:[%s4196 + $0x28] sm:$0xff] %v4207
                %v4209 = vld [vmem:[%s4195 + $0x30] sm:$0xff]
                %4210 = vst [vmem:[%s4196 + $0x30] sm:$0xff] %v4209
                %v4211 = vld [vmem:[%s4195 + $0x38] sm:$0xff]
                %4212 = vst [vmem:[%s4196 + $0x38] sm:$0xff] %v4211
                %s4213 = sadd.s32 1, %s4194
                %p4214 = scmp.ge.s32.totalorder %s4213, %s4187
                %s4215 = scalar_select %p4214, 0, %s4213
                %s4216 = smul.u32 %s4215, 64
                %s4217 = smul.u32 %s4215, 64
                %s4218 = scalar_lea.vmem %s4167, %s4216 [#allocation2]
                %s4219 = scalar_lea.vmem %s4178, %s4217
              $region73: #{spatial_position_extractor.1} parent=67 // loop_footer
                %s4191 = sadd.s32 %s4189, 1
              $region74: #{spatial_position_extractor.1} parent=67 // loop_footer_branch
                %4188 = sbr.rel target = $region70
              $region75: #{spatial_position_extractor.1} parent=67 // loop_exit
                _
              %s4220 = sshrl.u32 %s4174, 3
              %s4221 = sand.u32 %s4174, 7
              %s4222 = smul.u32 %s4220, 8
              %s4223 = smul.u32 8, %s4222
              %s4224 = scalar_lea.vmem %s4167, %s4223 [#allocation2]
              %s4225 = smul.u32 8, %s4222
              %s4226 = scalar_lea.vmem %s4178, %s4225
              // While loop
              $region76: #{spatial_position_extractor.1} parent=67 // loop_pre_header
                _
              $region77: #{spatial_position_extractor.1} parent=67 // loop_header
                %s4228 = sphi 0, %s4230
                %p4229 = scmp.ge.s32.totalorder %s4228, %s4221
                %s4233 = sphi 0, %s4240
                %s4234 = sphi %s4224, %s4243
                %s4235 = sphi %s4226, %s4244
              $region78: #{spatial_position_extractor.1} parent=67 // loop_header_branch
                %4232 = sbr.rel (%p4229) target = $region82
              $region79: #{spatial_position_extractor.1} parent=67 // loop_body
                %v4236 = vld [vmem:[%s4234] sm:$0xff]
                %4237 = vst [vmem:[%s4235] sm:$0xff] %v4236
                %s4238 = sadd.s32 1, %s4233
                %p4239 = scmp.ge.s32.totalorder %s4238, %s4221
                %s4240 = scalar_select %p4239, 0, %s4238
                %s4241 = smul.u32 %s4240, 8
                %s4242 = smul.u32 %s4240, 8
                %s4243 = scalar_lea.vmem %s4224, %s4241 [#allocation2]
                %s4244 = scalar_lea.vmem %s4226, %s4242
              $region80: #{spatial_position_extractor.1} parent=67 // loop_footer
                %s4230 = sadd.s32 %s4228, 1
              $region81: #{spatial_position_extractor.1} parent=67 // loop_footer_branch
                %4227 = sbr.rel target = $region77
              $region82: #{spatial_position_extractor.1} parent=67 // loop_exit
                _
            $region68: #{spatial_position_extractor.1} parent=59 // pred_fallthru
              _
          $region60: #{spatial_position_extractor.1} parent=55 // pred_fallthru
            _
          %4307 = vnop
        $region56: #{spatial_position_extractor.1} parent=51 // pred_fallthru
          _
      $region52: #{spatial_position_extractor.1} parent=5 // pred_fallthru
        _
      %p4308 = scmp.le.s32.totalorder 2, %s14
      // Predicated region
      $region105: #{spatial_position_extractor.1} parent=5 // pred_check
        %p4309 = pneg %p4308
      $region106: #{spatial_position_extractor.1} parent=5 // pred_check_branch
        %4311 = sbr.rel (%p4309) target = $region108
      $region107: #{spatial_position_extractor.1} parent=5 // pred_region
        %s4312 = ssub.s32 %s14, 2
        // Predicated region
        $region109: #{spatial_position_extractor.1} parent=107 // pred_check
          %p4313 = pneg %p221
        $region110: #{spatial_position_extractor.1} parent=107 // pred_check_branch
          %4315 = sbr.rel (%p4313) target = $region112
        $region111: #{spatial_position_extractor.1} parent=107 // pred_region
          %s4316 = sand.u32 %s206, 1
          %s4317 = sand.u32 %s206, 1
          %s4318 = smul.addr %s4317, 64
          %s4319 = scalar_lea.vmem [#allocation2], %s4318
        $region112: #{spatial_position_extractor.1} parent=107 // pred_fallthru
          _
      $region108: #{spatial_position_extractor.1} parent=5 // pred_fallthru
        _
    $region6: #{spatial_position_extractor.1} parent=1 // loop_footer
      %s18 = sadd.s32 1, %s14
    $region7: #{spatial_position_extractor.1} parent=1 // loop_footer_branch
      %13 = sbr.rel target = $region3
    $region8: #{spatial_position_extractor.1} parent=1 // loop_exit
      _

</llo_original>
